<compile_context>
chip_gen: v6e
topology: v6e:2x2x1
jax: 0.10.0
libtpu: 0.0.40
codegen_flags: <defaults>
</compile_context>

<pallas_src>
import jax
import jax.numpy as jnp
from jax import lax
from jax.experimental import pallas as pl
from jax.experimental.pallas import tpu as pltpu

D_MODEL = 32
NHEAD = 4
HEAD_DIM = D_MODEL // NHEAD
DIM_FF = 64
NUM_LAYERS = 2
EPS = 1e-5


def _layer_norm(x, gamma, beta):
    mu = jnp.mean(x, axis=-1, keepdims=True)
    xc = x - mu
    var = jnp.mean(xc * xc, axis=-1, keepdims=True)
    inv = lax.rsqrt(var + EPS)
    return xc * inv * gamma + beta


def encoder_kernel(src_ref, pos_ref,
                   wqk_ref, bqk_ref, wv_ref, bv_ref, wo_ref, bo_ref,
                   w1_ref, b1_ref, w2_ref, b2_ref,
                   g1_ref, be1_ref, g2_ref, be2_ref,
                   out_ref):
    """All layers fused; whole batch processed in a single invocation."""
    B, S, D = src_ref.shape
    M = B * S

    # Flatten (B, S, D) -> (B*S, D): last dim unchanged, leading-dim merge is a
    # free reinterpretation (no relayout; M = 16 is sublane-aligned).
    x = src_ref[...].astype(jnp.float32).reshape(M, D)
    pos = pos_ref[...].astype(jnp.float32).reshape(M, D)

    # Static unroll over layers: activation x stays resident in VMEM/vregs.
    for l in range(NUM_LAYERS):
        wqk = wqk_ref[l]          # (D, 2D) bf16, Wq half pre-scaled by 1/sqrt(hd)
        bqk = bqk_ref[l]          # (1, 2D) f32
        wv, bv = wv_ref[l], bv_ref[l]
        wo, bo = wo_ref[l], bo_ref[l]
        w1, b1 = w1_ref[l], b1_ref[l]
        w2, b2 = w2_ref[l], b2_ref[l]
        g1, be1 = g1_ref[l], be1_ref[l]
        g2, be2 = g2_ref[l], be2_ref[l]

        # --- self-attention -------------------------------------------------
        # q/k come from (x + pos); v comes from x (do NOT fuse into one input).
        qk_in = (x + pos).astype(jnp.bfloat16)
        qk = jnp.dot(qk_in, wqk, preferred_element_type=jnp.float32) + bqk   # (M, 2D)
        v = jnp.dot(x.astype(jnp.bfloat16), wv,
                    preferred_element_type=jnp.float32) + bv                 # (M, D)

        qk3 = qk.reshape(B, S, 2 * D)   # free leading-dim split
        v3 = v.reshape(B, S, D)

        # Per-head attention, accumulated directly through per-head slices of
        # the output projection (avoids an XLU lane-concatenate of head outs).
        attn = jnp.zeros((M, D), jnp.float32)
        for h in range(NHEAD):          # static head loop, batched over B
            lo = h * HEAD_DIM
            qh = qk3[:, :, lo:lo + HEAD_DIM].astype(jnp.bfloat16)            # (B,S,hd)
            kh = qk3[:, :, D + lo:D + lo + HEAD_DIM].astype(jnp.bfloat16)    # (B,S,hd)
            vh = v3[:, :, lo:lo + HEAD_DIM].astype(jnp.bfloat16)             # (B,S,hd)

            scores = jnp.einsum('bqd,bkd->bqk', qh, kh,
                                preferred_element_type=jnp.float32)          # (B,S,S)
            m = jnp.max(scores, axis=-1, keepdims=True)
            p = jnp.exp(scores - m)
            denom = jnp.sum(p, axis=-1, keepdims=True)
            p = p * pl.reciprocal(denom, approx=True)                        # EUP, not VALU div
            ctx = jnp.einsum('bqk,bkd->bqd', p.astype(jnp.bfloat16), vh,
                             preferred_element_type=jnp.float32)             # (B,S,hd)
            # concat(heads) @ Wo  ==  sum_h ctx_h @ Wo[h*hd:(h+1)*hd, :]
            attn = attn + jnp.dot(ctx.reshape(M, HEAD_DIM).astype(jnp.bfloat16),
                                  wo[lo:lo + HEAD_DIM, :],
                                  preferred_element_type=jnp.float32)
        attn = attn + bo

        # residual + norm1 (dropout is identity in eval mode)
        x = _layer_norm(x + attn, g1, be1)

        # --- FFN: linear2(relu(linear1(x))) ----------------------------------
        h1 = jnp.dot(x.astype(jnp.bfloat16), w1,
                     preferred_element_type=jnp.float32) + b1
        h1 = jnp.maximum(h1, 0.0)
        ffn = jnp.dot(h1.astype(jnp.bfloat16), w2,
                      preferred_element_type=jnp.float32) + b2

        # residual + norm2
        x = _layer_norm(x + ffn, g2, be2)

    # TODO(synk): output last dim is 32 (<128 lanes -> masked store); total
    # output is only 2 KB here so a lane-dense repack is not worth the relayout.
    out_ref[...] = x.reshape(B, S, D).astype(out_ref.dtype)


def transformer_encoder(src_sbd, pos_sbd, stacked_params, norm_params=None):
    """TransformerEncoder.forward.

    src_sbd, pos_sbd: (S, B, D) (PyTorch MultiheadAttention convention).
    mask / src_key_padding_mask are None in this configuration.
    """
    x = jnp.transpose(src_sbd, (1, 0, 2))    # (B, S, D) kernel layout
    pos = jnp.transpose(pos_sbd, (1, 0, 2))
    B, S, D = x.shape

    # Single pallas_call, no grid: the whole problem (< 1 MiB) lives in VMEM for
    # one invocation, removing per-layer launches and per-grid-step overhead.
    # TODO(synk): at real DETR sizes (S~1000, D=256) add a tiled grid over S
    # (marked "parallel" so v7x's 2 TensorCores both get work) and retile the
    # (S,S) score blocks for the 64 MiB v7x VMEM budget.
    y = pl.pallas_call(
        encoder_kernel,
        out_shape=jax.ShapeDtypeStruct((B, S, D), x.dtype),
        compiler_params=pltpu.CompilerParams(vmem_limit_bytes=32 * 1024 * 1024),
    )(x, pos, *stacked_params)

    if norm_params is not None:
        g, b = norm_params
        y = _layer_norm(y, g, b)
    return jnp.transpose(y, (1, 0, 2))       # back to (S, B, D)


def make_layer_params(key):
    """Per-layer PyTorch-style params (weights already (in, out))."""
    ks = jax.random.split(key, 6)

    def w(k, shape):
        return jax.random.normal(k, shape, jnp.float32) * 0.05

    zeros_d = jnp.zeros((D_MODEL,), jnp.float32)
    return dict(
        wq=w(ks[0], (D_MODEL, D_MODEL)), bq=zeros_d,
        wk=w(ks[1], (D_MODEL, D_MODEL)), bk=zeros_d,
        wv=w(ks[2], (D_MODEL, D_MODEL)), bv=zeros_d,
        wo=w(ks[3], (D_MODEL, D_MODEL)), bo=zeros_d,
        w1=w(ks[4], (D_MODEL, DIM_FF)), b1=jnp.zeros((DIM_FF,), jnp.float32),
        w2=w(ks[5], (DIM_FF, D_MODEL)), b2=zeros_d,
        g1=jnp.ones((D_MODEL,), jnp.float32), be1=zeros_d,
        g2=jnp.ones((D_MODEL,), jnp.float32), be2=zeros_d,
    )


def stack_params(layer_params):
    """Pack per-layer params into kernel-ready stacked arrays.

    * 1/sqrt(head_dim) folded into Wq/bq.
    * Wq (scaled) and Wk concatenated into one (D, 2D) projection.
    * Matmul weights cast to bf16; biases / LayerNorm params kept f32.
    * Everything stacked along a leading layer axis so the fused kernel indexes
      layer l with a static leading-dim read.
    """
    scale = 1.0 / (HEAD_DIM ** 0.5)
    cols = {k: [] for k in
            ('wqk', 'bqk', 'wv', 'bv', 'wo', 'bo', 'w1', 'b1', 'w2', 'b2',
             'g1', 'be1', 'g2', 'be2')}
    for p in layer_params:
        cols['wqk'].append(jnp.concatenate([p['wq'] * scale, p['wk']], axis=1))
        cols['bqk'].append(jnp.concatenate([p['bq'] * scale, p['bk']])[None, :])
        cols['wv'].append(p['wv']); cols['bv'].append(p['bv'][None, :])
        cols['wo'].append(p['wo']); cols['bo'].append(p['bo'][None, :])
        cols['w1'].append(p['w1']); cols['b1'].append(p['b1'][None, :])
        cols['w2'].append(p['w2']); cols['b2'].append(p['b2'][None, :])
        cols['g1'].append(p['g1'][None, :]); cols['be1'].append(p['be1'][None, :])
        cols['g2'].append(p['g2'][None, :]); cols['be2'].append(p['be2'][None, :])

    bf, f32 = jnp.bfloat16, jnp.float32
    dtypes = dict(wqk=bf, bqk=f32, wv=bf, bv=f32, wo=bf, bo=f32,
                  w1=bf, b1=f32, w2=bf, b2=f32,
                  g1=f32, be1=f32, g2=f32, be2=f32)
    order = ('wqk', 'bqk', 'wv', 'bv', 'wo', 'bo', 'w1', 'b1', 'w2', 'b2',
             'g1', 'be1', 'g2', 'be2')
    return tuple(jnp.stack(cols[k]).astype(dtypes[k]) for k in order)


if __name__ == "__main__":
    S, B = 8, 2
    key = jax.random.PRNGKey(0)
    k_src, k_pos, k_par = jax.random.split(key, 3)

    src = jax.random.normal(k_src, (S, B, D_MODEL), jnp.float32)
    pos = jax.random.normal(k_pos, (S, B, D_MODEL), jnp.float32)

    layer_keys = jax.random.split(k_par, NUM_LAYERS)
    stacked = stack_params([make_layer_params(k) for k in layer_keys])

    fwd = jax.jit(lambda s, p: transformer_encoder(s, p, stacked, norm_params=None))
    out = jax.block_until_ready(fwd(src, pos))

    assert out.shape == (S, B, D_MODEL)
    assert bool(jnp.all(jnp.isfinite(out)))
    print("KERNEL_OK")
</pallas_src>

<mosaic_0001>
module attributes {stable_mosaic.version = 11 : i64} {
  func.func @encoder_kernel(%arg0: memref<2x8x32xf32, #tpu.memory_space<vmem>>, %arg1: memref<2x8x32xf32, #tpu.memory_space<vmem>>, %arg2: memref<2x32x64xbf16, #tpu.memory_space<vmem>>, %arg3: memref<2x1x64xf32, #tpu.memory_space<vmem>>, %arg4: memref<2x32x32xbf16, #tpu.memory_space<vmem>>, %arg5: memref<2x1x32xf32, #tpu.memory_space<vmem>>, %arg6: memref<2x32x32xbf16, #tpu.memory_space<vmem>>, %arg7: memref<2x1x32xf32, #tpu.memory_space<vmem>>, %arg8: memref<2x32x64xbf16, #tpu.memory_space<vmem>>, %arg9: memref<2x1x64xf32, #tpu.memory_space<vmem>>, %arg10: memref<2x64x32xbf16, #tpu.memory_space<vmem>>, %arg11: memref<2x1x32xf32, #tpu.memory_space<vmem>>, %arg12: memref<2x1x32xf32, #tpu.memory_space<vmem>>, %arg13: memref<2x1x32xf32, #tpu.memory_space<vmem>>, %arg14: memref<2x1x32xf32, #tpu.memory_space<vmem>>, %arg15: memref<2x1x32xf32, #tpu.memory_space<vmem>>, %arg16: memref<2x8x32xf32, #tpu.memory_space<vmem>>) attributes {dimension_semantics = [], scalar_prefetch = 0 : i64, scratch_operands = 0 : i64, tpu.core_type = #tpu.core_type<tc>} {
    %c0 = arith.constant 0 : index
    %c0_0 = arith.constant 0 : index
    %c0_1 = arith.constant 0 : index
    %0 = vector.load %arg0[%c0, %c0_0, %c0_1] : memref<2x8x32xf32, #tpu.memory_space<vmem>>, vector<2x8x32xf32>
    %1 = vector.shape_cast %0 : vector<2x8x32xf32> to vector<16x32xf32>
    %c0_2 = arith.constant 0 : index
    %c0_3 = arith.constant 0 : index
    %c0_4 = arith.constant 0 : index
    %2 = vector.load %arg1[%c0_2, %c0_3, %c0_4] : memref<2x8x32xf32, #tpu.memory_space<vmem>>, vector<2x8x32xf32>
    %3 = vector.shape_cast %2 : vector<2x8x32xf32> to vector<16x32xf32>
    %c0_5 = arith.constant 0 : index
    %c0_6 = arith.constant 0 : index
    %c0_7 = arith.constant 0 : index
    %4 = vector.load %arg2[%c0_5, %c0_6, %c0_7] : memref<2x32x64xbf16, #tpu.memory_space<vmem>>, vector<1x32x64xbf16>
    %5 = vector.shape_cast %4 : vector<1x32x64xbf16> to vector<32x64xbf16>
    %c0_8 = arith.constant 0 : index
    %c0_9 = arith.constant 0 : index
    %c0_10 = arith.constant 0 : index
    %6 = vector.load %arg3[%c0_8, %c0_9, %c0_10] : memref<2x1x64xf32, #tpu.memory_space<vmem>>, vector<1x1x64xf32>
    %7 = vector.shape_cast %6 : vector<1x1x64xf32> to vector<1x64xf32>
    %c0_11 = arith.constant 0 : index
    %c0_12 = arith.constant 0 : index
    %c0_13 = arith.constant 0 : index
    %8 = vector.load %arg4[%c0_11, %c0_12, %c0_13] : memref<2x32x32xbf16, #tpu.memory_space<vmem>>, vector<1x32x32xbf16>
    %9 = vector.shape_cast %8 : vector<1x32x32xbf16> to vector<32x32xbf16>
    %c0_14 = arith.constant 0 : index
    %c0_15 = arith.constant 0 : index
    %c0_16 = arith.constant 0 : index
    %10 = vector.load %arg5[%c0_14, %c0_15, %c0_16] : memref<2x1x32xf32, #tpu.memory_space<vmem>>, vector<1x1x32xf32>
    %11 = vector.shape_cast %10 : vector<1x1x32xf32> to vector<1x32xf32>
    %c0_17 = arith.constant 0 : index
    %c0_18 = arith.constant 0 : index
    %c0_19 = arith.constant 0 : index
    %12 = vector.load %arg6[%c0_17, %c0_18, %c0_19] : memref<2x32x32xbf16, #tpu.memory_space<vmem>>, vector<1x32x32xbf16>
    %13 = vector.shape_cast %12 : vector<1x32x32xbf16> to vector<32x32xbf16>
    %c0_20 = arith.constant 0 : index
    %c0_21 = arith.constant 0 : index
    %c0_22 = arith.constant 0 : index
    %14 = vector.load %arg7[%c0_20, %c0_21, %c0_22] : memref<2x1x32xf32, #tpu.memory_space<vmem>>, vector<1x1x32xf32>
    %15 = vector.shape_cast %14 : vector<1x1x32xf32> to vector<1x32xf32>
    %c0_23 = arith.constant 0 : index
    %c0_24 = arith.constant 0 : index
    %c0_25 = arith.constant 0 : index
    %16 = vector.load %arg8[%c0_23, %c0_24, %c0_25] : memref<2x32x64xbf16, #tpu.memory_space<vmem>>, vector<1x32x64xbf16>
    %17 = vector.shape_cast %16 : vector<1x32x64xbf16> to vector<32x64xbf16>
    %c0_26 = arith.constant 0 : index
    %c0_27 = arith.constant 0 : index
    %c0_28 = arith.constant 0 : index
    %18 = vector.load %arg9[%c0_26, %c0_27, %c0_28] : memref<2x1x64xf32, #tpu.memory_space<vmem>>, vector<1x1x64xf32>
    %19 = vector.shape_cast %18 : vector<1x1x64xf32> to vector<1x64xf32>
    %c0_29 = arith.constant 0 : index
    %c0_30 = arith.constant 0 : index
    %c0_31 = arith.constant 0 : index
    %20 = vector.load %arg10[%c0_29, %c0_30, %c0_31] : memref<2x64x32xbf16, #tpu.memory_space<vmem>>, vector<1x64x32xbf16>
    %21 = vector.shape_cast %20 : vector<1x64x32xbf16> to vector<64x32xbf16>
    %c0_32 = arith.constant 0 : index
    %c0_33 = arith.constant 0 : index
    %c0_34 = arith.constant 0 : index
    %22 = vector.load %arg11[%c0_32, %c0_33, %c0_34] : memref<2x1x32xf32, #tpu.memory_space<vmem>>, vector<1x1x32xf32>
    %23 = vector.shape_cast %22 : vector<1x1x32xf32> to vector<1x32xf32>
    %c0_35 = arith.constant 0 : index
    %c0_36 = arith.constant 0 : index
    %c0_37 = arith.constant 0 : index
    %24 = vector.load %arg12[%c0_35, %c0_36, %c0_37] : memref<2x1x32xf32, #tpu.memory_space<vmem>>, vector<1x1x32xf32>
    %25 = vector.shape_cast %24 : vector<1x1x32xf32> to vector<1x32xf32>
    %c0_38 = arith.constant 0 : index
    %c0_39 = arith.constant 0 : index
    %c0_40 = arith.constant 0 : index
    %26 = vector.load %arg13[%c0_38, %c0_39, %c0_40] : memref<2x1x32xf32, #tpu.memory_space<vmem>>, vector<1x1x32xf32>
    %27 = vector.shape_cast %26 : vector<1x1x32xf32> to vector<1x32xf32>
    %c0_41 = arith.constant 0 : index
    %c0_42 = arith.constant 0 : index
    %c0_43 = arith.constant 0 : index
    %28 = vector.load %arg14[%c0_41, %c0_42, %c0_43] : memref<2x1x32xf32, #tpu.memory_space<vmem>>, vector<1x1x32xf32>
    %29 = vector.shape_cast %28 : vector<1x1x32xf32> to vector<1x32xf32>
    %c0_44 = arith.constant 0 : index
    %c0_45 = arith.constant 0 : index
    %c0_46 = arith.constant 0 : index
    %30 = vector.load %arg15[%c0_44, %c0_45, %c0_46] : memref<2x1x32xf32, #tpu.memory_space<vmem>>, vector<1x1x32xf32>
    %31 = vector.shape_cast %30 : vector<1x1x32xf32> to vector<1x32xf32>
    %32 = arith.addf %1, %3 : vector<16x32xf32>
    %33 = arith.truncf %32 : vector<16x32xf32> to vector<16x32xbf16>
    %cst = arith.constant dense<0.000000e+00> : vector<16x64xf32>
    %34 = tpu.matmul %33, %5, %cst {dimension_numbers = #tpu.dot_dimension_numbers<[1], [0], [0], [1], [0, 0, 1, 1], [], []>} : vector<16x32xbf16>, vector<32x64xbf16>, vector<16x64xf32> -> vector<16x64xf32>
    %35 = vector.broadcast %7 : vector<1x64xf32> to vector<16x64xf32>
    %36 = arith.addf %34, %35 : vector<16x64xf32>
    %37 = arith.truncf %1 : vector<16x32xf32> to vector<16x32xbf16>
    %cst_47 = arith.constant dense<0.000000e+00> : vector<16x32xf32>
    %38 = tpu.matmul %37, %9, %cst_47 {dimension_numbers = #tpu.dot_dimension_numbers<[1], [0], [0], [1], [0, 0, 1, 1], [], []>} : vector<16x32xbf16>, vector<32x32xbf16>, vector<16x32xf32> -> vector<16x32xf32>
    %39 = vector.broadcast %11 : vector<1x32xf32> to vector<16x32xf32>
    %40 = arith.addf %38, %39 : vector<16x32xf32>
    %41 = vector.shape_cast %36 : vector<16x64xf32> to vector<2x8x64xf32>
    %42 = vector.shape_cast %40 : vector<16x32xf32> to vector<2x8x32xf32>
    %cst_48 = arith.constant 0.000000e+00 : f32
    %43 = vector.broadcast %cst_48 : f32 to vector<16x32xf32>
    %44 = vector.extract_strided_slice %41 {offsets = [0, 0, 0], sizes = [2, 8, 8], strides = [1, 1, 1]} : vector<2x8x64xf32> to vector<2x8x8xf32>
    %45 = arith.truncf %44 : vector<2x8x8xf32> to vector<2x8x8xbf16>
    %46 = vector.extract_strided_slice %41 {offsets = [0, 0, 32], sizes = [2, 8, 8], strides = [1, 1, 1]} : vector<2x8x64xf32> to vector<2x8x8xf32>
    %47 = arith.truncf %46 : vector<2x8x8xf32> to vector<2x8x8xbf16>
    %48 = vector.extract_strided_slice %42 {offsets = [0, 0, 0], sizes = [2, 8, 8], strides = [1, 1, 1]} : vector<2x8x32xf32> to vector<2x8x8xf32>
    %49 = arith.truncf %48 : vector<2x8x8xf32> to vector<2x8x8xbf16>
    "tpu.trace_start"() <{level = 10 : i32, message = "bqd,bkd->bqk"}> : () -> ()
    %cst_49 = arith.constant dense<0.000000e+00> : vector<2x8x8xf32>
    %50 = tpu.matmul %45, %47, %cst_49 {dimension_numbers = #tpu.dot_dimension_numbers<[2], [2], [1], [1], [0, 0, 0, 1, 1, 1], [0], [0]>} : vector<2x8x8xbf16>, vector<2x8x8xbf16>, vector<2x8x8xf32> -> vector<2x8x8xf32>
    "tpu.trace_stop"() : () -> ()
    %cst_50 = arith.constant dense<0xFF800000> : vector<2x8xf32>
    %51 = vector.multi_reduction <maximumf>, %50, %cst_50 [2] : vector<2x8x8xf32> to vector<2x8xf32>
    %52 = vector.shape_cast %51 : vector<2x8xf32> to vector<2x8x1xf32>
    %53 = vector.broadcast %52 : vector<2x8x1xf32> to vector<2x8x8xf32>
    %54 = arith.subf %50, %53 : vector<2x8x8xf32>
    %55 = math.exp %54 : vector<2x8x8xf32>
    %cst_51 = arith.constant dense<0.000000e+00> : vector<2x8xf32>
    %56 = vector.multi_reduction <add>, %55, %cst_51 [2] : vector<2x8x8xf32> to vector<2x8xf32>
    %57 = vector.shape_cast %56 : vector<2x8xf32> to vector<2x8x1xf32>
    %58 = tpu.reciprocal %57 {approx = true} : vector<2x8x1xf32> -> vector<2x8x1xf32>
    %59 = vector.broadcast %58 : vector<2x8x1xf32> to vector<2x8x8xf32>
    %60 = arith.mulf %55, %59 : vector<2x8x8xf32>
    %61 = arith.truncf %60 : vector<2x8x8xf32> to vector<2x8x8xbf16>
    "tpu.trace_start"() <{level = 10 : i32, message = "bqk,bkd->bqd"}> : () -> ()
    %cst_52 = arith.constant dense<0.000000e+00> : vector<2x8x8xf32>
    %62 = tpu.matmul %61, %49, %cst_52 {dimension_numbers = #tpu.dot_dimension_numbers<[2], [1], [1], [2], [0, 0, 0, 1, 1, 2], [0], [0]>} : vector<2x8x8xbf16>, vector<2x8x8xbf16>, vector<2x8x8xf32> -> vector<2x8x8xf32>
    "tpu.trace_stop"() : () -> ()
    %63 = vector.shape_cast %62 : vector<2x8x8xf32> to vector<16x8xf32>
    %64 = arith.truncf %63 : vector<16x8xf32> to vector<16x8xbf16>
    %65 = vector.extract_strided_slice %13 {offsets = [0, 0], sizes = [8, 32], strides = [1, 1]} : vector<32x32xbf16> to vector<8x32xbf16>
    %cst_53 = arith.constant dense<0.000000e+00> : vector<16x32xf32>
    %66 = tpu.matmul %64, %65, %cst_53 {dimension_numbers = #tpu.dot_dimension_numbers<[1], [0], [0], [1], [0, 0, 1, 1], [], []>} : vector<16x8xbf16>, vector<8x32xbf16>, vector<16x32xf32> -> vector<16x32xf32>
    %67 = arith.addf %43, %66 : vector<16x32xf32>
    %68 = vector.extract_strided_slice %41 {offsets = [0, 0, 8], sizes = [2, 8, 8], strides = [1, 1, 1]} : vector<2x8x64xf32> to vector<2x8x8xf32>
    %69 = arith.truncf %68 : vector<2x8x8xf32> to vector<2x8x8xbf16>
    %70 = vector.extract_strided_slice %41 {offsets = [0, 0, 40], sizes = [2, 8, 8], strides = [1, 1, 1]} : vector<2x8x64xf32> to vector<2x8x8xf32>
    %71 = arith.truncf %70 : vector<2x8x8xf32> to vector<2x8x8xbf16>
    %72 = vector.extract_strided_slice %42 {offsets = [0, 0, 8], sizes = [2, 8, 8], strides = [1, 1, 1]} : vector<2x8x32xf32> to vector<2x8x8xf32>
    %73 = arith.truncf %72 : vector<2x8x8xf32> to vector<2x8x8xbf16>
    "tpu.trace_start"() <{level = 10 : i32, message = "bqd,bkd->bqk"}> : () -> ()
    %cst_54 = arith.constant dense<0.000000e+00> : vector<2x8x8xf32>
    %74 = tpu.matmul %69, %71, %cst_54 {dimension_numbers = #tpu.dot_dimension_numbers<[2], [2], [1], [1], [0, 0, 0, 1, 1, 1], [0], [0]>} : vector<2x8x8xbf16>, vector<2x8x8xbf16>, vector<2x8x8xf32> -> vector<2x8x8xf32>
    "tpu.trace_stop"() : () -> ()
    %cst_55 = arith.constant dense<0xFF800000> : vector<2x8xf32>
    %75 = vector.multi_reduction <maximumf>, %74, %cst_55 [2] : vector<2x8x8xf32> to vector<2x8xf32>
    %76 = vector.shape_cast %75 : vector<2x8xf32> to vector<2x8x1xf32>
    %77 = vector.broadcast %76 : vector<2x8x1xf32> to vector<2x8x8xf32>
    %78 = arith.subf %74, %77 : vector<2x8x8xf32>
    %79 = math.exp %78 : vector<2x8x8xf32>
    %cst_56 = arith.constant dense<0.000000e+00> : vector<2x8xf32>
    %80 = vector.multi_reduction <add>, %79, %cst_56 [2] : vector<2x8x8xf32> to vector<2x8xf32>
    %81 = vector.shape_cast %80 : vector<2x8xf32> to vector<2x8x1xf32>
    %82 = tpu.reciprocal %81 {approx = true} : vector<2x8x1xf32> -> vector<2x8x1xf32>
    %83 = vector.broadcast %82 : vector<2x8x1xf32> to vector<2x8x8xf32>
    %84 = arith.mulf %79, %83 : vector<2x8x8xf32>
    %85 = arith.truncf %84 : vector<2x8x8xf32> to vector<2x8x8xbf16>
    "tpu.trace_start"() <{level = 10 : i32, message = "bqk,bkd->bqd"}> : () -> ()
    %cst_57 = arith.constant dense<0.000000e+00> : vector<2x8x8xf32>
    %86 = tpu.matmul %85, %73, %cst_57 {dimension_numbers = #tpu.dot_dimension_numbers<[2], [1], [1], [2], [0, 0, 0, 1, 1, 2], [0], [0]>} : vector<2x8x8xbf16>, vector<2x8x8xbf16>, vector<2x8x8xf32> -> vector<2x8x8xf32>
    "tpu.trace_stop"() : () -> ()
    %87 = vector.shape_cast %86 : vector<2x8x8xf32> to vector<16x8xf32>
    %88 = arith.truncf %87 : vector<16x8xf32> to vector<16x8xbf16>
    %89 = vector.extract_strided_slice %13 {offsets = [8, 0], sizes = [8, 32], strides = [1, 1]} : vector<32x32xbf16> to vector<8x32xbf16>
    %cst_58 = arith.constant dense<0.000000e+00> : vector<16x32xf32>
    %90 = tpu.matmul %88, %89, %cst_58 {dimension_numbers = #tpu.dot_dimension_numbers<[1], [0], [0], [1], [0, 0, 1, 1], [], []>} : vector<16x8xbf16>, vector<8x32xbf16>, vector<16x32xf32> -> vector<16x32xf32>
    %91 = arith.addf %67, %90 : vector<16x32xf32>
    %92 = vector.extract_strided_slice %41 {offsets = [0, 0, 16], sizes = [2, 8, 8], strides = [1, 1, 1]} : vector<2x8x64xf32> to vector<2x8x8xf32>
    %93 = arith.truncf %92 : vector<2x8x8xf32> to vector<2x8x8xbf16>
    %94 = vector.extract_strided_slice %41 {offsets = [0, 0, 48], sizes = [2, 8, 8], strides = [1, 1, 1]} : vector<2x8x64xf32> to vector<2x8x8xf32>
    %95 = arith.truncf %94 : vector<2x8x8xf32> to vector<2x8x8xbf16>
    %96 = vector.extract_strided_slice %42 {offsets = [0, 0, 16], sizes = [2, 8, 8], strides = [1, 1, 1]} : vector<2x8x32xf32> to vector<2x8x8xf32>
    %97 = arith.truncf %96 : vector<2x8x8xf32> to vector<2x8x8xbf16>
    "tpu.trace_start"() <{level = 10 : i32, message = "bqd,bkd->bqk"}> : () -> ()
    %cst_59 = arith.constant dense<0.000000e+00> : vector<2x8x8xf32>
    %98 = tpu.matmul %93, %95, %cst_59 {dimension_numbers = #tpu.dot_dimension_numbers<[2], [2], [1], [1], [0, 0, 0, 1, 1, 1], [0], [0]>} : vector<2x8x8xbf16>, vector<2x8x8xbf16>, vector<2x8x8xf32> -> vector<2x8x8xf32>
    "tpu.trace_stop"() : () -> ()
    %cst_60 = arith.constant dense<0xFF800000> : vector<2x8xf32>
    %99 = vector.multi_reduction <maximumf>, %98, %cst_60 [2] : vector<2x8x8xf32> to vector<2x8xf32>
    %100 = vector.shape_cast %99 : vector<2x8xf32> to vector<2x8x1xf32>
    %101 = vector.broadcast %100 : vector<2x8x1xf32> to vector<2x8x8xf32>
    %102 = arith.subf %98, %101 : vector<2x8x8xf32>
    %103 = math.exp %102 : vector<2x8x8xf32>
    %cst_61 = arith.constant dense<0.000000e+00> : vector<2x8xf32>
    %104 = vector.multi_reduction <add>, %103, %cst_61 [2] : vector<2x8x8xf32> to vector<2x8xf32>
    %105 = vector.shape_cast %104 : vector<2x8xf32> to vector<2x8x1xf32>
    %106 = tpu.reciprocal %105 {approx = true} : vector<2x8x1xf32> -> vector<2x8x1xf32>
    %107 = vector.broadcast %106 : vector<2x8x1xf32> to vector<2x8x8xf32>
    %108 = arith.mulf %103, %107 : vector<2x8x8xf32>
    %109 = arith.truncf %108 : vector<2x8x8xf32> to vector<2x8x8xbf16>
    "tpu.trace_start"() <{level = 10 : i32, message = "bqk,bkd->bqd"}> : () -> ()
    %cst_62 = arith.constant dense<0.000000e+00> : vector<2x8x8xf32>
    %110 = tpu.matmul %109, %97, %cst_62 {dimension_numbers = #tpu.dot_dimension_numbers<[2], [1], [1], [2], [0, 0, 0, 1, 1, 2], [0], [0]>} : vector<2x8x8xbf16>, vector<2x8x8xbf16>, vector<2x8x8xf32> -> vector<2x8x8xf32>
    "tpu.trace_stop"() : () -> ()
    %111 = vector.shape_cast %110 : vector<2x8x8xf32> to vector<16x8xf32>
    %112 = arith.truncf %111 : vector<16x8xf32> to vector<16x8xbf16>
    %113 = vector.extract_strided_slice %13 {offsets = [16, 0], sizes = [8, 32], strides = [1, 1]} : vector<32x32xbf16> to vector<8x32xbf16>
    %cst_63 = arith.constant dense<0.000000e+00> : vector<16x32xf32>
    %114 = tpu.matmul %112, %113, %cst_63 {dimension_numbers = #tpu.dot_dimension_numbers<[1], [0], [0], [1], [0, 0, 1, 1], [], []>} : vector<16x8xbf16>, vector<8x32xbf16>, vector<16x32xf32> -> vector<16x32xf32>
    %115 = arith.addf %91, %114 : vector<16x32xf32>
    %116 = vector.extract_strided_slice %41 {offsets = [0, 0, 24], sizes = [2, 8, 8], strides = [1, 1, 1]} : vector<2x8x64xf32> to vector<2x8x8xf32>
    %117 = arith.truncf %116 : vector<2x8x8xf32> to vector<2x8x8xbf16>
    %118 = vector.extract_strided_slice %41 {offsets = [0, 0, 56], sizes = [2, 8, 8], strides = [1, 1, 1]} : vector<2x8x64xf32> to vector<2x8x8xf32>
    %119 = arith.truncf %118 : vector<2x8x8xf32> to vector<2x8x8xbf16>
    %120 = vector.extract_strided_slice %42 {offsets = [0, 0, 24], sizes = [2, 8, 8], strides = [1, 1, 1]} : vector<2x8x32xf32> to vector<2x8x8xf32>
    %121 = arith.truncf %120 : vector<2x8x8xf32> to vector<2x8x8xbf16>
    "tpu.trace_start"() <{level = 10 : i32, message = "bqd,bkd->bqk"}> : () -> ()
    %cst_64 = arith.constant dense<0.000000e+00> : vector<2x8x8xf32>
    %122 = tpu.matmul %117, %119, %cst_64 {dimension_numbers = #tpu.dot_dimension_numbers<[2], [2], [1], [1], [0, 0, 0, 1, 1, 1], [0], [0]>} : vector<2x8x8xbf16>, vector<2x8x8xbf16>, vector<2x8x8xf32> -> vector<2x8x8xf32>
    "tpu.trace_stop"() : () -> ()
    %cst_65 = arith.constant dense<0xFF800000> : vector<2x8xf32>
    %123 = vector.multi_reduction <maximumf>, %122, %cst_65 [2] : vector<2x8x8xf32> to vector<2x8xf32>
    %124 = vector.shape_cast %123 : vector<2x8xf32> to vector<2x8x1xf32>
    %125 = vector.broadcast %124 : vector<2x8x1xf32> to vector<2x8x8xf32>
    %126 = arith.subf %122, %125 : vector<2x8x8xf32>
    %127 = math.exp %126 : vector<2x8x8xf32>
    %cst_66 = arith.constant dense<0.000000e+00> : vector<2x8xf32>
    %128 = vector.multi_reduction <add>, %127, %cst_66 [2] : vector<2x8x8xf32> to vector<2x8xf32>
    %129 = vector.shape_cast %128 : vector<2x8xf32> to vector<2x8x1xf32>
    %130 = tpu.reciprocal %129 {approx = true} : vector<2x8x1xf32> -> vector<2x8x1xf32>
    %131 = vector.broadcast %130 : vector<2x8x1xf32> to vector<2x8x8xf32>
    %132 = arith.mulf %127, %131 : vector<2x8x8xf32>
    %133 = arith.truncf %132 : vector<2x8x8xf32> to vector<2x8x8xbf16>
    "tpu.trace_start"() <{level = 10 : i32, message = "bqk,bkd->bqd"}> : () -> ()
    %cst_67 = arith.constant dense<0.000000e+00> : vector<2x8x8xf32>
    %134 = tpu.matmul %133, %121, %cst_67 {dimension_numbers = #tpu.dot_dimension_numbers<[2], [1], [1], [2], [0, 0, 0, 1, 1, 2], [0], [0]>} : vector<2x8x8xbf16>, vector<2x8x8xbf16>, vector<2x8x8xf32> -> vector<2x8x8xf32>
    "tpu.trace_stop"() : () -> ()
    %135 = vector.shape_cast %134 : vector<2x8x8xf32> to vector<16x8xf32>
    %136 = arith.truncf %135 : vector<16x8xf32> to vector<16x8xbf16>
    %137 = vector.extract_strided_slice %13 {offsets = [24, 0], sizes = [8, 32], strides = [1, 1]} : vector<32x32xbf16> to vector<8x32xbf16>
    %cst_68 = arith.constant dense<0.000000e+00> : vector<16x32xf32>
    %138 = tpu.matmul %136, %137, %cst_68 {dimension_numbers = #tpu.dot_dimension_numbers<[1], [0], [0], [1], [0, 0, 1, 1], [], []>} : vector<16x8xbf16>, vector<8x32xbf16>, vector<16x32xf32> -> vector<16x32xf32>
    %139 = arith.addf %115, %138 : vector<16x32xf32>
    %140 = vector.broadcast %15 : vector<1x32xf32> to vector<16x32xf32>
    %141 = arith.addf %139, %140 : vector<16x32xf32>
    %142 = arith.addf %1, %141 : vector<16x32xf32>
    %cst_69 = arith.constant dense<0.000000e+00> : vector<16xf32>
    %143 = vector.multi_reduction <add>, %142, %cst_69 [1] : vector<16x32xf32> to vector<16xf32>
    %144 = vector.shape_cast %143 : vector<16xf32> to vector<16x1xf32>
    %cst_70 = arith.constant 3.200000e+01 : f32
    %145 = vector.broadcast %cst_70 : f32 to vector<16x1xf32>
    %146 = arith.divf %144, %145 : vector<16x1xf32>
    %147 = vector.broadcast %146 : vector<16x1xf32> to vector<16x32xf32>
    %148 = arith.subf %142, %147 : vector<16x32xf32>
    %149 = arith.mulf %148, %148 : vector<16x32xf32>
    %cst_71 = arith.constant dense<0.000000e+00> : vector<16xf32>
    %150 = vector.multi_reduction <add>, %149, %cst_71 [1] : vector<16x32xf32> to vector<16xf32>
    %151 = vector.shape_cast %150 : vector<16xf32> to vector<16x1xf32>
    %cst_72 = arith.constant 3.200000e+01 : f32
    %152 = vector.broadcast %cst_72 : f32 to vector<16x1xf32>
    %153 = arith.divf %151, %152 : vector<16x1xf32>
    %cst_73 = arith.constant 9.99999974E-6 : f32
    %154 = vector.broadcast %cst_73 : f32 to vector<16x1xf32>
    %155 = arith.addf %153, %154 : vector<16x1xf32>
    %156 = math.rsqrt %155 : vector<16x1xf32>
    %157 = vector.broadcast %156 : vector<16x1xf32> to vector<16x32xf32>
    %158 = arith.mulf %148, %157 : vector<16x32xf32>
    %159 = vector.broadcast %25 : vector<1x32xf32> to vector<16x32xf32>
    %160 = arith.mulf %158, %159 : vector<16x32xf32>
    %161 = vector.broadcast %27 : vector<1x32xf32> to vector<16x32xf32>
    %162 = arith.addf %160, %161 : vector<16x32xf32>
    %163 = arith.truncf %162 : vector<16x32xf32> to vector<16x32xbf16>
    %cst_74 = arith.constant dense<0.000000e+00> : vector<16x64xf32>
    %164 = tpu.matmul %163, %17, %cst_74 {dimension_numbers = #tpu.dot_dimension_numbers<[1], [0], [0], [1], [0, 0, 1, 1], [], []>} : vector<16x32xbf16>, vector<32x64xbf16>, vector<16x64xf32> -> vector<16x64xf32>
    %165 = vector.broadcast %19 : vector<1x64xf32> to vector<16x64xf32>
    %166 = arith.addf %164, %165 : vector<16x64xf32>
    %cst_75 = arith.constant 0.000000e+00 : f32
    %167 = vector.broadcast %cst_75 : f32 to vector<16x64xf32>
    %168 = arith.maximumf %166, %167 : vector<16x64xf32>
    %169 = arith.truncf %168 : vector<16x64xf32> to vector<16x64xbf16>
    %cst_76 = arith.constant dense<0.000000e+00> : vector<16x32xf32>
    %170 = tpu.matmul %169, %21, %cst_76 {dimension_numbers = #tpu.dot_dimension_numbers<[1], [0], [0], [1], [0, 0, 1, 1], [], []>} : vector<16x64xbf16>, vector<64x32xbf16>, vector<16x32xf32> -> vector<16x32xf32>
    %171 = vector.broadcast %23 : vector<1x32xf32> to vector<16x32xf32>
    %172 = arith.addf %170, %171 : vector<16x32xf32>
    %173 = arith.addf %162, %172 : vector<16x32xf32>
    %cst_77 = arith.constant dense<0.000000e+00> : vector<16xf32>
    %174 = vector.multi_reduction <add>, %173, %cst_77 [1] : vector<16x32xf32> to vector<16xf32>
    %175 = vector.shape_cast %174 : vector<16xf32> to vector<16x1xf32>
    %cst_78 = arith.constant 3.200000e+01 : f32
    %176 = vector.broadcast %cst_78 : f32 to vector<16x1xf32>
    %177 = arith.divf %175, %176 : vector<16x1xf32>
    %178 = vector.broadcast %177 : vector<16x1xf32> to vector<16x32xf32>
    %179 = arith.subf %173, %178 : vector<16x32xf32>
    %180 = arith.mulf %179, %179 : vector<16x32xf32>
    %cst_79 = arith.constant dense<0.000000e+00> : vector<16xf32>
    %181 = vector.multi_reduction <add>, %180, %cst_79 [1] : vector<16x32xf32> to vector<16xf32>
    %182 = vector.shape_cast %181 : vector<16xf32> to vector<16x1xf32>
    %cst_80 = arith.constant 3.200000e+01 : f32
    %183 = vector.broadcast %cst_80 : f32 to vector<16x1xf32>
    %184 = arith.divf %182, %183 : vector<16x1xf32>
    %cst_81 = arith.constant 9.99999974E-6 : f32
    %185 = vector.broadcast %cst_81 : f32 to vector<16x1xf32>
    %186 = arith.addf %184, %185 : vector<16x1xf32>
    %187 = math.rsqrt %186 : vector<16x1xf32>
    %188 = vector.broadcast %187 : vector<16x1xf32> to vector<16x32xf32>
    %189 = arith.mulf %179, %188 : vector<16x32xf32>
    %190 = vector.broadcast %29 : vector<1x32xf32> to vector<16x32xf32>
    %191 = arith.mulf %189, %190 : vector<16x32xf32>
    %192 = vector.broadcast %31 : vector<1x32xf32> to vector<16x32xf32>
    %193 = arith.addf %191, %192 : vector<16x32xf32>
    %c1 = arith.constant 1 : index
    %c0_82 = arith.constant 0 : index
    %c0_83 = arith.constant 0 : index
    %194 = vector.load %arg2[%c1, %c0_82, %c0_83] : memref<2x32x64xbf16, #tpu.memory_space<vmem>>, vector<1x32x64xbf16>
    %195 = vector.shape_cast %194 : vector<1x32x64xbf16> to vector<32x64xbf16>
    %c1_84 = arith.constant 1 : index
    %c0_85 = arith.constant 0 : index
    %c0_86 = arith.constant 0 : index
    %196 = vector.load %arg3[%c1_84, %c0_85, %c0_86] : memref<2x1x64xf32, #tpu.memory_space<vmem>>, vector<1x1x64xf32>
    %197 = vector.shape_cast %196 : vector<1x1x64xf32> to vector<1x64xf32>
    %c1_87 = arith.constant 1 : index
    %c0_88 = arith.constant 0 : index
    %c0_89 = arith.constant 0 : index
    %198 = vector.load %arg4[%c1_87, %c0_88, %c0_89] : memref<2x32x32xbf16, #tpu.memory_space<vmem>>, vector<1x32x32xbf16>
    %199 = vector.shape_cast %198 : vector<1x32x32xbf16> to vector<32x32xbf16>
    %c1_90 = arith.constant 1 : index
    %c0_91 = arith.constant 0 : index
    %c0_92 = arith.constant 0 : index
    %200 = vector.load %arg5[%c1_90, %c0_91, %c0_92] : memref<2x1x32xf32, #tpu.memory_space<vmem>>, vector<1x1x32xf32>
    %201 = vector.shape_cast %200 : vector<1x1x32xf32> to vector<1x32xf32>
    %c1_93 = arith.constant 1 : index
    %c0_94 = arith.constant 0 : index
    %c0_95 = arith.constant 0 : index
    %202 = vector.load %arg6[%c1_93, %c0_94, %c0_95] : memref<2x32x32xbf16, #tpu.memory_space<vmem>>, vector<1x32x32xbf16>
    %203 = vector.shape_cast %202 : vector<1x32x32xbf16> to vector<32x32xbf16>
    %c1_96 = arith.constant 1 : index
    %c0_97 = arith.constant 0 : index
    %c0_98 = arith.constant 0 : index
    %204 = vector.load %arg7[%c1_96, %c0_97, %c0_98] : memref<2x1x32xf32, #tpu.memory_space<vmem>>, vector<1x1x32xf32>
    %205 = vector.shape_cast %204 : vector<1x1x32xf32> to vector<1x32xf32>
    %c1_99 = arith.constant 1 : index
    %c0_100 = arith.constant 0 : index
    %c0_101 = arith.constant 0 : index
    %206 = vector.load %arg8[%c1_99, %c0_100, %c0_101] : memref<2x32x64xbf16, #tpu.memory_space<vmem>>, vector<1x32x64xbf16>
    %207 = vector.shape_cast %206 : vector<1x32x64xbf16> to vector<32x64xbf16>
    %c1_102 = arith.constant 1 : index
    %c0_103 = arith.constant 0 : index
    %c0_104 = arith.constant 0 : index
    %208 = vector.load %arg9[%c1_102, %c0_103, %c0_104] : memref<2x1x64xf32, #tpu.memory_space<vmem>>, vector<1x1x64xf32>
    %209 = vector.shape_cast %208 : vector<1x1x64xf32> to vector<1x64xf32>
    %c1_105 = arith.constant 1 : index
    %c0_106 = arith.constant 0 : index
    %c0_107 = arith.constant 0 : index
    %210 = vector.load %arg10[%c1_105, %c0_106, %c0_107] : memref<2x64x32xbf16, #tpu.memory_space<vmem>>, vector<1x64x32xbf16>
    %211 = vector.shape_cast %210 : vector<1x64x32xbf16> to vector<64x32xbf16>
    %c1_108 = arith.constant 1 : index
    %c0_109 = arith.constant 0 : index
    %c0_110 = arith.constant 0 : index
    %212 = vector.load %arg11[%c1_108, %c0_109, %c0_110] : memref<2x1x32xf32, #tpu.memory_space<vmem>>, vector<1x1x32xf32>
    %213 = vector.shape_cast %212 : vector<1x1x32xf32> to vector<1x32xf32>
    %c1_111 = arith.constant 1 : index
    %c0_112 = arith.constant 0 : index
    %c0_113 = arith.constant 0 : index
    %214 = vector.load %arg12[%c1_111, %c0_112, %c0_113] : memref<2x1x32xf32, #tpu.memory_space<vmem>>, vector<1x1x32xf32>
    %215 = vector.shape_cast %214 : vector<1x1x32xf32> to vector<1x32xf32>
    %c1_114 = arith.constant 1 : index
    %c0_115 = arith.constant 0 : index
    %c0_116 = arith.constant 0 : index
    %216 = vector.load %arg13[%c1_114, %c0_115, %c0_116] : memref<2x1x32xf32, #tpu.memory_space<vmem>>, vector<1x1x32xf32>
    %217 = vector.shape_cast %216 : vector<1x1x32xf32> to vector<1x32xf32>
    %c1_117 = arith.constant 1 : index
    %c0_118 = arith.constant 0 : index
    %c0_119 = arith.constant 0 : index
    %218 = vector.load %arg14[%c1_117, %c0_118, %c0_119] : memref<2x1x32xf32, #tpu.memory_space<vmem>>, vector<1x1x32xf32>
    %219 = vector.shape_cast %218 : vector<1x1x32xf32> to vector<1x32xf32>
    %c1_120 = arith.constant 1 : index
    %c0_121 = arith.constant 0 : index
    %c0_122 = arith.constant 0 : index
    %220 = vector.load %arg15[%c1_120, %c0_121, %c0_122] : memref<2x1x32xf32, #tpu.memory_space<vmem>>, vector<1x1x32xf32>
    %221 = vector.shape_cast %220 : vector<1x1x32xf32> to vector<1x32xf32>
    %222 = arith.addf %193, %3 : vector<16x32xf32>
    %223 = arith.truncf %222 : vector<16x32xf32> to vector<16x32xbf16>
    %cst_123 = arith.constant dense<0.000000e+00> : vector<16x64xf32>
    %224 = tpu.matmul %223, %195, %cst_123 {dimension_numbers = #tpu.dot_dimension_numbers<[1], [0], [0], [1], [0, 0, 1, 1], [], []>} : vector<16x32xbf16>, vector<32x64xbf16>, vector<16x64xf32> -> vector<16x64xf32>
    %225 = vector.broadcast %197 : vector<1x64xf32> to vector<16x64xf32>
    %226 = arith.addf %224, %225 : vector<16x64xf32>
    %227 = arith.truncf %193 : vector<16x32xf32> to vector<16x32xbf16>
    %cst_124 = arith.constant dense<0.000000e+00> : vector<16x32xf32>
    %228 = tpu.matmul %227, %199, %cst_124 {dimension_numbers = #tpu.dot_dimension_numbers<[1], [0], [0], [1], [0, 0, 1, 1], [], []>} : vector<16x32xbf16>, vector<32x32xbf16>, vector<16x32xf32> -> vector<16x32xf32>
    %229 = vector.broadcast %201 : vector<1x32xf32> to vector<16x32xf32>
    %230 = arith.addf %228, %229 : vector<16x32xf32>
    %231 = vector.shape_cast %226 : vector<16x64xf32> to vector<2x8x64xf32>
    %232 = vector.shape_cast %230 : vector<16x32xf32> to vector<2x8x32xf32>
    %cst_125 = arith.constant 0.000000e+00 : f32
    %233 = vector.broadcast %cst_125 : f32 to vector<16x32xf32>
    %234 = vector.extract_strided_slice %231 {offsets = [0, 0, 0], sizes = [2, 8, 8], strides = [1, 1, 1]} : vector<2x8x64xf32> to vector<2x8x8xf32>
    %235 = arith.truncf %234 : vector<2x8x8xf32> to vector<2x8x8xbf16>
    %236 = vector.extract_strided_slice %231 {offsets = [0, 0, 32], sizes = [2, 8, 8], strides = [1, 1, 1]} : vector<2x8x64xf32> to vector<2x8x8xf32>
    %237 = arith.truncf %236 : vector<2x8x8xf32> to vector<2x8x8xbf16>
    %238 = vector.extract_strided_slice %232 {offsets = [0, 0, 0], sizes = [2, 8, 8], strides = [1, 1, 1]} : vector<2x8x32xf32> to vector<2x8x8xf32>
    %239 = arith.truncf %238 : vector<2x8x8xf32> to vector<2x8x8xbf16>
    "tpu.trace_start"() <{level = 10 : i32, message = "bqd,bkd->bqk"}> : () -> ()
    %cst_126 = arith.constant dense<0.000000e+00> : vector<2x8x8xf32>
    %240 = tpu.matmul %235, %237, %cst_126 {dimension_numbers = #tpu.dot_dimension_numbers<[2], [2], [1], [1], [0, 0, 0, 1, 1, 1], [0], [0]>} : vector<2x8x8xbf16>, vector<2x8x8xbf16>, vector<2x8x8xf32> -> vector<2x8x8xf32>
    "tpu.trace_stop"() : () -> ()
    %cst_127 = arith.constant dense<0xFF800000> : vector<2x8xf32>
    %241 = vector.multi_reduction <maximumf>, %240, %cst_127 [2] : vector<2x8x8xf32> to vector<2x8xf32>
    %242 = vector.shape_cast %241 : vector<2x8xf32> to vector<2x8x1xf32>
    %243 = vector.broadcast %242 : vector<2x8x1xf32> to vector<2x8x8xf32>
    %244 = arith.subf %240, %243 : vector<2x8x8xf32>
    %245 = math.exp %244 : vector<2x8x8xf32>
    %cst_128 = arith.constant dense<0.000000e+00> : vector<2x8xf32>
    %246 = vector.multi_reduction <add>, %245, %cst_128 [2] : vector<2x8x8xf32> to vector<2x8xf32>
    %247 = vector.shape_cast %246 : vector<2x8xf32> to vector<2x8x1xf32>
    %248 = tpu.reciprocal %247 {approx = true} : vector<2x8x1xf32> -> vector<2x8x1xf32>
    %249 = vector.broadcast %248 : vector<2x8x1xf32> to vector<2x8x8xf32>
    %250 = arith.mulf %245, %249 : vector<2x8x8xf32>
    %251 = arith.truncf %250 : vector<2x8x8xf32> to vector<2x8x8xbf16>
    "tpu.trace_start"() <{level = 10 : i32, message = "bqk,bkd->bqd"}> : () -> ()
    %cst_129 = arith.constant dense<0.000000e+00> : vector<2x8x8xf32>
    %252 = tpu.matmul %251, %239, %cst_129 {dimension_numbers = #tpu.dot_dimension_numbers<[2], [1], [1], [2], [0, 0, 0, 1, 1, 2], [0], [0]>} : vector<2x8x8xbf16>, vector<2x8x8xbf16>, vector<2x8x8xf32> -> vector<2x8x8xf32>
    "tpu.trace_stop"() : () -> ()
    %253 = vector.shape_cast %252 : vector<2x8x8xf32> to vector<16x8xf32>
    %254 = arith.truncf %253 : vector<16x8xf32> to vector<16x8xbf16>
    %255 = vector.extract_strided_slice %203 {offsets = [0, 0], sizes = [8, 32], strides = [1, 1]} : vector<32x32xbf16> to vector<8x32xbf16>
    %cst_130 = arith.constant dense<0.000000e+00> : vector<16x32xf32>
    %256 = tpu.matmul %254, %255, %cst_130 {dimension_numbers = #tpu.dot_dimension_numbers<[1], [0], [0], [1], [0, 0, 1, 1], [], []>} : vector<16x8xbf16>, vector<8x32xbf16>, vector<16x32xf32> -> vector<16x32xf32>
    %257 = arith.addf %233, %256 : vector<16x32xf32>
    %258 = vector.extract_strided_slice %231 {offsets = [0, 0, 8], sizes = [2, 8, 8], strides = [1, 1, 1]} : vector<2x8x64xf32> to vector<2x8x8xf32>
    %259 = arith.truncf %258 : vector<2x8x8xf32> to vector<2x8x8xbf16>
    %260 = vector.extract_strided_slice %231 {offsets = [0, 0, 40], sizes = [2, 8, 8], strides = [1, 1, 1]} : vector<2x8x64xf32> to vector<2x8x8xf32>
    %261 = arith.truncf %260 : vector<2x8x8xf32> to vector<2x8x8xbf16>
    %262 = vector.extract_strided_slice %232 {offsets = [0, 0, 8], sizes = [2, 8, 8], strides = [1, 1, 1]} : vector<2x8x32xf32> to vector<2x8x8xf32>
    %263 = arith.truncf %262 : vector<2x8x8xf32> to vector<2x8x8xbf16>
    "tpu.trace_start"() <{level = 10 : i32, message = "bqd,bkd->bqk"}> : () -> ()
    %cst_131 = arith.constant dense<0.000000e+00> : vector<2x8x8xf32>
    %264 = tpu.matmul %259, %261, %cst_131 {dimension_numbers = #tpu.dot_dimension_numbers<[2], [2], [1], [1], [0, 0, 0, 1, 1, 1], [0], [0]>} : vector<2x8x8xbf16>, vector<2x8x8xbf16>, vector<2x8x8xf32> -> vector<2x8x8xf32>
    "tpu.trace_stop"() : () -> ()
    %cst_132 = arith.constant dense<0xFF800000> : vector<2x8xf32>
    %265 = vector.multi_reduction <maximumf>, %264, %cst_132 [2] : vector<2x8x8xf32> to vector<2x8xf32>
    %266 = vector.shape_cast %265 : vector<2x8xf32> to vector<2x8x1xf32>
    %267 = vector.broadcast %266 : vector<2x8x1xf32> to vector<2x8x8xf32>
    %268 = arith.subf %264, %267 : vector<2x8x8xf32>
    %269 = math.exp %268 : vector<2x8x8xf32>
    %cst_133 = arith.constant dense<0.000000e+00> : vector<2x8xf32>
    %270 = vector.multi_reduction <add>, %269, %cst_133 [2] : vector<2x8x8xf32> to vector<2x8xf32>
    %271 = vector.shape_cast %270 : vector<2x8xf32> to vector<2x8x1xf32>
    %272 = tpu.reciprocal %271 {approx = true} : vector<2x8x1xf32> -> vector<2x8x1xf32>
    %273 = vector.broadcast %272 : vector<2x8x1xf32> to vector<2x8x8xf32>
    %274 = arith.mulf %269, %273 : vector<2x8x8xf32>
    %275 = arith.truncf %274 : vector<2x8x8xf32> to vector<2x8x8xbf16>
    "tpu.trace_start"() <{level = 10 : i32, message = "bqk,bkd->bqd"}> : () -> ()
    %cst_134 = arith.constant dense<0.000000e+00> : vector<2x8x8xf32>
    %276 = tpu.matmul %275, %263, %cst_134 {dimension_numbers = #tpu.dot_dimension_numbers<[2], [1], [1], [2], [0, 0, 0, 1, 1, 2], [0], [0]>} : vector<2x8x8xbf16>, vector<2x8x8xbf16>, vector<2x8x8xf32> -> vector<2x8x8xf32>
    "tpu.trace_stop"() : () -> ()
    %277 = vector.shape_cast %276 : vector<2x8x8xf32> to vector<16x8xf32>
    %278 = arith.truncf %277 : vector<16x8xf32> to vector<16x8xbf16>
    %279 = vector.extract_strided_slice %203 {offsets = [8, 0], sizes = [8, 32], strides = [1, 1]} : vector<32x32xbf16> to vector<8x32xbf16>
    %cst_135 = arith.constant dense<0.000000e+00> : vector<16x32xf32>
    %280 = tpu.matmul %278, %279, %cst_135 {dimension_numbers = #tpu.dot_dimension_numbers<[1], [0], [0], [1], [0, 0, 1, 1], [], []>} : vector<16x8xbf16>, vector<8x32xbf16>, vector<16x32xf32> -> vector<16x32xf32>
    %281 = arith.addf %257, %280 : vector<16x32xf32>
    %282 = vector.extract_strided_slice %231 {offsets = [0, 0, 16], sizes = [2, 8, 8], strides = [1, 1, 1]} : vector<2x8x64xf32> to vector<2x8x8xf32>
    %283 = arith.truncf %282 : vector<2x8x8xf32> to vector<2x8x8xbf16>
    %284 = vector.extract_strided_slice %231 {offsets = [0, 0, 48], sizes = [2, 8, 8], strides = [1, 1, 1]} : vector<2x8x64xf32> to vector<2x8x8xf32>
    %285 = arith.truncf %284 : vector<2x8x8xf32> to vector<2x8x8xbf16>
    %286 = vector.extract_strided_slice %232 {offsets = [0, 0, 16], sizes = [2, 8, 8], strides = [1, 1, 1]} : vector<2x8x32xf32> to vector<2x8x8xf32>
    %287 = arith.truncf %286 : vector<2x8x8xf32> to vector<2x8x8xbf16>
    "tpu.trace_start"() <{level = 10 : i32, message = "bqd,bkd->bqk"}> : () -> ()
    %cst_136 = arith.constant dense<0.000000e+00> : vector<2x8x8xf32>
    %288 = tpu.matmul %283, %285, %cst_136 {dimension_numbers = #tpu.dot_dimension_numbers<[2], [2], [1], [1], [0, 0, 0, 1, 1, 1], [0], [0]>} : vector<2x8x8xbf16>, vector<2x8x8xbf16>, vector<2x8x8xf32> -> vector<2x8x8xf32>
    "tpu.trace_stop"() : () -> ()
    %cst_137 = arith.constant dense<0xFF800000> : vector<2x8xf32>
    %289 = vector.multi_reduction <maximumf>, %288, %cst_137 [2] : vector<2x8x8xf32> to vector<2x8xf32>
    %290 = vector.shape_cast %289 : vector<2x8xf32> to vector<2x8x1xf32>
    %291 = vector.broadcast %290 : vector<2x8x1xf32> to vector<2x8x8xf32>
    %292 = arith.subf %288, %291 : vector<2x8x8xf32>
    %293 = math.exp %292 : vector<2x8x8xf32>
    %cst_138 = arith.constant dense<0.000000e+00> : vector<2x8xf32>
    %294 = vector.multi_reduction <add>, %293, %cst_138 [2] : vector<2x8x8xf32> to vector<2x8xf32>
    %295 = vector.shape_cast %294 : vector<2x8xf32> to vector<2x8x1xf32>
    %296 = tpu.reciprocal %295 {approx = true} : vector<2x8x1xf32> -> vector<2x8x1xf32>
    %297 = vector.broadcast %296 : vector<2x8x1xf32> to vector<2x8x8xf32>
    %298 = arith.mulf %293, %297 : vector<2x8x8xf32>
    %299 = arith.truncf %298 : vector<2x8x8xf32> to vector<2x8x8xbf16>
    "tpu.trace_start"() <{level = 10 : i32, message = "bqk,bkd->bqd"}> : () -> ()
    %cst_139 = arith.constant dense<0.000000e+00> : vector<2x8x8xf32>
    %300 = tpu.matmul %299, %287, %cst_139 {dimension_numbers = #tpu.dot_dimension_numbers<[2], [1], [1], [2], [0, 0, 0, 1, 1, 2], [0], [0]>} : vector<2x8x8xbf16>, vector<2x8x8xbf16>, vector<2x8x8xf32> -> vector<2x8x8xf32>
    "tpu.trace_stop"() : () -> ()
    %301 = vector.shape_cast %300 : vector<2x8x8xf32> to vector<16x8xf32>
    %302 = arith.truncf %301 : vector<16x8xf32> to vector<16x8xbf16>
    %303 = vector.extract_strided_slice %203 {offsets = [16, 0], sizes = [8, 32], strides = [1, 1]} : vector<32x32xbf16> to vector<8x32xbf16>
    %cst_140 = arith.constant dense<0.000000e+00> : vector<16x32xf32>
    %304 = tpu.matmul %302, %303, %cst_140 {dimension_numbers = #tpu.dot_dimension_numbers<[1], [0], [0], [1], [0, 0, 1, 1], [], []>} : vector<16x8xbf16>, vector<8x32xbf16>, vector<16x32xf32> -> vector<16x32xf32>
    %305 = arith.addf %281, %304 : vector<16x32xf32>
    %306 = vector.extract_strided_slice %231 {offsets = [0, 0, 24], sizes = [2, 8, 8], strides = [1, 1, 1]} : vector<2x8x64xf32> to vector<2x8x8xf32>
    %307 = arith.truncf %306 : vector<2x8x8xf32> to vector<2x8x8xbf16>
    %308 = vector.extract_strided_slice %231 {offsets = [0, 0, 56], sizes = [2, 8, 8], strides = [1, 1, 1]} : vector<2x8x64xf32> to vector<2x8x8xf32>
    %309 = arith.truncf %308 : vector<2x8x8xf32> to vector<2x8x8xbf16>
    %310 = vector.extract_strided_slice %232 {offsets = [0, 0, 24], sizes = [2, 8, 8], strides = [1, 1, 1]} : vector<2x8x32xf32> to vector<2x8x8xf32>
    %311 = arith.truncf %310 : vector<2x8x8xf32> to vector<2x8x8xbf16>
    "tpu.trace_start"() <{level = 10 : i32, message = "bqd,bkd->bqk"}> : () -> ()
    %cst_141 = arith.constant dense<0.000000e+00> : vector<2x8x8xf32>
    %312 = tpu.matmul %307, %309, %cst_141 {dimension_numbers = #tpu.dot_dimension_numbers<[2], [2], [1], [1], [0, 0, 0, 1, 1, 1], [0], [0]>} : vector<2x8x8xbf16>, vector<2x8x8xbf16>, vector<2x8x8xf32> -> vector<2x8x8xf32>
    "tpu.trace_stop"() : () -> ()
    %cst_142 = arith.constant dense<0xFF800000> : vector<2x8xf32>
    %313 = vector.multi_reduction <maximumf>, %312, %cst_142 [2] : vector<2x8x8xf32> to vector<2x8xf32>
    %314 = vector.shape_cast %313 : vector<2x8xf32> to vector<2x8x1xf32>
    %315 = vector.broadcast %314 : vector<2x8x1xf32> to vector<2x8x8xf32>
    %316 = arith.subf %312, %315 : vector<2x8x8xf32>
    %317 = math.exp %316 : vector<2x8x8xf32>
    %cst_143 = arith.constant dense<0.000000e+00> : vector<2x8xf32>
    %318 = vector.multi_reduction <add>, %317, %cst_143 [2] : vector<2x8x8xf32> to vector<2x8xf32>
    %319 = vector.shape_cast %318 : vector<2x8xf32> to vector<2x8x1xf32>
    %320 = tpu.reciprocal %319 {approx = true} : vector<2x8x1xf32> -> vector<2x8x1xf32>
    %321 = vector.broadcast %320 : vector<2x8x1xf32> to vector<2x8x8xf32>
    %322 = arith.mulf %317, %321 : vector<2x8x8xf32>
    %323 = arith.truncf %322 : vector<2x8x8xf32> to vector<2x8x8xbf16>
    "tpu.trace_start"() <{level = 10 : i32, message = "bqk,bkd->bqd"}> : () -> ()
    %cst_144 = arith.constant dense<0.000000e+00> : vector<2x8x8xf32>
    %324 = tpu.matmul %323, %311, %cst_144 {dimension_numbers = #tpu.dot_dimension_numbers<[2], [1], [1], [2], [0, 0, 0, 1, 1, 2], [0], [0]>} : vector<2x8x8xbf16>, vector<2x8x8xbf16>, vector<2x8x8xf32> -> vector<2x8x8xf32>
    "tpu.trace_stop"() : () -> ()
    %325 = vector.shape_cast %324 : vector<2x8x8xf32> to vector<16x8xf32>
    %326 = arith.truncf %325 : vector<16x8xf32> to vector<16x8xbf16>
    %327 = vector.extract_strided_slice %203 {offsets = [24, 0], sizes = [8, 32], strides = [1, 1]} : vector<32x32xbf16> to vector<8x32xbf16>
    %cst_145 = arith.constant dense<0.000000e+00> : vector<16x32xf32>
    %328 = tpu.matmul %326, %327, %cst_145 {dimension_numbers = #tpu.dot_dimension_numbers<[1], [0], [0], [1], [0, 0, 1, 1], [], []>} : vector<16x8xbf16>, vector<8x32xbf16>, vector<16x32xf32> -> vector<16x32xf32>
    %329 = arith.addf %305, %328 : vector<16x32xf32>
    %330 = vector.broadcast %205 : vector<1x32xf32> to vector<16x32xf32>
    %331 = arith.addf %329, %330 : vector<16x32xf32>
    %332 = arith.addf %193, %331 : vector<16x32xf32>
    %cst_146 = arith.constant dense<0.000000e+00> : vector<16xf32>
    %333 = vector.multi_reduction <add>, %332, %cst_146 [1] : vector<16x32xf32> to vector<16xf32>
    %334 = vector.shape_cast %333 : vector<16xf32> to vector<16x1xf32>
    %cst_147 = arith.constant 3.200000e+01 : f32
    %335 = vector.broadcast %cst_147 : f32 to vector<16x1xf32>
    %336 = arith.divf %334, %335 : vector<16x1xf32>
    %337 = vector.broadcast %336 : vector<16x1xf32> to vector<16x32xf32>
    %338 = arith.subf %332, %337 : vector<16x32xf32>
    %339 = arith.mulf %338, %338 : vector<16x32xf32>
    %cst_148 = arith.constant dense<0.000000e+00> : vector<16xf32>
    %340 = vector.multi_reduction <add>, %339, %cst_148 [1] : vector<16x32xf32> to vector<16xf32>
    %341 = vector.shape_cast %340 : vector<16xf32> to vector<16x1xf32>
    %cst_149 = arith.constant 3.200000e+01 : f32
    %342 = vector.broadcast %cst_149 : f32 to vector<16x1xf32>
    %343 = arith.divf %341, %342 : vector<16x1xf32>
    %cst_150 = arith.constant 9.99999974E-6 : f32
    %344 = vector.broadcast %cst_150 : f32 to vector<16x1xf32>
    %345 = arith.addf %343, %344 : vector<16x1xf32>
    %346 = math.rsqrt %345 : vector<16x1xf32>
    %347 = vector.broadcast %346 : vector<16x1xf32> to vector<16x32xf32>
    %348 = arith.mulf %338, %347 : vector<16x32xf32>
    %349 = vector.broadcast %215 : vector<1x32xf32> to vector<16x32xf32>
    %350 = arith.mulf %348, %349 : vector<16x32xf32>
    %351 = vector.broadcast %217 : vector<1x32xf32> to vector<16x32xf32>
    %352 = arith.addf %350, %351 : vector<16x32xf32>
    %353 = arith.truncf %352 : vector<16x32xf32> to vector<16x32xbf16>
    %cst_151 = arith.constant dense<0.000000e+00> : vector<16x64xf32>
    %354 = tpu.matmul %353, %207, %cst_151 {dimension_numbers = #tpu.dot_dimension_numbers<[1], [0], [0], [1], [0, 0, 1, 1], [], []>} : vector<16x32xbf16>, vector<32x64xbf16>, vector<16x64xf32> -> vector<16x64xf32>
    %355 = vector.broadcast %209 : vector<1x64xf32> to vector<16x64xf32>
    %356 = arith.addf %354, %355 : vector<16x64xf32>
    %cst_152 = arith.constant 0.000000e+00 : f32
    %357 = vector.broadcast %cst_152 : f32 to vector<16x64xf32>
    %358 = arith.maximumf %356, %357 : vector<16x64xf32>
    %359 = arith.truncf %358 : vector<16x64xf32> to vector<16x64xbf16>
    %cst_153 = arith.constant dense<0.000000e+00> : vector<16x32xf32>
    %360 = tpu.matmul %359, %211, %cst_153 {dimension_numbers = #tpu.dot_dimension_numbers<[1], [0], [0], [1], [0, 0, 1, 1], [], []>} : vector<16x64xbf16>, vector<64x32xbf16>, vector<16x32xf32> -> vector<16x32xf32>
    %361 = vector.broadcast %213 : vector<1x32xf32> to vector<16x32xf32>
    %362 = arith.addf %360, %361 : vector<16x32xf32>
    %363 = arith.addf %352, %362 : vector<16x32xf32>
    %cst_154 = arith.constant dense<0.000000e+00> : vector<16xf32>
    %364 = vector.multi_reduction <add>, %363, %cst_154 [1] : vector<16x32xf32> to vector<16xf32>
    %365 = vector.shape_cast %364 : vector<16xf32> to vector<16x1xf32>
    %cst_155 = arith.constant 3.200000e+01 : f32
    %366 = vector.broadcast %cst_155 : f32 to vector<16x1xf32>
    %367 = arith.divf %365, %366 : vector<16x1xf32>
    %368 = vector.broadcast %367 : vector<16x1xf32> to vector<16x32xf32>
    %369 = arith.subf %363, %368 : vector<16x32xf32>
    %370 = arith.mulf %369, %369 : vector<16x32xf32>
    %cst_156 = arith.constant dense<0.000000e+00> : vector<16xf32>
    %371 = vector.multi_reduction <add>, %370, %cst_156 [1] : vector<16x32xf32> to vector<16xf32>
    %372 = vector.shape_cast %371 : vector<16xf32> to vector<16x1xf32>
    %cst_157 = arith.constant 3.200000e+01 : f32
    %373 = vector.broadcast %cst_157 : f32 to vector<16x1xf32>
    %374 = arith.divf %372, %373 : vector<16x1xf32>
    %cst_158 = arith.constant 9.99999974E-6 : f32
    %375 = vector.broadcast %cst_158 : f32 to vector<16x1xf32>
    %376 = arith.addf %374, %375 : vector<16x1xf32>
    %377 = math.rsqrt %376 : vector<16x1xf32>
    %378 = vector.broadcast %377 : vector<16x1xf32> to vector<16x32xf32>
    %379 = arith.mulf %369, %378 : vector<16x32xf32>
    %380 = vector.broadcast %219 : vector<1x32xf32> to vector<16x32xf32>
    %381 = arith.mulf %379, %380 : vector<16x32xf32>
    %382 = vector.broadcast %221 : vector<1x32xf32> to vector<16x32xf32>
    %383 = arith.addf %381, %382 : vector<16x32xf32>
    %384 = vector.shape_cast %383 : vector<16x32xf32> to vector<2x8x32xf32>
    %c0_159 = arith.constant 0 : index
    %c0_160 = arith.constant 0 : index
    %c0_161 = arith.constant 0 : index
    %385 = vector.load %arg16[%c0_159, %c0_160, %c0_161] : memref<2x8x32xf32, #tpu.memory_space<vmem>>, vector<2x8x32xf32>
    tpu.vector_store %arg16[%c0_159, %c0_160, %c0_161], %384 {strides = array<i32>} : memref<2x8x32xf32, #tpu.memory_space<vmem>>, vector<2x8x32xf32>,
    return
  }
}

</mosaic_0001>

<llo_original>
// kernel: _lambda_.1
$region0: #{_lambda_.1}
  #allocation0 [shape = 'u32[]', space=smem, size = 0x4, offset = 0x4, fixed_abs, tag = 'smem constant byte address 0x4 - core index']
  #allocation1 [shape = 'u32[144,128]{1,0:T(1,128)}', space=vmem, size = 0x12000, scoped, tag = 'internal scratch']
  %s0 = inlined_call_operand.vmem [shape: f32[2,8,32], index: 0, kind: input, shape index: {}]
  %s1 = inlined_call_operand.vmem [shape: f32[2,8,32], index: 1, kind: input, shape index: {}]
  %s2 = inlined_call_operand.hbm [shape: bf16[2,32,64], index: 2, kind: input, shape index: {}]
  %s3 = inlined_call_operand.vmem [shape: f32[2,1,64], index: 3, kind: input, shape index: {}, may-alias: {3,9}]
  %s4 = inlined_call_operand.hbm [shape: bf16[2,32,32], index: 4, kind: input, shape index: {}]
  %s5 = inlined_call_operand.vmem [shape: f32[2,1,32], index: 5, kind: input, shape index: {}, may-alias: {5,7,11,13,15}]
  %s6 = inlined_call_operand.hbm [shape: bf16[2,32,32], index: 6, kind: input, shape index: {}]
  %s7 = inlined_call_operand.vmem [shape: f32[2,1,32], index: 7, kind: input, shape index: {}, may-alias: {5,7,11,13,15}]
  %s8 = inlined_call_operand.hbm [shape: bf16[2,32,64], index: 8, kind: input, shape index: {}]
  %s9 = inlined_call_operand.vmem [shape: f32[2,1,64], index: 9, kind: input, shape index: {}, may-alias: {3,9}]
  %s10 = inlined_call_operand.vmem [shape: bf16[2,64,32], index: 10, kind: input, shape index: {}]
  %s11 = inlined_call_operand.vmem [shape: f32[2,1,32], index: 11, kind: input, shape index: {}, may-alias: {5,7,11,13,15}]
  %s12 = inlined_call_operand.vmem [shape: f32[2,1,32], index: 12, kind: input, shape index: {}, may-alias: {12,14}]
  %s13 = inlined_call_operand.vmem [shape: f32[2,1,32], index: 13, kind: input, shape index: {}, may-alias: {5,7,11,13,15}]
  %s14 = inlined_call_operand.vmem [shape: f32[2,1,32], index: 14, kind: input, shape index: {}, may-alias: {12,14}]
  %s15 = inlined_call_operand.vmem [shape: f32[2,1,32], index: 15, kind: input, shape index: {}, may-alias: {5,7,11,13,15}]
  %s16 = inlined_call_operand.vmem [shape: f32[2,8,32], index: 16, kind: output, shape index: {}]
  %s17 = sld [smem:[#allocation0]]
  $region90: #{_lambda_.1} parent=0
    _
  %s19 = ssub.s32 1, %s17
  %s20 = scalar_select 0, %s19, %s17
  $region1: #{_lambda_.1} parent=0
    #allocation2 [shape = 'u8[16384]{0}', space=vmem, size = 0x4000, scoped, tag = 'input window, operand 2, single buffered']
    #allocation3 [shape = 's32[1]{0}', space=sflag, size = 0x4, scoped, tag = 'scoped memory for _lambda_.1']
    #allocation4 [shape = 'u8[16384]{0}', space=vmem, size = 0x4000, scoped, tag = 'input window, operand 4, single buffered']
    #allocation5 [shape = 's32[1]{0}', space=sflag, size = 0x4, scoped, tag = 'scoped memory for _lambda_.1']
    #allocation6 [shape = 'u8[16384]{0}', space=vmem, size = 0x4000, scoped, tag = 'input window, operand 6, single buffered']
    #allocation7 [shape = 'u8[16384]{0}', space=vmem, size = 0x4000, scoped, tag = 'input window, operand 8, single buffered']
    #allocation8 [shape = 's32[1]{0}', space=sflag, size = 0x4, scoped, tag = 'scoped memory for _lambda_.1']
    %21 = vsyncpa [#allocation3], 0
    %22 = vsyncpa [#allocation5], 0
    %23 = vsyncpa [#allocation8], 0
    // Predicated region
    $region2: #{_lambda_.1} parent=1 // pred_check
      _
    $region3: #{_lambda_.1} parent=1 // pred_check_branch
      %25 = sbr.rel (0) target = $region5
    $region4: #{_lambda_.1} parent=1 // pred_region
      _
    $region5: #{_lambda_.1} parent=1 // pred_fallthru
      _
    // Predicated region
    $region6: #{_lambda_.1} parent=1 // pred_check
      _
    $region7: #{_lambda_.1} parent=1 // pred_check_branch
      %27 = sbr.rel (0) target = $region9
    $region8: #{_lambda_.1} parent=1 // pred_region
      _
    $region9: #{_lambda_.1} parent=1 // pred_fallthru
      _
    // Predicated region
    $region10: #{_lambda_.1} parent=1 // pred_check
      _
    $region11: #{_lambda_.1} parent=1 // pred_check_branch
      %29 = sbr.rel (0) target = $region13
    $region12: #{_lambda_.1} parent=1 // pred_region
      %s31 = ssub.s32 512, 512
      %32 = vsyncadd [#allocation3], %s31
      %s33 = sshll.u32 [#allocation2], 4
      %s34 = int_to_ptr.vmem [resolvable:$true] %s33
      %39 = dma.hbm_to_vmem [thread:$0]  %s2, 512, %s34, [#allocation3], 64, 64, 4
    $region13: #{_lambda_.1} parent=1 // pred_fallthru
      _
    // Predicated region
    $region14: #{_lambda_.1} parent=1 // pred_check
      _
    $region15: #{_lambda_.1} parent=1 // pred_check_branch
      %41 = sbr.rel (0) target = $region17
    $region16: #{_lambda_.1} parent=1 // pred_region
      _
    $region17: #{_lambda_.1} parent=1 // pred_fallthru
      _
    // Predicated region
    $region18: #{_lambda_.1} parent=1 // pred_check
      _
    $region19: #{_lambda_.1} parent=1 // pred_check_branch
      %43 = sbr.rel (0) target = $region21
    $region20: #{_lambda_.1} parent=1 // pred_region
      %s45 = ssub.s32 512, 512
      %46 = vsyncadd [#allocation5], %s45
      %s47 = sshll.u32 [#allocation4], 4
      %s48 = int_to_ptr.vmem [resolvable:$true] %s47
      %53 = dma.hbm_to_vmem [thread:$0]  %s4, 512, %s48, [#allocation5], 64, 64, 4
    $region21: #{_lambda_.1} parent=1 // pred_fallthru
      _
    // Predicated region
    $region22: #{_lambda_.1} parent=1 // pred_check
      _
    $region23: #{_lambda_.1} parent=1 // pred_check_branch
      %55 = sbr.rel (0) target = $region25
    $region24: #{_lambda_.1} parent=1 // pred_region
      _
    $region25: #{_lambda_.1} parent=1 // pred_fallthru
      _
    // Predicated region
    $region26: #{_lambda_.1} parent=1 // pred_check
      _
    $region27: #{_lambda_.1} parent=1 // pred_check_branch
      %57 = sbr.rel (0) target = $region29
    $region28: #{_lambda_.1} parent=1 // pred_region
      %s59 = ssub.s32 512, 512
      %60 = vsyncadd [#allocation5], %s59
      %s61 = sshll.u32 [#allocation6], 4
      %s62 = int_to_ptr.vmem [resolvable:$true] %s61
      %67 = dma.hbm_to_vmem [thread:$0]  %s6, 512, %s62, [#allocation5], 64, 64, 4
    $region29: #{_lambda_.1} parent=1 // pred_fallthru
      _
    // Predicated region
    $region30: #{_lambda_.1} parent=1 // pred_check
      _
    $region31: #{_lambda_.1} parent=1 // pred_check_branch
      %69 = sbr.rel (0) target = $region33
    $region32: #{_lambda_.1} parent=1 // pred_region
      _
    $region33: #{_lambda_.1} parent=1 // pred_fallthru
      _
    // Predicated region
    $region34: #{_lambda_.1} parent=1 // pred_check
      _
    $region35: #{_lambda_.1} parent=1 // pred_check_branch
      %71 = sbr.rel (0) target = $region37
    $region36: #{_lambda_.1} parent=1 // pred_region
      %s73 = ssub.s32 512, 512
      %74 = vsyncadd [#allocation8], %s73
      %s75 = sshll.u32 [#allocation7], 4
      %s76 = int_to_ptr.vmem [resolvable:$true] %s75
      %81 = dma.hbm_to_vmem [thread:$0]  %s8, 512, %s76, [#allocation8], 64, 64, 4
    $region37: #{_lambda_.1} parent=1 // pred_fallthru
      _
    // Predicated region
    $region38: #{_lambda_.1} parent=1 // pred_check
      _
    $region39: #{_lambda_.1} parent=1 // pred_check_branch
      %83 = sbr.rel (0) target = $region41
    $region40: #{_lambda_.1} parent=1 // pred_region
      _
    $region41: #{_lambda_.1} parent=1 // pred_fallthru
      _
    // Predicated region
    $region42: #{_lambda_.1} parent=1 // pred_check
      _
    $region43: #{_lambda_.1} parent=1 // pred_check_branch
      %85 = sbr.rel (0) target = $region45
    $region44: #{_lambda_.1} parent=1 // pred_region
      _
    $region45: #{_lambda_.1} parent=1 // pred_fallthru
      _
    // Predicated region
    $region46: #{_lambda_.1} parent=1 // pred_check
      _
    $region47: #{_lambda_.1} parent=1 // pred_check_branch
      %87 = sbr.rel (0) target = $region49
    $region48: #{_lambda_.1} parent=1 // pred_region
      _
    $region49: #{_lambda_.1} parent=1 // pred_fallthru
      _
    // Predicated region
    $region50: #{_lambda_.1} parent=1 // pred_check
      _
    $region51: #{_lambda_.1} parent=1 // pred_check_branch
      %89 = sbr.rel (0) target = $region53
    $region52: #{_lambda_.1} parent=1 // pred_region
      _
    $region53: #{_lambda_.1} parent=1 // pred_fallthru
      _
    // Predicated region
    $region54: #{_lambda_.1} parent=1 // pred_check
      _
    $region55: #{_lambda_.1} parent=1 // pred_check_branch
      %91 = sbr.rel (0) target = $region57
    $region56: #{_lambda_.1} parent=1 // pred_region
      _
    $region57: #{_lambda_.1} parent=1 // pred_fallthru
      _
    // Predicated region
    $region58: #{_lambda_.1} parent=1 // pred_check
      _
    $region59: #{_lambda_.1} parent=1 // pred_check_branch
      %93 = sbr.rel (0) target = $region61
    $region60: #{_lambda_.1} parent=1 // pred_region
      _
    $region61: #{_lambda_.1} parent=1 // pred_fallthru
      _
    // Predicated region
    $region62: #{_lambda_.1} parent=1 // pred_check
      _
    $region63: #{_lambda_.1} parent=1 // pred_check_branch
      %95 = sbr.rel (0) target = $region65
    $region64: #{_lambda_.1} parent=1 // pred_region
      _
    $region65: #{_lambda_.1} parent=1 // pred_fallthru
      _
    // Predicated region
    $region66: #{_lambda_.1} parent=1 // pred_check
      _
    $region67: #{_lambda_.1} parent=1 // pred_check_branch
      %97 = sbr.rel (0) target = $region69
    $region68: #{_lambda_.1} parent=1 // pred_region
      %98 = dma.done [#allocation3], 512
    $region69: #{_lambda_.1} parent=1 // pred_fallthru
      _
    // Predicated region
    $region70: #{_lambda_.1} parent=1 // pred_check
      _
    $region71: #{_lambda_.1} parent=1 // pred_check_branch
      %100 = sbr.rel (0) target = $region73
    $region72: #{_lambda_.1} parent=1 // pred_region
      %101 = dma.done [#allocation5], 512
    $region73: #{_lambda_.1} parent=1 // pred_fallthru
      _
    // Predicated region
    $region74: #{_lambda_.1} parent=1 // pred_check
      _
    $region75: #{_lambda_.1} parent=1 // pred_check_branch
      %103 = sbr.rel (0) target = $region77
    $region76: #{_lambda_.1} parent=1 // pred_region
      %104 = dma.done [#allocation5], 512
    $region77: #{_lambda_.1} parent=1 // pred_fallthru
      _
    // Predicated region
    $region78: #{_lambda_.1} parent=1 // pred_check
      _
    $region79: #{_lambda_.1} parent=1 // pred_check_branch
      %106 = sbr.rel (0) target = $region81
    $region80: #{_lambda_.1} parent=1 // pred_region
      %107 = dma.done [#allocation8], 512
    $region81: #{_lambda_.1} parent=1 // pred_fallthru
      _
    %v109 = vld [vmem:[%s0] sm:$0xff]
    %v110 = vld [vmem:[%s0 + $0x8] sm:$0xff]
    %v111 = vld [vmem:[%s1] sm:$0xff]
    %v112 = vld [vmem:[%s1 + $0x8] sm:$0xff]
    %v113 = vld [vmem:[#allocation2] sm:$0xf]
    %v114 = vld [vmem:[#allocation2 + $0x4] sm:$0xf]
    %v115 = vld [vmem:[#allocation2 + $0x8] sm:$0xf]
    %v116 = vld [vmem:[#allocation2 + $0xc] sm:$0xf]
    %v117 = vld [vmem:[%s3] sm:$0x1]
    %v118 = vld [vmem:[#allocation4] sm:$0xf]
    %v119 = vld [vmem:[#allocation4 + $0x4] sm:$0xf]
    %v120 = vld [vmem:[#allocation4 + $0x8] sm:$0xf]
    %v121 = vld [vmem:[#allocation4 + $0xc] sm:$0xf]
    %v122 = vld [vmem:[%s5] sm:$0x1]
    %v123 = vld [vmem:[#allocation6] sm:$0xf]
    %v124 = vld [vmem:[#allocation6 + $0x4] sm:$0xf]
    %v125 = vld [vmem:[#allocation6 + $0x8] sm:$0xf]
    %v126 = vld [vmem:[#allocation6 + $0xc] sm:$0xf]
    %v127 = vld [vmem:[%s7] sm:$0x1]
    %v128 = vld [vmem:[#allocation7] sm:$0xf]
    %v129 = vld [vmem:[#allocation7 + $0x4] sm:$0xf]
    %v130 = vld [vmem:[#allocation7 + $0x8] sm:$0xf]
    %v131 = vld [vmem:[#allocation7 + $0xc] sm:$0xf]
    %v132 = vld [vmem:[%s9] sm:$0x1]
    %v133 = vld [vmem:[%s10] sm:$0xf]
    %v134 = vld [vmem:[%s10 + $0x4] sm:$0xf]
    %v135 = vld [vmem:[%s10 + $0x8] sm:$0xf]
    %v136 = vld [vmem:[%s10 + $0xc] sm:$0xf]
    %v137 = vld [vmem:[%s10 + $0x10] sm:$0xf]
    %v138 = vld [vmem:[%s10 + $0x14] sm:$0xf]
    %v139 = vld [vmem:[%s10 + $0x18] sm:$0xf]
    %v140 = vld [vmem:[%s10 + $0x1c] sm:$0xf]
    %v141 = vld [vmem:[%s11] sm:$0x1]
    %v142 = vld [vmem:[%s12] sm:$0x1]
    %v143 = vld [vmem:[%s13] sm:$0x1]
    %v144 = vld [vmem:[%s14] sm:$0x1]
    %v145 = vld [vmem:[%s15] sm:$0x1]
    %v146 = vadd.f32 %v109, %v111
    %v147 = vadd.f32 %v110, %v112
    %v148 = vpack.c.bf16 %v147, %v146
    %v150 = vlaneseq
    %v151 = vshrl.u32 %v150, 7
    %v152 = vsub.s32 0, %v151
    %v153 = vrot.slane %v117, %v152
    %v159 = vunpack.c.l.b16 %v113
    %v160 = vunpack.c.l.b16 %v114
    %v161 = vunpack.c.l.b16 %v115
    %v162 = vunpack.c.l.b16 %v116
    %v163 = vpack.c.b16 %v160, %v159
    %v164 = vpack.c.b16 %v162, %v161
    %vm167 = vcmask 261120
    %v169 = vsel %vm167, %v148, 0
    %171 = vmatprep.subr.bf16.mxu0 0
    %172 = vmatpush1.bf16.msra.mxu0 0
    %173 = vmatprep.subr.bf16.mxu0 0
    %174 = vmatpush1.bf16.msra.mxu0 0
    %175 = vmatprep.subr.bf16.mxu0 0
    %176 = vmatpush1.bf16.msra.mxu0 0
    %177 = vmatprep.subr.bf16.mxu0 0
    %178 = vmatpush1.bf16.msra.mxu0 0
    %179 = vmatprep.subr.bf16.mxu0 0
    %180 = vmatpush1.bf16.msra.mxu0 0
    %181 = vmatprep.subr.bf16.mxu0 0
    %182 = vmatpush1.bf16.msra.mxu0 0
    %183 = vmatprep.subr.bf16.mxu0 0
    %184 = vmatpush1.bf16.msra.mxu0 %v164
    %185 = vmatprep.subr.bf16.mxu0 0
    %186 = vmatpush1.bf16.msra.mxu0 %v163
    %187 = vmatprep.subr.bf16.mxu0 0
    %188 = vmatpush2.bf16.msra.mxu0 0
    %189 = vmatprep.subr.bf16.mxu0 0
    %190 = vmatpush2.bf16.msra.mxu0 0
    %191 = vmatprep.subr.bf16.mxu0 0
    %192 = vmatpush2.bf16.msra.mxu0 0
    %193 = vmatprep.subr.bf16.mxu0 0
    %194 = vmatpush2.bf16.msra.mxu0 0
    %195 = vmatprep.subr.bf16.mxu0 0
    %196 = vmatpush2.bf16.msra.mxu0 0
    %197 = vmatprep.subr.bf16.mxu0 0
    %198 = vmatpush2.bf16.msra.mxu0 0
    %199 = vmatprep.subr.bf16.mxu0 0
    %200 = vmatpush2.bf16.msra.mxu0 0
    %201 = vmatprep.subr.bf16.mxu0 0
    %202 = vmatpush2.bf16.msra.mxu0 0
    %203 = vmatprep.mubr.bf16.mxu0 0
    %204 = vmatmul.mubr.bf16.gmra.mxu0 %v169
    %v205 = vpop.f32.mrf.mxu0
    %v206 = vadd.f32 %v153, %v205
    %v207 = vpop.f32.mrf.mxu0
    %v208 = vpop.f32.mrf.mxu0
    %v209 = vadd.f32 %v153, %v208
    %v210 = vpop.f32.mrf.mxu0
    %211 = vdwg.mxu0
    %v212 = vpack.c.bf16 %v110, %v109
    %v214 = vlaneseq
    %v215 = vshrl.u32 %v214, 7
    %v216 = vsub.s32 0, %v215
    %v217 = vrot.slane %v122, %v216
    %v223 = vunpack.c.l.b16 %v118
    %v224 = vunpack.c.l.b16 %v119
    %v225 = vunpack.c.l.b16 %v120
    %v226 = vunpack.c.l.b16 %v121
    %v227 = vpack.c.b16 %v224, %v223
    %v228 = vpack.c.b16 %v226, %v225
    %v232 = vsel %vm167, %v212, 0
    %234 = vmatprep.subr.bf16.mxu0 0
    %235 = vmatpush1.bf16.msra.mxu0 0
    %236 = vmatprep.subr.bf16.mxu0 0
    %237 = vmatpush1.bf16.msra.mxu0 0
    %238 = vmatprep.subr.bf16.mxu0 0
    %239 = vmatpush1.bf16.msra.mxu0 0
    %240 = vmatprep.subr.bf16.mxu0 0
    %241 = vmatpush1.bf16.msra.mxu0 0
    %242 = vmatprep.subr.bf16.mxu0 0
    %243 = vmatpush1.bf16.msra.mxu0 0
    %244 = vmatprep.subr.bf16.mxu0 0
    %245 = vmatpush1.bf16.msra.mxu0 0
    %246 = vmatprep.subr.bf16.mxu0 0
    %247 = vmatpush1.bf16.msra.mxu0 %v228
    %248 = vmatprep.subr.bf16.mxu0 0
    %249 = vmatpush1.bf16.msra.mxu0 %v227
    %250 = vmatprep.subr.bf16.mxu0 0
    %251 = vmatpush2.bf16.msra.mxu0 0
    %252 = vmatprep.subr.bf16.mxu0 0
    %253 = vmatpush2.bf16.msra.mxu0 0
    %254 = vmatprep.subr.bf16.mxu0 0
    %255 = vmatpush2.bf16.msra.mxu0 0
    %256 = vmatprep.subr.bf16.mxu0 0
    %257 = vmatpush2.bf16.msra.mxu0 0
    %258 = vmatprep.subr.bf16.mxu0 0
    %259 = vmatpush2.bf16.msra.mxu0 0
    %260 = vmatprep.subr.bf16.mxu0 0
    %261 = vmatpush2.bf16.msra.mxu0 0
    %262 = vmatprep.subr.bf16.mxu0 0
    %263 = vmatpush2.bf16.msra.mxu0 0
    %264 = vmatprep.subr.bf16.mxu0 0
    %265 = vmatpush2.bf16.msra.mxu0 0
    %266 = vmatprep.mubr.bf16.mxu0 0
    %267 = vmatmul.mubr.bf16.gmra.mxu0 %v232
    %v268 = vpop.f32.mrf.mxu0
    %v269 = vadd.f32 %v217, %v268
    %v270 = vpop.f32.mrf.mxu0
    %v271 = vpop.f32.mrf.mxu0
    %v272 = vadd.f32 %v217, %v271
    %v273 = vpop.f32.mrf.mxu0
    %274 = vdwg.mxu0
    %v275 = vpack.c.bf16 %v206, %v206
    %v276 = vpack.c.bf16 %v209, %v209
    %v277 = vpack.c.bf16 %v269, %v269
    %v278 = vpack.c.bf16 %v272, %v272
    %280 = vrot.lane.b32.xlu0 %v275, 96
    %v281 = vpop.permute.xlu0 %280
    %vm282 = vcmask 64512
    %v284 = vsel %vm282, %v275, 0
    %v287 = vsel %vm282, %v281, 0
    %289 = vmatprep.subr.bf16.mxu0 0
    %290 = vmatpush1.bf16.xpose.msra.mxu0 0
    %291 = vmatprep.subr.bf16.mxu0 0
    %292 = vmatpush1.bf16.xpose.msra.mxu0 0
    %293 = vmatprep.subr.bf16.mxu0 0
    %294 = vmatpush1.bf16.xpose.msra.mxu0 0
    %295 = vmatprep.subr.bf16.mxu0 0
    %296 = vmatpush1.bf16.xpose.msra.mxu0 0
    %297 = vmatprep.subr.bf16.mxu0 0
    %298 = vmatpush1.bf16.xpose.msra.mxu0 0
    %299 = vmatprep.subr.bf16.mxu0 0
    %300 = vmatpush1.bf16.xpose.msra.mxu0 0
    %301 = vmatprep.subr.bf16.mxu0 0
    %302 = vmatpush1.bf16.xpose.msra.mxu0 0
    %303 = vmatprep.subr.bf16.mxu0 0
    %304 = vmatpush1.bf16.xpose.msra.mxu0 %v287
    %305 = vmatprep.subr.bf16.mxu0 0
    %306 = vmatpush2.bf16.xpose.msra.mxu0 0
    %307 = vmatprep.subr.bf16.mxu0 0
    %308 = vmatpush2.bf16.xpose.msra.mxu0 0
    %309 = vmatprep.subr.bf16.mxu0 0
    %310 = vmatpush2.bf16.xpose.msra.mxu0 0
    %311 = vmatprep.subr.bf16.mxu0 0
    %312 = vmatpush2.bf16.xpose.msra.mxu0 0
    %313 = vmatprep.subr.bf16.mxu0 0
    %314 = vmatpush2.bf16.xpose.msra.mxu0 0
    %315 = vmatprep.subr.bf16.mxu0 0
    %316 = vmatpush2.bf16.xpose.msra.mxu0 0
    %317 = vmatprep.subr.bf16.mxu0 0
    %318 = vmatpush2.bf16.xpose.msra.mxu0 0
    %319 = vmatprep.subr.bf16.mxu0 0
    %320 = vmatpush2.bf16.xpose.msra.mxu0 0
    %321 = vmatprep.mubr.bf16.mxu0 0
    %322 = vmatmul.mubr.bf16.gmra.mxu0 %v284
    %v323 = vpop.f32.mrf.mxu0
    %v324 = vadd.f32 0.0, %v323
    %v325 = vpop.f32.mrf.mxu0
    %v326 = vpop.f32.mrf.mxu0
    %v327 = vpop.f32.mrf.mxu0
    %328 = vdwg.mxu0
    %330 = vrot.lane.b32.xlu0 %v276, 96
    %v331 = vpop.permute.xlu0 %330
    %v333 = vsel %vm282, %v276, 0
    %v336 = vsel %vm282, %v331, 0
    %338 = vmatprep.subr.bf16.mxu0 0
    %339 = vmatpush1.bf16.xpose.msra.mxu0 0
    %340 = vmatprep.subr.bf16.mxu0 0
    %341 = vmatpush1.bf16.xpose.msra.mxu0 0
    %342 = vmatprep.subr.bf16.mxu0 0
    %343 = vmatpush1.bf16.xpose.msra.mxu0 0
    %344 = vmatprep.subr.bf16.mxu0 0
    %345 = vmatpush1.bf16.xpose.msra.mxu0 0
    %346 = vmatprep.subr.bf16.mxu0 0
    %347 = vmatpush1.bf16.xpose.msra.mxu0 0
    %348 = vmatprep.subr.bf16.mxu0 0
    %349 = vmatpush1.bf16.xpose.msra.mxu0 0
    %350 = vmatprep.subr.bf16.mxu0 0
    %351 = vmatpush1.bf16.xpose.msra.mxu0 0
    %352 = vmatprep.subr.bf16.mxu0 0
    %353 = vmatpush1.bf16.xpose.msra.mxu0 %v336
    %354 = vmatprep.subr.bf16.mxu0 0
    %355 = vmatpush2.bf16.xpose.msra.mxu0 0
    %356 = vmatprep.subr.bf16.mxu0 0
    %357 = vmatpush2.bf16.xpose.msra.mxu0 0
    %358 = vmatprep.subr.bf16.mxu0 0
    %359 = vmatpush2.bf16.xpose.msra.mxu0 0
    %360 = vmatprep.subr.bf16.mxu0 0
    %361 = vmatpush2.bf16.xpose.msra.mxu0 0
    %362 = vmatprep.subr.bf16.mxu0 0
    %363 = vmatpush2.bf16.xpose.msra.mxu0 0
    %364 = vmatprep.subr.bf16.mxu0 0
    %365 = vmatpush2.bf16.xpose.msra.mxu0 0
    %366 = vmatprep.subr.bf16.mxu0 0
    %367 = vmatpush2.bf16.xpose.msra.mxu0 0
    %368 = vmatprep.subr.bf16.mxu0 0
    %369 = vmatpush2.bf16.xpose.msra.mxu0 0
    %370 = vmatprep.mubr.bf16.mxu0 0
    %371 = vmatmul.mubr.bf16.gmra.mxu0 %v333
    %v372 = vpop.f32.mrf.mxu0
    %v373 = vadd.f32 0.0, %v372
    %v374 = vpop.f32.mrf.mxu0
    %v375 = vpop.f32.mrf.mxu0
    %v376 = vpop.f32.mrf.mxu0
    %377 = vdwg.mxu0
    %v378 = vsel %vm282, %v324, -inf
    %379 = vmax.xlane.f32.xlu0 %v378
    %v380 = vpop.xlane.xlu0 %379
    %v381 = vsel %vm282, %v373, -inf
    %382 = vmax.xlane.f32.xlu0 %v381
    %v383 = vpop.xlane.xlu0 %382
    %v384 = vsub.f32 %v324, %v380
    %v385 = vsub.f32 %v373, %v383
    %v386 = vmul.f32 %v384, 1.442695
    %v387 = vpow.pop %v386
    %v388 = vmul.f32 %v385, 1.442695
    %v389 = vpow.pop %v388
    %v390 = vsel %vm282, %v387, 0.0
    %391 = vadd.xlane.f32.xlu0 %v390
    %v392 = vpop.xlane.xlu0 %391
    %v393 = vsel %vm282, %v389, 0.0
    %394 = vadd.xlane.f32.xlu0 %v393
    %v395 = vpop.xlane.xlu0 %394
    %v396 = vrcp.pop %v392
    %v397 = vrcp.pop %v395
    %v398 = vmul.f32 %v387, %v396
    %v399 = vmul.f32 %v389, %v397
    %v400 = vpack.c.bf16 %v398, %v398
    %v401 = vpack.c.bf16 %v399, %v399
    %v403 = vsel %vm282, %v400, 0
    %vm405 = vcmask 1043456
    %v407 = vsel %vm405, %v277, 0
    %409 = vmatprep.subr.bf16.mxu0 0
    %410 = vmatpush1.bf16.msra.mxu0 0
    %411 = vmatprep.subr.bf16.mxu0 0
    %412 = vmatpush1.bf16.msra.mxu0 0
    %413 = vmatprep.subr.bf16.mxu0 0
    %414 = vmatpush1.bf16.msra.mxu0 0
    %415 = vmatprep.subr.bf16.mxu0 0
    %416 = vmatpush1.bf16.msra.mxu0 0
    %417 = vmatprep.subr.bf16.mxu0 0
    %418 = vmatpush1.bf16.msra.mxu0 0
    %419 = vmatprep.subr.bf16.mxu0 0
    %420 = vmatpush1.bf16.msra.mxu0 0
    %421 = vmatprep.subr.bf16.mxu0 0
    %422 = vmatpush1.bf16.msra.mxu0 0
    %423 = vmatprep.subr.bf16.mxu0 0
    %424 = vmatpush1.bf16.msra.mxu0 %v407
    %425 = vmatprep.subr.bf16.mxu0 0
    %426 = vmatpush2.bf16.msra.mxu0 0
    %427 = vmatprep.subr.bf16.mxu0 0
    %428 = vmatpush2.bf16.msra.mxu0 0
    %429 = vmatprep.subr.bf16.mxu0 0
    %430 = vmatpush2.bf16.msra.mxu0 0
    %431 = vmatprep.subr.bf16.mxu0 0
    %432 = vmatpush2.bf16.msra.mxu0 0
    %433 = vmatprep.subr.bf16.mxu0 0
    %434 = vmatpush2.bf16.msra.mxu0 0
    %435 = vmatprep.subr.bf16.mxu0 0
    %436 = vmatpush2.bf16.msra.mxu0 0
    %437 = vmatprep.subr.bf16.mxu0 0
    %438 = vmatpush2.bf16.msra.mxu0 0
    %439 = vmatprep.subr.bf16.mxu0 0
    %440 = vmatpush2.bf16.msra.mxu0 0
    %441 = vmatprep.mubr.bf16.mxu0 0
    %442 = vmatmul.mubr.bf16.gmra.mxu0 %v403
    %v443 = vpop.f32.mrf.mxu0
    %v444 = vadd.f32 0.0, %v443
    %v445 = vpop.f32.mrf.mxu0
    %v446 = vpop.f32.mrf.mxu0
    %v447 = vpop.f32.mrf.mxu0
    %448 = vdwg.mxu0
    %v450 = vsel %vm282, %v401, 0
    %v453 = vsel %vm405, %v278, 0
    %455 = vmatprep.subr.bf16.mxu0 0
    %456 = vmatpush1.bf16.msra.mxu0 0
    %457 = vmatprep.subr.bf16.mxu0 0
    %458 = vmatpush1.bf16.msra.mxu0 0
    %459 = vmatprep.subr.bf16.mxu0 0
    %460 = vmatpush1.bf16.msra.mxu0 0
    %461 = vmatprep.subr.bf16.mxu0 0
    %462 = vmatpush1.bf16.msra.mxu0 0
    %463 = vmatprep.subr.bf16.mxu0 0
    %464 = vmatpush1.bf16.msra.mxu0 0
    %465 = vmatprep.subr.bf16.mxu0 0
    %466 = vmatpush1.bf16.msra.mxu0 0
    %467 = vmatprep.subr.bf16.mxu0 0
    %468 = vmatpush1.bf16.msra.mxu0 0
    %469 = vmatprep.subr.bf16.mxu0 0
    %470 = vmatpush1.bf16.msra.mxu0 %v453
    %471 = vmatprep.subr.bf16.mxu0 0
    %472 = vmatpush2.bf16.msra.mxu0 0
    %473 = vmatprep.subr.bf16.mxu0 0
    %474 = vmatpush2.bf16.msra.mxu0 0
    %475 = vmatprep.subr.bf16.mxu0 0
    %476 = vmatpush2.bf16.msra.mxu0 0
    %477 = vmatprep.subr.bf16.mxu0 0
    %478 = vmatpush2.bf16.msra.mxu0 0
    %479 = vmatprep.subr.bf16.mxu0 0
    %480 = vmatpush2.bf16.msra.mxu0 0
    %481 = vmatprep.subr.bf16.mxu0 0
    %482 = vmatpush2.bf16.msra.mxu0 0
    %483 = vmatprep.subr.bf16.mxu0 0
    %484 = vmatpush2.bf16.msra.mxu0 0
    %485 = vmatprep.subr.bf16.mxu0 0
    %486 = vmatpush2.bf16.msra.mxu0 0
    %487 = vmatprep.mubr.bf16.mxu0 0
    %488 = vmatmul.mubr.bf16.gmra.mxu0 %v450
    %v489 = vpop.f32.mrf.mxu0
    %v490 = vadd.f32 0.0, %v489
    %v491 = vpop.f32.mrf.mxu0
    %v492 = vpop.f32.mrf.mxu0
    %v493 = vpop.f32.mrf.mxu0
    %494 = vdwg.mxu0
    %v495 = vpack.c.bf16 %v490, %v444
    %496 = vrot.lane.b32.xlu0 %v275, 120
    %v497 = vpop.permute.xlu0 %496
    %498 = vrot.lane.b32.xlu0 %v275, 88
    %v499 = vpop.permute.xlu0 %498
    %v501 = vsel %vm282, %v497, 0
    %v504 = vsel %vm282, %v499, 0
    %506 = vmatprep.subr.bf16.mxu0 0
    %507 = vmatpush1.bf16.xpose.msra.mxu0 0
    %508 = vmatprep.subr.bf16.mxu0 0
    %509 = vmatpush1.bf16.xpose.msra.mxu0 0
    %510 = vmatprep.subr.bf16.mxu0 0
    %511 = vmatpush1.bf16.xpose.msra.mxu0 0
    %512 = vmatprep.subr.bf16.mxu0 0
    %513 = vmatpush1.bf16.xpose.msra.mxu0 0
    %514 = vmatprep.subr.bf16.mxu0 0
    %515 = vmatpush1.bf16.xpose.msra.mxu0 0
    %516 = vmatprep.subr.bf16.mxu0 0
    %517 = vmatpush1.bf16.xpose.msra.mxu0 0
    %518 = vmatprep.subr.bf16.mxu0 0
    %519 = vmatpush1.bf16.xpose.msra.mxu0 0
    %520 = vmatprep.subr.bf16.mxu0 0
    %521 = vmatpush1.bf16.xpose.msra.mxu0 %v504
    %522 = vmatprep.subr.bf16.mxu0 0
    %523 = vmatpush2.bf16.xpose.msra.mxu0 0
    %524 = vmatprep.subr.bf16.mxu0 0
    %525 = vmatpush2.bf16.xpose.msra.mxu0 0
    %526 = vmatprep.subr.bf16.mxu0 0
    %527 = vmatpush2.bf16.xpose.msra.mxu0 0
    %528 = vmatprep.subr.bf16.mxu0 0
    %529 = vmatpush2.bf16.xpose.msra.mxu0 0
    %530 = vmatprep.subr.bf16.mxu0 0
    %531 = vmatpush2.bf16.xpose.msra.mxu0 0
    %532 = vmatprep.subr.bf16.mxu0 0
    %533 = vmatpush2.bf16.xpose.msra.mxu0 0
    %534 = vmatprep.subr.bf16.mxu0 0
    %535 = vmatpush2.bf16.xpose.msra.mxu0 0
    %536 = vmatprep.subr.bf16.mxu0 0
    %537 = vmatpush2.bf16.xpose.msra.mxu0 0
    %538 = vmatprep.mubr.bf16.mxu0 0
    %539 = vmatmul.mubr.bf16.gmra.mxu0 %v501
    %v540 = vpop.f32.mrf.mxu0
    %v541 = vadd.f32 0.0, %v540
    %v542 = vpop.f32.mrf.mxu0
    %v543 = vpop.f32.mrf.mxu0
    %v544 = vpop.f32.mrf.mxu0
    %545 = vdwg.mxu0
    %546 = vrot.lane.b32.xlu0 %v276, 120
    %v547 = vpop.permute.xlu0 %546
    %548 = vrot.lane.b32.xlu0 %v276, 88
    %v549 = vpop.permute.xlu0 %548
    %v551 = vsel %vm282, %v547, 0
    %v554 = vsel %vm282, %v549, 0
    %556 = vmatprep.subr.bf16.mxu0 0
    %557 = vmatpush1.bf16.xpose.msra.mxu0 0
    %558 = vmatprep.subr.bf16.mxu0 0
    %559 = vmatpush1.bf16.xpose.msra.mxu0 0
    %560 = vmatprep.subr.bf16.mxu0 0
    %561 = vmatpush1.bf16.xpose.msra.mxu0 0
    %562 = vmatprep.subr.bf16.mxu0 0
    %563 = vmatpush1.bf16.xpose.msra.mxu0 0
    %564 = vmatprep.subr.bf16.mxu0 0
    %565 = vmatpush1.bf16.xpose.msra.mxu0 0
    %566 = vmatprep.subr.bf16.mxu0 0
    %567 = vmatpush1.bf16.xpose.msra.mxu0 0
    %568 = vmatprep.subr.bf16.mxu0 0
    %569 = vmatpush1.bf16.xpose.msra.mxu0 0
    %570 = vmatprep.subr.bf16.mxu0 0
    %571 = vmatpush1.bf16.xpose.msra.mxu0 %v554
    %572 = vmatprep.subr.bf16.mxu0 0
    %573 = vmatpush2.bf16.xpose.msra.mxu0 0
    %574 = vmatprep.subr.bf16.mxu0 0
    %575 = vmatpush2.bf16.xpose.msra.mxu0 0
    %576 = vmatprep.subr.bf16.mxu0 0
    %577 = vmatpush2.bf16.xpose.msra.mxu0 0
    %578 = vmatprep.subr.bf16.mxu0 0
    %579 = vmatpush2.bf16.xpose.msra.mxu0 0
    %580 = vmatprep.subr.bf16.mxu0 0
    %581 = vmatpush2.bf16.xpose.msra.mxu0 0
    %582 = vmatprep.subr.bf16.mxu0 0
    %583 = vmatpush2.bf16.xpose.msra.mxu0 0
    %584 = vmatprep.subr.bf16.mxu0 0
    %585 = vmatpush2.bf16.xpose.msra.mxu0 0
    %586 = vmatprep.subr.bf16.mxu0 0
    %587 = vmatpush2.bf16.xpose.msra.mxu0 0
    %588 = vmatprep.mubr.bf16.mxu0 0
    %589 = vmatmul.mubr.bf16.gmra.mxu0 %v551
    %v590 = vpop.f32.mrf.mxu0
    %v591 = vadd.f32 0.0, %v590
    %v592 = vpop.f32.mrf.mxu0
    %v593 = vpop.f32.mrf.mxu0
    %v594 = vpop.f32.mrf.mxu0
    %595 = vdwg.mxu0
    %v596 = vsel %vm282, %v541, -inf
    %597 = vmax.xlane.f32.xlu0 %v596
    %v598 = vpop.xlane.xlu0 %597
    %v599 = vsel %vm282, %v591, -inf
    %600 = vmax.xlane.f32.xlu0 %v599
    %v601 = vpop.xlane.xlu0 %600
    %v602 = vsub.f32 %v541, %v598
    %v603 = vsub.f32 %v591, %v601
    %v604 = vmul.f32 %v602, 1.442695
    %v605 = vpow.pop %v604
    %v606 = vmul.f32 %v603, 1.442695
    %v607 = vpow.pop %v606
    %v608 = vsel %vm282, %v605, 0.0
    %609 = vadd.xlane.f32.xlu0 %v608
    %v610 = vpop.xlane.xlu0 %609
    %v611 = vsel %vm282, %v607, 0.0
    %612 = vadd.xlane.f32.xlu0 %v611
    %v613 = vpop.xlane.xlu0 %612
    %v614 = vrcp.pop %v610
    %v615 = vrcp.pop %v613
    %v616 = vmul.f32 %v605, %v614
    %v617 = vmul.f32 %v607, %v615
    %v618 = vpack.c.bf16 %v616, %v616
    %v619 = vpack.c.bf16 %v617, %v617
    %621 = vrot.lane.b32.xlu0 %v277, 120
    %v622 = vpop.permute.xlu0 %621
    %v624 = vsel %vm282, %v618, 0
    %v627 = vsel %vm405, %v622, 0
    %629 = vmatprep.subr.bf16.mxu0 0
    %630 = vmatpush1.bf16.msra.mxu0 0
    %631 = vmatprep.subr.bf16.mxu0 0
    %632 = vmatpush1.bf16.msra.mxu0 0
    %633 = vmatprep.subr.bf16.mxu0 0
    %634 = vmatpush1.bf16.msra.mxu0 0
    %635 = vmatprep.subr.bf16.mxu0 0
    %636 = vmatpush1.bf16.msra.mxu0 0
    %637 = vmatprep.subr.bf16.mxu0 0
    %638 = vmatpush1.bf16.msra.mxu0 0
    %639 = vmatprep.subr.bf16.mxu0 0
    %640 = vmatpush1.bf16.msra.mxu0 0
    %641 = vmatprep.subr.bf16.mxu0 0
    %642 = vmatpush1.bf16.msra.mxu0 0
    %643 = vmatprep.subr.bf16.mxu0 0
    %644 = vmatpush1.bf16.msra.mxu0 %v627
    %645 = vmatprep.subr.bf16.mxu0 0
    %646 = vmatpush2.bf16.msra.mxu0 0
    %647 = vmatprep.subr.bf16.mxu0 0
    %648 = vmatpush2.bf16.msra.mxu0 0
    %649 = vmatprep.subr.bf16.mxu0 0
    %650 = vmatpush2.bf16.msra.mxu0 0
    %651 = vmatprep.subr.bf16.mxu0 0
    %652 = vmatpush2.bf16.msra.mxu0 0
    %653 = vmatprep.subr.bf16.mxu0 0
    %654 = vmatpush2.bf16.msra.mxu0 0
    %655 = vmatprep.subr.bf16.mxu0 0
    %656 = vmatpush2.bf16.msra.mxu0 0
    %657 = vmatprep.subr.bf16.mxu0 0
    %658 = vmatpush2.bf16.msra.mxu0 0
    %659 = vmatprep.subr.bf16.mxu0 0
    %660 = vmatpush2.bf16.msra.mxu0 0
    %661 = vmatprep.mubr.bf16.mxu0 0
    %662 = vmatmul.mubr.bf16.gmra.mxu0 %v624
    %v663 = vpop.f32.mrf.mxu0
    %v664 = vadd.f32 0.0, %v663
    %v665 = vpop.f32.mrf.mxu0
    %v666 = vpop.f32.mrf.mxu0
    %v667 = vpop.f32.mrf.mxu0
    %668 = vdwg.mxu0
    %670 = vrot.lane.b32.xlu0 %v278, 120
    %v671 = vpop.permute.xlu0 %670
    %v673 = vsel %vm282, %v619, 0
    %v676 = vsel %vm405, %v671, 0
    %678 = vmatprep.subr.bf16.mxu0 0
    %679 = vmatpush1.bf16.msra.mxu0 0
    %680 = vmatprep.subr.bf16.mxu0 0
    %681 = vmatpush1.bf16.msra.mxu0 0
    %682 = vmatprep.subr.bf16.mxu0 0
    %683 = vmatpush1.bf16.msra.mxu0 0
    %684 = vmatprep.subr.bf16.mxu0 0
    %685 = vmatpush1.bf16.msra.mxu0 0
    %686 = vmatprep.subr.bf16.mxu0 0
    %687 = vmatpush1.bf16.msra.mxu0 0
    %688 = vmatprep.subr.bf16.mxu0 0
    %689 = vmatpush1.bf16.msra.mxu0 0
    %690 = vmatprep.subr.bf16.mxu0 0
    %691 = vmatpush1.bf16.msra.mxu0 0
    %692 = vmatprep.subr.bf16.mxu0 0
    %693 = vmatpush1.bf16.msra.mxu0 %v676
    %694 = vmatprep.subr.bf16.mxu0 0
    %695 = vmatpush2.bf16.msra.mxu0 0
    %696 = vmatprep.subr.bf16.mxu0 0
    %697 = vmatpush2.bf16.msra.mxu0 0
    %698 = vmatprep.subr.bf16.mxu0 0
    %699 = vmatpush2.bf16.msra.mxu0 0
    %700 = vmatprep.subr.bf16.mxu0 0
    %701 = vmatpush2.bf16.msra.mxu0 0
    %702 = vmatprep.subr.bf16.mxu0 0
    %703 = vmatpush2.bf16.msra.mxu0 0
    %704 = vmatprep.subr.bf16.mxu0 0
    %705 = vmatpush2.bf16.msra.mxu0 0
    %706 = vmatprep.subr.bf16.mxu0 0
    %707 = vmatpush2.bf16.msra.mxu0 0
    %708 = vmatprep.subr.bf16.mxu0 0
    %709 = vmatpush2.bf16.msra.mxu0 0
    %710 = vmatprep.mubr.bf16.mxu0 0
    %711 = vmatmul.mubr.bf16.gmra.mxu0 %v673
    %v712 = vpop.f32.mrf.mxu0
    %v713 = vadd.f32 0.0, %v712
    %v714 = vpop.f32.mrf.mxu0
    %v715 = vpop.f32.mrf.mxu0
    %v716 = vpop.f32.mrf.mxu0
    %717 = vdwg.mxu0
    %v718 = vpack.c.bf16 %v713, %v664
    %v720 = vsel %vm282, %v718, 0
    %v723 = vsel %vm405, %v124, 0
    %725 = vmatprep.subr.bf16.mxu0 0
    %726 = vmatpush1.bf16.msra.mxu0 0
    %727 = vmatprep.subr.bf16.mxu0 0
    %728 = vmatpush1.bf16.msra.mxu0 0
    %729 = vmatprep.subr.bf16.mxu0 0
    %730 = vmatpush1.bf16.msra.mxu0 0
    %731 = vmatprep.subr.bf16.mxu0 0
    %732 = vmatpush1.bf16.msra.mxu0 0
    %733 = vmatprep.subr.bf16.mxu0 0
    %734 = vmatpush1.bf16.msra.mxu0 0
    %735 = vmatprep.subr.bf16.mxu0 0
    %736 = vmatpush1.bf16.msra.mxu0 0
    %737 = vmatprep.subr.bf16.mxu0 0
    %738 = vmatpush1.bf16.msra.mxu0 0
    %739 = vmatprep.subr.bf16.mxu0 0
    %740 = vmatpush1.bf16.msra.mxu0 %v723
    %741 = vmatprep.subr.bf16.mxu0 0
    %742 = vmatpush2.bf16.msra.mxu0 0
    %743 = vmatprep.subr.bf16.mxu0 0
    %744 = vmatpush2.bf16.msra.mxu0 0
    %745 = vmatprep.subr.bf16.mxu0 0
    %746 = vmatpush2.bf16.msra.mxu0 0
    %747 = vmatprep.subr.bf16.mxu0 0
    %748 = vmatpush2.bf16.msra.mxu0 0
    %749 = vmatprep.subr.bf16.mxu0 0
    %750 = vmatpush2.bf16.msra.mxu0 0
    %751 = vmatprep.subr.bf16.mxu0 0
    %752 = vmatpush2.bf16.msra.mxu0 0
    %753 = vmatprep.subr.bf16.mxu0 0
    %754 = vmatpush2.bf16.msra.mxu0 0
    %755 = vmatprep.subr.bf16.mxu0 0
    %756 = vmatpush2.bf16.msra.mxu0 0
    %757 = vmatprep.mubr.bf16.mxu0 0
    %758 = vmatmul.mubr.bf16.gmra.mxu0 %v720
    %v759 = vpop.f32.mrf.mxu0
    %v760 = vadd.f32 0.0, %v759
    %v761 = vpop.f32.mrf.mxu0
    %v762 = vpop.f32.mrf.mxu0
    %v763 = vadd.f32 0.0, %v762
    %v764 = vpop.f32.mrf.mxu0
    %765 = vdwg.mxu0
    %v767 = vsel %vm282, %v495, 0
    %v770 = vsel %vm405, %v123, 0
    %772 = vmatprep.subr.bf16.mxu0 0
    %773 = vmatpush1.bf16.msra.mxu0 0
    %774 = vmatprep.subr.bf16.mxu0 0
    %775 = vmatpush1.bf16.msra.mxu0 0
    %776 = vmatprep.subr.bf16.mxu0 0
    %777 = vmatpush1.bf16.msra.mxu0 0
    %778 = vmatprep.subr.bf16.mxu0 0
    %779 = vmatpush1.bf16.msra.mxu0 0
    %780 = vmatprep.subr.bf16.mxu0 0
    %781 = vmatpush1.bf16.msra.mxu0 0
    %782 = vmatprep.subr.bf16.mxu0 0
    %783 = vmatpush1.bf16.msra.mxu0 0
    %784 = vmatprep.subr.bf16.mxu0 0
    %785 = vmatpush1.bf16.msra.mxu0 0
    %786 = vmatprep.subr.bf16.mxu0 0
    %787 = vmatpush1.bf16.msra.mxu0 %v770
    %788 = vmatprep.subr.bf16.mxu0 0
    %789 = vmatpush2.bf16.msra.mxu0 0
    %790 = vmatprep.subr.bf16.mxu0 0
    %791 = vmatpush2.bf16.msra.mxu0 0
    %792 = vmatprep.subr.bf16.mxu0 0
    %793 = vmatpush2.bf16.msra.mxu0 0
    %794 = vmatprep.subr.bf16.mxu0 0
    %795 = vmatpush2.bf16.msra.mxu0 0
    %796 = vmatprep.subr.bf16.mxu0 0
    %797 = vmatpush2.bf16.msra.mxu0 0
    %798 = vmatprep.subr.bf16.mxu0 0
    %799 = vmatpush2.bf16.msra.mxu0 0
    %800 = vmatprep.subr.bf16.mxu0 0
    %801 = vmatpush2.bf16.msra.mxu0 0
    %802 = vmatprep.subr.bf16.mxu0 0
    %803 = vmatpush2.bf16.msra.mxu0 0
    %804 = vmatprep.mubr.bf16.mxu0 0
    %805 = vmatmul.mubr.bf16.gmra.mxu0 %v767
    %v806 = vpop.f32.mrf.mxu0
    %v807 = vadd.f32 %v760, %v806
    %v808 = vpop.f32.mrf.mxu0
    %v809 = vpop.f32.mrf.mxu0
    %v810 = vadd.f32 %v763, %v809
    %v811 = vpop.f32.mrf.mxu0
    %812 = vdwg.mxu0
    %813 = vrot.lane.b32.xlu0 %v275, 112
    %v814 = vpop.permute.xlu0 %813
    %815 = vrot.lane.b32.xlu0 %v275, 80
    %v816 = vpop.permute.xlu0 %815
    %v818 = vsel %vm282, %v814, 0
    %v821 = vsel %vm282, %v816, 0
    %823 = vmatprep.subr.bf16.mxu0 0
    %824 = vmatpush1.bf16.xpose.msra.mxu0 0
    %825 = vmatprep.subr.bf16.mxu0 0
    %826 = vmatpush1.bf16.xpose.msra.mxu0 0
    %827 = vmatprep.subr.bf16.mxu0 0
    %828 = vmatpush1.bf16.xpose.msra.mxu0 0
    %829 = vmatprep.subr.bf16.mxu0 0
    %830 = vmatpush1.bf16.xpose.msra.mxu0 0
    %831 = vmatprep.subr.bf16.mxu0 0
    %832 = vmatpush1.bf16.xpose.msra.mxu0 0
    %833 = vmatprep.subr.bf16.mxu0 0
    %834 = vmatpush1.bf16.xpose.msra.mxu0 0
    %835 = vmatprep.subr.bf16.mxu0 0
    %836 = vmatpush1.bf16.xpose.msra.mxu0 0
    %837 = vmatprep.subr.bf16.mxu0 0
    %838 = vmatpush1.bf16.xpose.msra.mxu0 %v821
    %839 = vmatprep.subr.bf16.mxu0 0
    %840 = vmatpush2.bf16.xpose.msra.mxu0 0
    %841 = vmatprep.subr.bf16.mxu0 0
    %842 = vmatpush2.bf16.xpose.msra.mxu0 0
    %843 = vmatprep.subr.bf16.mxu0 0
    %844 = vmatpush2.bf16.xpose.msra.mxu0 0
    %845 = vmatprep.subr.bf16.mxu0 0
    %846 = vmatpush2.bf16.xpose.msra.mxu0 0
    %847 = vmatprep.subr.bf16.mxu0 0
    %848 = vmatpush2.bf16.xpose.msra.mxu0 0
    %849 = vmatprep.subr.bf16.mxu0 0
    %850 = vmatpush2.bf16.xpose.msra.mxu0 0
    %851 = vmatprep.subr.bf16.mxu0 0
    %852 = vmatpush2.bf16.xpose.msra.mxu0 0
    %853 = vmatprep.subr.bf16.mxu0 0
    %854 = vmatpush2.bf16.xpose.msra.mxu0 0
    %855 = vmatprep.mubr.bf16.mxu0 0
    %856 = vmatmul.mubr.bf16.gmra.mxu0 %v818
    %v857 = vpop.f32.mrf.mxu0
    %v858 = vadd.f32 0.0, %v857
    %v859 = vpop.f32.mrf.mxu0
    %v860 = vpop.f32.mrf.mxu0
    %v861 = vpop.f32.mrf.mxu0
    %862 = vdwg.mxu0
    %863 = vrot.lane.b32.xlu0 %v276, 112
    %v864 = vpop.permute.xlu0 %863
    %865 = vrot.lane.b32.xlu0 %v276, 80
    %v866 = vpop.permute.xlu0 %865
    %v868 = vsel %vm282, %v864, 0
    %v871 = vsel %vm282, %v866, 0
    %873 = vmatprep.subr.bf16.mxu0 0
    %874 = vmatpush1.bf16.xpose.msra.mxu0 0
    %875 = vmatprep.subr.bf16.mxu0 0
    %876 = vmatpush1.bf16.xpose.msra.mxu0 0
    %877 = vmatprep.subr.bf16.mxu0 0
    %878 = vmatpush1.bf16.xpose.msra.mxu0 0
    %879 = vmatprep.subr.bf16.mxu0 0
    %880 = vmatpush1.bf16.xpose.msra.mxu0 0
    %881 = vmatprep.subr.bf16.mxu0 0
    %882 = vmatpush1.bf16.xpose.msra.mxu0 0
    %883 = vmatprep.subr.bf16.mxu0 0
    %884 = vmatpush1.bf16.xpose.msra.mxu0 0
    %885 = vmatprep.subr.bf16.mxu0 0
    %886 = vmatpush1.bf16.xpose.msra.mxu0 0
    %887 = vmatprep.subr.bf16.mxu0 0
    %888 = vmatpush1.bf16.xpose.msra.mxu0 %v871
    %889 = vmatprep.subr.bf16.mxu0 0
    %890 = vmatpush2.bf16.xpose.msra.mxu0 0
    %891 = vmatprep.subr.bf16.mxu0 0
    %892 = vmatpush2.bf16.xpose.msra.mxu0 0
    %893 = vmatprep.subr.bf16.mxu0 0
    %894 = vmatpush2.bf16.xpose.msra.mxu0 0
    %895 = vmatprep.subr.bf16.mxu0 0
    %896 = vmatpush2.bf16.xpose.msra.mxu0 0
    %897 = vmatprep.subr.bf16.mxu0 0
    %898 = vmatpush2.bf16.xpose.msra.mxu0 0
    %899 = vmatprep.subr.bf16.mxu0 0
    %900 = vmatpush2.bf16.xpose.msra.mxu0 0
    %901 = vmatprep.subr.bf16.mxu0 0
    %902 = vmatpush2.bf16.xpose.msra.mxu0 0
    %903 = vmatprep.subr.bf16.mxu0 0
    %904 = vmatpush2.bf16.xpose.msra.mxu0 0
    %905 = vmatprep.mubr.bf16.mxu0 0
    %906 = vmatmul.mubr.bf16.gmra.mxu0 %v868
    %v907 = vpop.f32.mrf.mxu0
    %v908 = vadd.f32 0.0, %v907
    %v909 = vpop.f32.mrf.mxu0
    %v910 = vpop.f32.mrf.mxu0
    %v911 = vpop.f32.mrf.mxu0
    %912 = vdwg.mxu0
    %v913 = vsel %vm282, %v858, -inf
    %914 = vmax.xlane.f32.xlu0 %v913
    %v915 = vpop.xlane.xlu0 %914
    %v916 = vsel %vm282, %v908, -inf
    %917 = vmax.xlane.f32.xlu0 %v916
    %v918 = vpop.xlane.xlu0 %917
    %v919 = vsub.f32 %v858, %v915
    %v920 = vsub.f32 %v908, %v918
    %v921 = vmul.f32 %v919, 1.442695
    %v922 = vpow.pop %v921
    %v923 = vmul.f32 %v920, 1.442695
    %v924 = vpow.pop %v923
    %v925 = vsel %vm282, %v922, 0.0
    %926 = vadd.xlane.f32.xlu0 %v925
    %v927 = vpop.xlane.xlu0 %926
    %v928 = vsel %vm282, %v924, 0.0
    %929 = vadd.xlane.f32.xlu0 %v928
    %v930 = vpop.xlane.xlu0 %929
    %v931 = vrcp.pop %v927
    %v932 = vrcp.pop %v930
    %v933 = vmul.f32 %v922, %v931
    %v934 = vmul.f32 %v924, %v932
    %v935 = vpack.c.bf16 %v933, %v933
    %v936 = vpack.c.bf16 %v934, %v934
    %937 = vrot.lane.b32.xlu0 %v277, 112
    %v938 = vpop.permute.xlu0 %937
    %v940 = vsel %vm282, %v935, 0
    %v943 = vsel %vm405, %v938, 0
    %945 = vmatprep.subr.bf16.mxu0 0
    %946 = vmatpush1.bf16.msra.mxu0 0
    %947 = vmatprep.subr.bf16.mxu0 0
    %948 = vmatpush1.bf16.msra.mxu0 0
    %949 = vmatprep.subr.bf16.mxu0 0
    %950 = vmatpush1.bf16.msra.mxu0 0
    %951 = vmatprep.subr.bf16.mxu0 0
    %952 = vmatpush1.bf16.msra.mxu0 0
    %953 = vmatprep.subr.bf16.mxu0 0
    %954 = vmatpush1.bf16.msra.mxu0 0
    %955 = vmatprep.subr.bf16.mxu0 0
    %956 = vmatpush1.bf16.msra.mxu0 0
    %957 = vmatprep.subr.bf16.mxu0 0
    %958 = vmatpush1.bf16.msra.mxu0 0
    %959 = vmatprep.subr.bf16.mxu0 0
    %960 = vmatpush1.bf16.msra.mxu0 %v943
    %961 = vmatprep.subr.bf16.mxu0 0
    %962 = vmatpush2.bf16.msra.mxu0 0
    %963 = vmatprep.subr.bf16.mxu0 0
    %964 = vmatpush2.bf16.msra.mxu0 0
    %965 = vmatprep.subr.bf16.mxu0 0
    %966 = vmatpush2.bf16.msra.mxu0 0
    %967 = vmatprep.subr.bf16.mxu0 0
    %968 = vmatpush2.bf16.msra.mxu0 0
    %969 = vmatprep.subr.bf16.mxu0 0
    %970 = vmatpush2.bf16.msra.mxu0 0
    %971 = vmatprep.subr.bf16.mxu0 0
    %972 = vmatpush2.bf16.msra.mxu0 0
    %973 = vmatprep.subr.bf16.mxu0 0
    %974 = vmatpush2.bf16.msra.mxu0 0
    %975 = vmatprep.subr.bf16.mxu0 0
    %976 = vmatpush2.bf16.msra.mxu0 0
    %977 = vmatprep.mubr.bf16.mxu0 0
    %978 = vmatmul.mubr.bf16.gmra.mxu0 %v940
    %v979 = vpop.f32.mrf.mxu0
    %v980 = vadd.f32 0.0, %v979
    %v981 = vpop.f32.mrf.mxu0
    %v982 = vpop.f32.mrf.mxu0
    %v983 = vpop.f32.mrf.mxu0
    %984 = vdwg.mxu0
    %985 = vrot.lane.b32.xlu0 %v278, 112
    %v986 = vpop.permute.xlu0 %985
    %v988 = vsel %vm282, %v936, 0
    %v991 = vsel %vm405, %v986, 0
    %993 = vmatprep.subr.bf16.mxu0 0
    %994 = vmatpush1.bf16.msra.mxu0 0
    %995 = vmatprep.subr.bf16.mxu0 0
    %996 = vmatpush1.bf16.msra.mxu0 0
    %997 = vmatprep.subr.bf16.mxu0 0
    %998 = vmatpush1.bf16.msra.mxu0 0
    %999 = vmatprep.subr.bf16.mxu0 0
    %1000 = vmatpush1.bf16.msra.mxu0 0
    %1001 = vmatprep.subr.bf16.mxu0 0
    %1002 = vmatpush1.bf16.msra.mxu0 0
    %1003 = vmatprep.subr.bf16.mxu0 0
    %1004 = vmatpush1.bf16.msra.mxu0 0
    %1005 = vmatprep.subr.bf16.mxu0 0
    %1006 = vmatpush1.bf16.msra.mxu0 0
    %1007 = vmatprep.subr.bf16.mxu0 0
    %1008 = vmatpush1.bf16.msra.mxu0 %v991
    %1009 = vmatprep.subr.bf16.mxu0 0
    %1010 = vmatpush2.bf16.msra.mxu0 0
    %1011 = vmatprep.subr.bf16.mxu0 0
    %1012 = vmatpush2.bf16.msra.mxu0 0
    %1013 = vmatprep.subr.bf16.mxu0 0
    %1014 = vmatpush2.bf16.msra.mxu0 0
    %1015 = vmatprep.subr.bf16.mxu0 0
    %1016 = vmatpush2.bf16.msra.mxu0 0
    %1017 = vmatprep.subr.bf16.mxu0 0
    %1018 = vmatpush2.bf16.msra.mxu0 0
    %1019 = vmatprep.subr.bf16.mxu0 0
    %1020 = vmatpush2.bf16.msra.mxu0 0
    %1021 = vmatprep.subr.bf16.mxu0 0
    %1022 = vmatpush2.bf16.msra.mxu0 0
    %1023 = vmatprep.subr.bf16.mxu0 0
    %1024 = vmatpush2.bf16.msra.mxu0 0
    %1025 = vmatprep.mubr.bf16.mxu0 0
    %1026 = vmatmul.mubr.bf16.gmra.mxu0 %v988
    %v1027 = vpop.f32.mrf.mxu0
    %v1028 = vadd.f32 0.0, %v1027
    %v1029 = vpop.f32.mrf.mxu0
    %v1030 = vpop.f32.mrf.mxu0
    %v1031 = vpop.f32.mrf.mxu0
    %1032 = vdwg.mxu0
    %v1033 = vpack.c.bf16 %v1028, %v980
    %v1035 = vsel %vm282, %v1033, 0
    %v1038 = vsel %vm405, %v125, 0
    %1040 = vmatprep.subr.bf16.mxu0 0
    %1041 = vmatpush1.bf16.msra.mxu0 0
    %1042 = vmatprep.subr.bf16.mxu0 0
    %1043 = vmatpush1.bf16.msra.mxu0 0
    %1044 = vmatprep.subr.bf16.mxu0 0
    %1045 = vmatpush1.bf16.msra.mxu0 0
    %1046 = vmatprep.subr.bf16.mxu0 0
    %1047 = vmatpush1.bf16.msra.mxu0 0
    %1048 = vmatprep.subr.bf16.mxu0 0
    %1049 = vmatpush1.bf16.msra.mxu0 0
    %1050 = vmatprep.subr.bf16.mxu0 0
    %1051 = vmatpush1.bf16.msra.mxu0 0
    %1052 = vmatprep.subr.bf16.mxu0 0
    %1053 = vmatpush1.bf16.msra.mxu0 0
    %1054 = vmatprep.subr.bf16.mxu0 0
    %1055 = vmatpush1.bf16.msra.mxu0 %v1038
    %1056 = vmatprep.subr.bf16.mxu0 0
    %1057 = vmatpush2.bf16.msra.mxu0 0
    %1058 = vmatprep.subr.bf16.mxu0 0
    %1059 = vmatpush2.bf16.msra.mxu0 0
    %1060 = vmatprep.subr.bf16.mxu0 0
    %1061 = vmatpush2.bf16.msra.mxu0 0
    %1062 = vmatprep.subr.bf16.mxu0 0
    %1063 = vmatpush2.bf16.msra.mxu0 0
    %1064 = vmatprep.subr.bf16.mxu0 0
    %1065 = vmatpush2.bf16.msra.mxu0 0
    %1066 = vmatprep.subr.bf16.mxu0 0
    %1067 = vmatpush2.bf16.msra.mxu0 0
    %1068 = vmatprep.subr.bf16.mxu0 0
    %1069 = vmatpush2.bf16.msra.mxu0 0
    %1070 = vmatprep.subr.bf16.mxu0 0
    %1071 = vmatpush2.bf16.msra.mxu0 0
    %1072 = vmatprep.mubr.bf16.mxu0 0
    %1073 = vmatmul.mubr.bf16.gmra.mxu0 %v1035
    %v1074 = vpop.f32.mrf.mxu0
    %v1075 = vadd.f32 0.0, %v1074
    %v1076 = vpop.f32.mrf.mxu0
    %v1077 = vpop.f32.mrf.mxu0
    %v1078 = vadd.f32 0.0, %v1077
    %v1079 = vpop.f32.mrf.mxu0
    %1080 = vdwg.mxu0
    %v1081 = vadd.f32 %v807, %v1075
    %v1082 = vadd.f32 %v810, %v1078
    %1083 = vrot.lane.b32.xlu0 %v275, 104
    %v1084 = vpop.permute.xlu0 %1083
    %1085 = vrot.lane.b32.xlu0 %v275, 72
    %v1086 = vpop.permute.xlu0 %1085
    %v1088 = vsel %vm282, %v1084, 0
    %v1091 = vsel %vm282, %v1086, 0
    %1093 = vmatprep.subr.bf16.mxu0 0
    %1094 = vmatpush1.bf16.xpose.msra.mxu0 0
    %1095 = vmatprep.subr.bf16.mxu0 0
    %1096 = vmatpush1.bf16.xpose.msra.mxu0 0
    %1097 = vmatprep.subr.bf16.mxu0 0
    %1098 = vmatpush1.bf16.xpose.msra.mxu0 0
    %1099 = vmatprep.subr.bf16.mxu0 0
    %1100 = vmatpush1.bf16.xpose.msra.mxu0 0
    %1101 = vmatprep.subr.bf16.mxu0 0
    %1102 = vmatpush1.bf16.xpose.msra.mxu0 0
    %1103 = vmatprep.subr.bf16.mxu0 0
    %1104 = vmatpush1.bf16.xpose.msra.mxu0 0
    %1105 = vmatprep.subr.bf16.mxu0 0
    %1106 = vmatpush1.bf16.xpose.msra.mxu0 0
    %1107 = vmatprep.subr.bf16.mxu0 0
    %1108 = vmatpush1.bf16.xpose.msra.mxu0 %v1091
    %1109 = vmatprep.subr.bf16.mxu0 0
    %1110 = vmatpush2.bf16.xpose.msra.mxu0 0
    %1111 = vmatprep.subr.bf16.mxu0 0
    %1112 = vmatpush2.bf16.xpose.msra.mxu0 0
    %1113 = vmatprep.subr.bf16.mxu0 0
    %1114 = vmatpush2.bf16.xpose.msra.mxu0 0
    %1115 = vmatprep.subr.bf16.mxu0 0
    %1116 = vmatpush2.bf16.xpose.msra.mxu0 0
    %1117 = vmatprep.subr.bf16.mxu0 0
    %1118 = vmatpush2.bf16.xpose.msra.mxu0 0
    %1119 = vmatprep.subr.bf16.mxu0 0
    %1120 = vmatpush2.bf16.xpose.msra.mxu0 0
    %1121 = vmatprep.subr.bf16.mxu0 0
    %1122 = vmatpush2.bf16.xpose.msra.mxu0 0
    %1123 = vmatprep.subr.bf16.mxu0 0
    %1124 = vmatpush2.bf16.xpose.msra.mxu0 0
    %1125 = vmatprep.mubr.bf16.mxu0 0
    %1126 = vmatmul.mubr.bf16.gmra.mxu0 %v1088
    %v1127 = vpop.f32.mrf.mxu0
    %v1128 = vadd.f32 0.0, %v1127
    %v1129 = vpop.f32.mrf.mxu0
    %v1130 = vpop.f32.mrf.mxu0
    %v1131 = vpop.f32.mrf.mxu0
    %1132 = vdwg.mxu0
    %1133 = vrot.lane.b32.xlu0 %v276, 104
    %v1134 = vpop.permute.xlu0 %1133
    %1135 = vrot.lane.b32.xlu0 %v276, 72
    %v1136 = vpop.permute.xlu0 %1135
    %v1138 = vsel %vm282, %v1134, 0
    %v1141 = vsel %vm282, %v1136, 0
    %1143 = vmatprep.subr.bf16.mxu0 0
    %1144 = vmatpush1.bf16.xpose.msra.mxu0 0
    %1145 = vmatprep.subr.bf16.mxu0 0
    %1146 = vmatpush1.bf16.xpose.msra.mxu0 0
    %1147 = vmatprep.subr.bf16.mxu0 0
    %1148 = vmatpush1.bf16.xpose.msra.mxu0 0
    %1149 = vmatprep.subr.bf16.mxu0 0
    %1150 = vmatpush1.bf16.xpose.msra.mxu0 0
    %1151 = vmatprep.subr.bf16.mxu0 0
    %1152 = vmatpush1.bf16.xpose.msra.mxu0 0
    %1153 = vmatprep.subr.bf16.mxu0 0
    %1154 = vmatpush1.bf16.xpose.msra.mxu0 0
    %1155 = vmatprep.subr.bf16.mxu0 0
    %1156 = vmatpush1.bf16.xpose.msra.mxu0 0
    %1157 = vmatprep.subr.bf16.mxu0 0
    %1158 = vmatpush1.bf16.xpose.msra.mxu0 %v1141
    %1159 = vmatprep.subr.bf16.mxu0 0
    %1160 = vmatpush2.bf16.xpose.msra.mxu0 0
    %1161 = vmatprep.subr.bf16.mxu0 0
    %1162 = vmatpush2.bf16.xpose.msra.mxu0 0
    %1163 = vmatprep.subr.bf16.mxu0 0
    %1164 = vmatpush2.bf16.xpose.msra.mxu0 0
    %1165 = vmatprep.subr.bf16.mxu0 0
    %1166 = vmatpush2.bf16.xpose.msra.mxu0 0
    %1167 = vmatprep.subr.bf16.mxu0 0
    %1168 = vmatpush2.bf16.xpose.msra.mxu0 0
    %1169 = vmatprep.subr.bf16.mxu0 0
    %1170 = vmatpush2.bf16.xpose.msra.mxu0 0
    %1171 = vmatprep.subr.bf16.mxu0 0
    %1172 = vmatpush2.bf16.xpose.msra.mxu0 0
    %1173 = vmatprep.subr.bf16.mxu0 0
    %1174 = vmatpush2.bf16.xpose.msra.mxu0 0
    %1175 = vmatprep.mubr.bf16.mxu0 0
    %1176 = vmatmul.mubr.bf16.gmra.mxu0 %v1138
    %v1177 = vpop.f32.mrf.mxu0
    %v1178 = vadd.f32 0.0, %v1177
    %v1179 = vpop.f32.mrf.mxu0
    %v1180 = vpop.f32.mrf.mxu0
    %v1181 = vpop.f32.mrf.mxu0
    %1182 = vdwg.mxu0
    %v1183 = vsel %vm282, %v1128, -inf
    %1184 = vmax.xlane.f32.xlu0 %v1183
    %v1185 = vpop.xlane.xlu0 %1184
    %v1186 = vsel %vm282, %v1178, -inf
    %1187 = vmax.xlane.f32.xlu0 %v1186
    %v1188 = vpop.xlane.xlu0 %1187
    %v1189 = vsub.f32 %v1128, %v1185
    %v1190 = vsub.f32 %v1178, %v1188
    %v1191 = vmul.f32 %v1189, 1.442695
    %v1192 = vpow.pop %v1191
    %v1193 = vmul.f32 %v1190, 1.442695
    %v1194 = vpow.pop %v1193
    %v1195 = vsel %vm282, %v1192, 0.0
    %1196 = vadd.xlane.f32.xlu0 %v1195
    %v1197 = vpop.xlane.xlu0 %1196
    %v1198 = vsel %vm282, %v1194, 0.0
    %1199 = vadd.xlane.f32.xlu0 %v1198
    %v1200 = vpop.xlane.xlu0 %1199
    %v1201 = vrcp.pop %v1197
    %v1202 = vrcp.pop %v1200
    %v1203 = vmul.f32 %v1192, %v1201
    %v1204 = vmul.f32 %v1194, %v1202
    %v1205 = vpack.c.bf16 %v1203, %v1203
    %v1206 = vpack.c.bf16 %v1204, %v1204
    %1207 = vrot.lane.b32.xlu0 %v277, 104
    %v1208 = vpop.permute.xlu0 %1207
    %v1210 = vsel %vm282, %v1205, 0
    %v1213 = vsel %vm405, %v1208, 0
    %1215 = vmatprep.subr.bf16.mxu0 0
    %1216 = vmatpush1.bf16.msra.mxu0 0
    %1217 = vmatprep.subr.bf16.mxu0 0
    %1218 = vmatpush1.bf16.msra.mxu0 0
    %1219 = vmatprep.subr.bf16.mxu0 0
    %1220 = vmatpush1.bf16.msra.mxu0 0
    %1221 = vmatprep.subr.bf16.mxu0 0
    %1222 = vmatpush1.bf16.msra.mxu0 0
    %1223 = vmatprep.subr.bf16.mxu0 0
    %1224 = vmatpush1.bf16.msra.mxu0 0
    %1225 = vmatprep.subr.bf16.mxu0 0
    %1226 = vmatpush1.bf16.msra.mxu0 0
    %1227 = vmatprep.subr.bf16.mxu0 0
    %1228 = vmatpush1.bf16.msra.mxu0 0
    %1229 = vmatprep.subr.bf16.mxu0 0
    %1230 = vmatpush1.bf16.msra.mxu0 %v1213
    %1231 = vmatprep.subr.bf16.mxu0 0
    %1232 = vmatpush2.bf16.msra.mxu0 0
    %1233 = vmatprep.subr.bf16.mxu0 0
    %1234 = vmatpush2.bf16.msra.mxu0 0
    %1235 = vmatprep.subr.bf16.mxu0 0
    %1236 = vmatpush2.bf16.msra.mxu0 0
    %1237 = vmatprep.subr.bf16.mxu0 0
    %1238 = vmatpush2.bf16.msra.mxu0 0
    %1239 = vmatprep.subr.bf16.mxu0 0
    %1240 = vmatpush2.bf16.msra.mxu0 0
    %1241 = vmatprep.subr.bf16.mxu0 0
    %1242 = vmatpush2.bf16.msra.mxu0 0
    %1243 = vmatprep.subr.bf16.mxu0 0
    %1244 = vmatpush2.bf16.msra.mxu0 0
    %1245 = vmatprep.subr.bf16.mxu0 0
    %1246 = vmatpush2.bf16.msra.mxu0 0
    %1247 = vmatprep.mubr.bf16.mxu0 0
    %1248 = vmatmul.mubr.bf16.gmra.mxu0 %v1210
    %v1249 = vpop.f32.mrf.mxu0
    %v1250 = vadd.f32 0.0, %v1249
    %v1251 = vpop.f32.mrf.mxu0
    %v1252 = vpop.f32.mrf.mxu0
    %v1253 = vpop.f32.mrf.mxu0
    %1254 = vdwg.mxu0
    %1255 = vrot.lane.b32.xlu0 %v278, 104
    %v1256 = vpop.permute.xlu0 %1255
    %v1258 = vsel %vm282, %v1206, 0
    %v1261 = vsel %vm405, %v1256, 0
    %1263 = vmatprep.subr.bf16.mxu0 0
    %1264 = vmatpush1.bf16.msra.mxu0 0
    %1265 = vmatprep.subr.bf16.mxu0 0
    %1266 = vmatpush1.bf16.msra.mxu0 0
    %1267 = vmatprep.subr.bf16.mxu0 0
    %1268 = vmatpush1.bf16.msra.mxu0 0
    %1269 = vmatprep.subr.bf16.mxu0 0
    %1270 = vmatpush1.bf16.msra.mxu0 0
    %1271 = vmatprep.subr.bf16.mxu0 0
    %1272 = vmatpush1.bf16.msra.mxu0 0
    %1273 = vmatprep.subr.bf16.mxu0 0
    %1274 = vmatpush1.bf16.msra.mxu0 0
    %1275 = vmatprep.subr.bf16.mxu0 0
    %1276 = vmatpush1.bf16.msra.mxu0 0
    %1277 = vmatprep.subr.bf16.mxu0 0
    %1278 = vmatpush1.bf16.msra.mxu0 %v1261
    %1279 = vmatprep.subr.bf16.mxu0 0
    %1280 = vmatpush2.bf16.msra.mxu0 0
    %1281 = vmatprep.subr.bf16.mxu0 0
    %1282 = vmatpush2.bf16.msra.mxu0 0
    %1283 = vmatprep.subr.bf16.mxu0 0
    %1284 = vmatpush2.bf16.msra.mxu0 0
    %1285 = vmatprep.subr.bf16.mxu0 0
    %1286 = vmatpush2.bf16.msra.mxu0 0
    %1287 = vmatprep.subr.bf16.mxu0 0
    %1288 = vmatpush2.bf16.msra.mxu0 0
    %1289 = vmatprep.subr.bf16.mxu0 0
    %1290 = vmatpush2.bf16.msra.mxu0 0
    %1291 = vmatprep.subr.bf16.mxu0 0
    %1292 = vmatpush2.bf16.msra.mxu0 0
    %1293 = vmatprep.subr.bf16.mxu0 0
    %1294 = vmatpush2.bf16.msra.mxu0 0
    %1295 = vmatprep.mubr.bf16.mxu0 0
    %1296 = vmatmul.mubr.bf16.gmra.mxu0 %v1258
    %v1297 = vpop.f32.mrf.mxu0
    %v1298 = vadd.f32 0.0, %v1297
    %v1299 = vpop.f32.mrf.mxu0
    %v1300 = vpop.f32.mrf.mxu0
    %v1301 = vpop.f32.mrf.mxu0
    %1302 = vdwg.mxu0
    %v1303 = vpack.c.bf16 %v1298, %v1250
    %v1305 = vsel %vm282, %v1303, 0
    %v1308 = vsel %vm405, %v126, 0
    %1310 = vmatprep.subr.bf16.mxu0 0
    %1311 = vmatpush1.bf16.msra.mxu0 0
    %1312 = vmatprep.subr.bf16.mxu0 0
    %1313 = vmatpush1.bf16.msra.mxu0 0
    %1314 = vmatprep.subr.bf16.mxu0 0
    %1315 = vmatpush1.bf16.msra.mxu0 0
    %1316 = vmatprep.subr.bf16.mxu0 0
    %1317 = vmatpush1.bf16.msra.mxu0 0
    %1318 = vmatprep.subr.bf16.mxu0 0
    %1319 = vmatpush1.bf16.msra.mxu0 0
    %1320 = vmatprep.subr.bf16.mxu0 0
    %1321 = vmatpush1.bf16.msra.mxu0 0
    %1322 = vmatprep.subr.bf16.mxu0 0
    %1323 = vmatpush1.bf16.msra.mxu0 0
    %1324 = vmatprep.subr.bf16.mxu0 0
    %1325 = vmatpush1.bf16.msra.mxu0 %v1308
    %1326 = vmatprep.subr.bf16.mxu0 0
    %1327 = vmatpush2.bf16.msra.mxu0 0
    %1328 = vmatprep.subr.bf16.mxu0 0
    %1329 = vmatpush2.bf16.msra.mxu0 0
    %1330 = vmatprep.subr.bf16.mxu0 0
    %1331 = vmatpush2.bf16.msra.mxu0 0
    %1332 = vmatprep.subr.bf16.mxu0 0
    %1333 = vmatpush2.bf16.msra.mxu0 0
    %1334 = vmatprep.subr.bf16.mxu0 0
    %1335 = vmatpush2.bf16.msra.mxu0 0
    %1336 = vmatprep.subr.bf16.mxu0 0
    %1337 = vmatpush2.bf16.msra.mxu0 0
    %1338 = vmatprep.subr.bf16.mxu0 0
    %1339 = vmatpush2.bf16.msra.mxu0 0
    %1340 = vmatprep.subr.bf16.mxu0 0
    %1341 = vmatpush2.bf16.msra.mxu0 0
    %1342 = vmatprep.mubr.bf16.mxu0 0
    %1343 = vmatmul.mubr.bf16.gmra.mxu0 %v1305
    %v1344 = vpop.f32.mrf.mxu0
    %v1345 = vadd.f32 0.0, %v1344
    %v1346 = vpop.f32.mrf.mxu0
    %v1347 = vpop.f32.mrf.mxu0
    %v1348 = vadd.f32 0.0, %v1347
    %v1349 = vpop.f32.mrf.mxu0
    %1350 = vdwg.mxu0
    %v1351 = vadd.f32 %v1081, %v1345
    %v1352 = vadd.f32 %v1082, %v1348
    %v1354 = vlaneseq
    %v1355 = vshrl.u32 %v1354, 7
    %v1356 = vsub.s32 0, %v1355
    %v1357 = vrot.slane %v127, %v1356
    %v1359 = vadd.f32 %v1351, %v1357
    %v1360 = vadd.f32 %v1352, %v1357
    %v1361 = vadd.f32 %v109, %v1359
    %v1362 = vadd.f32 %v110, %v1360
    %v1363 = vsel %vm167, %v1361, 0.0
    %1364 = vadd.xlane.f32.xlu0 %v1363
    %v1365 = vpop.xlane.xlu0 %1364
    %v1366 = vsel %vm167, %v1362, 0.0
    %1367 = vadd.xlane.f32.xlu0 %v1366
    %v1368 = vpop.xlane.xlu0 %1367
    %v1369 = vrcp.pop 32.0
    %v1370 = vmul.f32 %v1365, %v1369
    %v1371 = vmul.f32 %v1368, %v1369
    %v1372 = vsub.f32 %v1361, %v1370
    %v1373 = vsub.f32 %v1362, %v1371
    %v1374 = vmul.f32 %v1372, %v1372
    %v1375 = vmul.f32 %v1373, %v1373
    %v1376 = vsel %vm167, %v1374, 0.0
    %1377 = vadd.xlane.f32.xlu0 %v1376
    %v1378 = vpop.xlane.xlu0 %1377
    %v1379 = vsel %vm167, %v1375, 0.0
    %1380 = vadd.xlane.f32.xlu0 %v1379
    %v1381 = vpop.xlane.xlu0 %1380
    %v1382 = vmul.f32 %v1378, %v1369
    %v1383 = vmul.f32 %v1381, %v1369
    %v1384 = vadd.f32 %v1382, 1e-05
    %v1385 = vadd.f32 %v1383, 1e-05
    %v1386 = vrsqrt.pop %v1384
    %v1387 = vrsqrt.pop %v1385
    %v1388 = vmul.f32 %v1372, %v1386
    %v1389 = vmul.f32 %v1373, %v1387
    %v1391 = vlaneseq
    %v1392 = vshrl.u32 %v1391, 7
    %v1393 = vsub.s32 0, %v1392
    %v1394 = vrot.slane %v142, %v1393
    %v1396 = vmul.f32 %v1388, %v1394
    %v1397 = vmul.f32 %v1389, %v1394
    %v1399 = vlaneseq
    %v1400 = vshrl.u32 %v1399, 7
    %v1401 = vsub.s32 0, %v1400
    %v1402 = vrot.slane %v143, %v1401
    %v1404 = vadd.f32 %v1396, %v1402
    %v1405 = vadd.f32 %v1397, %v1402
    %v1406 = vpack.c.bf16 %v1405, %v1404
    %v1408 = vlaneseq
    %v1409 = vshrl.u32 %v1408, 7
    %v1410 = vsub.s32 0, %v1409
    %v1411 = vrot.slane %v132, %v1410
    %v1417 = vunpack.c.l.b16 %v128
    %v1418 = vunpack.c.l.b16 %v129
    %v1419 = vunpack.c.l.b16 %v130
    %v1420 = vunpack.c.l.b16 %v131
    %v1421 = vpack.c.b16 %v1418, %v1417
    %v1422 = vpack.c.b16 %v1420, %v1419
    %v1426 = vsel %vm167, %v1406, 0
    %1428 = vmatprep.subr.bf16.mxu0 0
    %1429 = vmatpush1.bf16.msra.mxu0 0
    %1430 = vmatprep.subr.bf16.mxu0 0
    %1431 = vmatpush1.bf16.msra.mxu0 0
    %1432 = vmatprep.subr.bf16.mxu0 0
    %1433 = vmatpush1.bf16.msra.mxu0 0
    %1434 = vmatprep.subr.bf16.mxu0 0
    %1435 = vmatpush1.bf16.msra.mxu0 0
    %1436 = vmatprep.subr.bf16.mxu0 0
    %1437 = vmatpush1.bf16.msra.mxu0 0
    %1438 = vmatprep.subr.bf16.mxu0 0
    %1439 = vmatpush1.bf16.msra.mxu0 0
    %1440 = vmatprep.subr.bf16.mxu0 0
    %1441 = vmatpush1.bf16.msra.mxu0 %v1422
    %1442 = vmatprep.subr.bf16.mxu0 0
    %1443 = vmatpush1.bf16.msra.mxu0 %v1421
    %1444 = vmatprep.subr.bf16.mxu0 0
    %1445 = vmatpush2.bf16.msra.mxu0 0
    %1446 = vmatprep.subr.bf16.mxu0 0
    %1447 = vmatpush2.bf16.msra.mxu0 0
    %1448 = vmatprep.subr.bf16.mxu0 0
    %1449 = vmatpush2.bf16.msra.mxu0 0
    %1450 = vmatprep.subr.bf16.mxu0 0
    %1451 = vmatpush2.bf16.msra.mxu0 0
    %1452 = vmatprep.subr.bf16.mxu0 0
    %1453 = vmatpush2.bf16.msra.mxu0 0
    %1454 = vmatprep.subr.bf16.mxu0 0
    %1455 = vmatpush2.bf16.msra.mxu0 0
    %1456 = vmatprep.subr.bf16.mxu0 0
    %1457 = vmatpush2.bf16.msra.mxu0 0
    %1458 = vmatprep.subr.bf16.mxu0 0
    %1459 = vmatpush2.bf16.msra.mxu0 0
    %1460 = vmatprep.mubr.bf16.mxu0 0
    %1461 = vmatmul.mubr.bf16.gmra.mxu0 %v1426
    %v1462 = vpop.f32.mrf.mxu0
    %v1463 = vadd.f32 %v1411, %v1462
    %v1464 = vpop.f32.mrf.mxu0
    %v1465 = vpop.f32.mrf.mxu0
    %v1466 = vadd.f32 %v1411, %v1465
    %v1467 = vpop.f32.mrf.mxu0
    %1468 = vdwg.mxu0
    %v1469 = vmax.f32 %v1463, 0.0
    %v1470 = vmax.f32 %v1466, 0.0
    %v1471 = vpack.c.bf16 %v1470, %v1469
    %v1473 = vlaneseq
    %v1474 = vshrl.u32 %v1473, 7
    %v1475 = vsub.s32 0, %v1474
    %v1476 = vrot.slane %v141, %v1475
    %v1486 = vunpack.c.l.b16 %v133
    %v1487 = vunpack.c.l.b16 %v134
    %v1488 = vunpack.c.l.b16 %v135
    %v1489 = vunpack.c.l.b16 %v136
    %v1490 = vunpack.c.l.b16 %v137
    %v1491 = vunpack.c.l.b16 %v138
    %v1492 = vunpack.c.l.b16 %v139
    %v1493 = vunpack.c.l.b16 %v140
    %v1494 = vpack.c.b16 %v1487, %v1486
    %v1495 = vpack.c.b16 %v1489, %v1488
    %v1496 = vpack.c.b16 %v1491, %v1490
    %v1497 = vpack.c.b16 %v1493, %v1492
    %vm1502 = vcmask 523264
    %v1504 = vsel %vm1502, %v1471, 0
    %1506 = vmatprep.subr.bf16.mxu0 0
    %1507 = vmatpush1.bf16.msra.mxu0 0
    %1508 = vmatprep.subr.bf16.mxu0 0
    %1509 = vmatpush1.bf16.msra.mxu0 0
    %1510 = vmatprep.subr.bf16.mxu0 0
    %1511 = vmatpush1.bf16.msra.mxu0 0
    %1512 = vmatprep.subr.bf16.mxu0 0
    %1513 = vmatpush1.bf16.msra.mxu0 0
    %1514 = vmatprep.subr.bf16.mxu0 0
    %1515 = vmatpush1.bf16.msra.mxu0 %v1497
    %1516 = vmatprep.subr.bf16.mxu0 0
    %1517 = vmatpush1.bf16.msra.mxu0 %v1496
    %1518 = vmatprep.subr.bf16.mxu0 0
    %1519 = vmatpush1.bf16.msra.mxu0 %v1495
    %1520 = vmatprep.subr.bf16.mxu0 0
    %1521 = vmatpush1.bf16.msra.mxu0 %v1494
    %1522 = vmatprep.subr.bf16.mxu0 0
    %1523 = vmatpush2.bf16.msra.mxu0 0
    %1524 = vmatprep.subr.bf16.mxu0 0
    %1525 = vmatpush2.bf16.msra.mxu0 0
    %1526 = vmatprep.subr.bf16.mxu0 0
    %1527 = vmatpush2.bf16.msra.mxu0 0
    %1528 = vmatprep.subr.bf16.mxu0 0
    %1529 = vmatpush2.bf16.msra.mxu0 0
    %1530 = vmatprep.subr.bf16.mxu0 0
    %1531 = vmatpush2.bf16.msra.mxu0 0
    %1532 = vmatprep.subr.bf16.mxu0 0
    %1533 = vmatpush2.bf16.msra.mxu0 0
    %1534 = vmatprep.subr.bf16.mxu0 0
    %1535 = vmatpush2.bf16.msra.mxu0 0
    %1536 = vmatprep.subr.bf16.mxu0 0
    %1537 = vmatpush2.bf16.msra.mxu0 0
    %1538 = vmatprep.mubr.bf16.mxu0 0
    %1539 = vmatmul.mubr.bf16.gmra.mxu0 %v1504
    %v1540 = vpop.f32.mrf.mxu0
    %v1541 = vadd.f32 %v1476, %v1540
    %v1542 = vpop.f32.mrf.mxu0
    %v1543 = vpop.f32.mrf.mxu0
    %v1544 = vadd.f32 %v1476, %v1543
    %v1545 = vpop.f32.mrf.mxu0
    %1546 = vdwg.mxu0
    %v1547 = vadd.f32 %v1404, %v1541
    %v1548 = vadd.f32 %v1405, %v1544
    %v1549 = vsel %vm167, %v1547, 0.0
    %1550 = vadd.xlane.f32.xlu0 %v1549
    %v1551 = vpop.xlane.xlu0 %1550
    %v1552 = vsel %vm167, %v1548, 0.0
    %1553 = vadd.xlane.f32.xlu0 %v1552
    %v1554 = vpop.xlane.xlu0 %1553
    %v1555 = vmul.f32 %v1551, %v1369
    %v1556 = vmul.f32 %v1554, %v1369
    %v1557 = vsub.f32 %v1547, %v1555
    %v1558 = vsub.f32 %v1548, %v1556
    %v1559 = vmul.f32 %v1557, %v1557
    %v1560 = vmul.f32 %v1558, %v1558
    %v1561 = vsel %vm167, %v1559, 0.0
    %1562 = vadd.xlane.f32.xlu0 %v1561
    %v1563 = vpop.xlane.xlu0 %1562
    %v1564 = vsel %vm167, %v1560, 0.0
    %1565 = vadd.xlane.f32.xlu0 %v1564
    %v1566 = vpop.xlane.xlu0 %1565
    %v1567 = vmul.f32 %v1563, %v1369
    %v1568 = vmul.f32 %v1566, %v1369
    %v1569 = vadd.f32 %v1567, 1e-05
    %v1570 = vadd.f32 %v1568, 1e-05
    %v1571 = vrsqrt.pop %v1569
    %v1572 = vrsqrt.pop %v1570
    %v1573 = vmul.f32 %v1557, %v1571
    %v1574 = vmul.f32 %v1558, %v1572
    %v1576 = vlaneseq
    %v1577 = vshrl.u32 %v1576, 7
    %v1578 = vsub.s32 0, %v1577
    %v1579 = vrot.slane %v144, %v1578
    %v1581 = vmul.f32 %v1573, %v1579
    %v1582 = vmul.f32 %v1574, %v1579
    %v1584 = vlaneseq
    %v1585 = vshrl.u32 %v1584, 7
    %v1586 = vsub.s32 0, %v1585
    %v1587 = vrot.slane %v145, %v1586
    %v1589 = vadd.f32 %v1581, %v1587
    %v1590 = vadd.f32 %v1582, %v1587
    %s1591 = scalar_lea.vmem [#allocation2], 16
    %v1592 = vld [vmem:[%s1591] sm:$0xf]
    %v1593 = vld [vmem:[%s1591 + $0x4] sm:$0xf]
    %v1594 = vld [vmem:[%s1591 + $0x8] sm:$0xf]
    %v1595 = vld [vmem:[%s1591 + $0xc] sm:$0xf]
    %s1596 = scalar_lea.vmem %s3, 1
    %v1597 = vld [vmem:[%s1596] sm:$0x1]
    %s1598 = scalar_lea.vmem [#allocation4], 16
    %v1599 = vld [vmem:[%s1598] sm:$0xf]
    %v1600 = vld [vmem:[%s1598 + $0x4] sm:$0xf]
    %v1601 = vld [vmem:[%s1598 + $0x8] sm:$0xf]
    %v1602 = vld [vmem:[%s1598 + $0xc] sm:$0xf]
    %s1603 = scalar_lea.vmem %s5, 1
    %v1604 = vld [vmem:[%s1603] sm:$0x1]
    %s1605 = scalar_lea.vmem [#allocation6], 16
    %v1606 = vld [vmem:[%s1605] sm:$0xf]
    %v1607 = vld [vmem:[%s1605 + $0x4] sm:$0xf]
    %v1608 = vld [vmem:[%s1605 + $0x8] sm:$0xf]
    %v1609 = vld [vmem:[%s1605 + $0xc] sm:$0xf]
    %s1610 = scalar_lea.vmem %s7, 1
    %v1611 = vld [vmem:[%s1610] sm:$0x1]
    %s1612 = scalar_lea.vmem [#allocation7], 16
    %v1613 = vld [vmem:[%s1612] sm:$0xf]
    %v1614 = vld [vmem:[%s1612 + $0x4] sm:$0xf]
    %v1615 = vld [vmem:[%s1612 + $0x8] sm:$0xf]
    %v1616 = vld [vmem:[%s1612 + $0xc] sm:$0xf]
    %s1617 = scalar_lea.vmem %s9, 1
    %v1618 = vld [vmem:[%s1617] sm:$0x1]
    %s1619 = scalar_lea.vmem %s10, 32
    %v1620 = vld [vmem:[%s1619] sm:$0xf]
    %v1621 = vld [vmem:[%s1619 + $0x4] sm:$0xf]
    %v1622 = vld [vmem:[%s1619 + $0x8] sm:$0xf]
    %v1623 = vld [vmem:[%s1619 + $0xc] sm:$0xf]
    %v1624 = vld [vmem:[%s1619 + $0x10] sm:$0xf]
    %v1625 = vld [vmem:[%s1619 + $0x14] sm:$0xf]
    %v1626 = vld [vmem:[%s1619 + $0x18] sm:$0xf]
    %v1627 = vld [vmem:[%s1619 + $0x1c] sm:$0xf]
    %s1628 = scalar_lea.vmem %s11, 1
    %v1629 = vld [vmem:[%s1628] sm:$0x1]
    %s1630 = scalar_lea.vmem %s12, 1
    %v1631 = vld [vmem:[%s1630] sm:$0x1]
    %s1632 = scalar_lea.vmem %s13, 1
    %v1633 = vld [vmem:[%s1632] sm:$0x1]
    %s1634 = scalar_lea.vmem %s14, 1
    %v1635 = vld [vmem:[%s1634] sm:$0x1]
    %s1636 = scalar_lea.vmem %s15, 1
    %v1637 = vld [vmem:[%s1636] sm:$0x1]
    %v1638 = vadd.f32 %v1589, %v111
    %v1639 = vadd.f32 %v1590, %v112
    %v1640 = vpack.c.bf16 %v1639, %v1638
    %v1642 = vlaneseq
    %v1643 = vshrl.u32 %v1642, 7
    %v1644 = vsub.s32 0, %v1643
    %v1645 = vrot.slane %v1597, %v1644
    %v1651 = vunpack.c.l.b16 %v1592
    %v1652 = vunpack.c.l.b16 %v1593
    %v1653 = vunpack.c.l.b16 %v1594
    %v1654 = vunpack.c.l.b16 %v1595
    %v1655 = vpack.c.b16 %v1652, %v1651
    %v1656 = vpack.c.b16 %v1654, %v1653
    %v1660 = vsel %vm167, %v1640, 0
    %1662 = vmatprep.subr.bf16.mxu0 0
    %1663 = vmatpush1.bf16.msra.mxu0 0
    %1664 = vmatprep.subr.bf16.mxu0 0
    %1665 = vmatpush1.bf16.msra.mxu0 0
    %1666 = vmatprep.subr.bf16.mxu0 0
    %1667 = vmatpush1.bf16.msra.mxu0 0
    %1668 = vmatprep.subr.bf16.mxu0 0
    %1669 = vmatpush1.bf16.msra.mxu0 0
    %1670 = vmatprep.subr.bf16.mxu0 0
    %1671 = vmatpush1.bf16.msra.mxu0 0
    %1672 = vmatprep.subr.bf16.mxu0 0
    %1673 = vmatpush1.bf16.msra.mxu0 0
    %1674 = vmatprep.subr.bf16.mxu0 0
    %1675 = vmatpush1.bf16.msra.mxu0 %v1656
    %1676 = vmatprep.subr.bf16.mxu0 0
    %1677 = vmatpush1.bf16.msra.mxu0 %v1655
    %1678 = vmatprep.subr.bf16.mxu0 0
    %1679 = vmatpush2.bf16.msra.mxu0 0
    %1680 = vmatprep.subr.bf16.mxu0 0
    %1681 = vmatpush2.bf16.msra.mxu0 0
    %1682 = vmatprep.subr.bf16.mxu0 0
    %1683 = vmatpush2.bf16.msra.mxu0 0
    %1684 = vmatprep.subr.bf16.mxu0 0
    %1685 = vmatpush2.bf16.msra.mxu0 0
    %1686 = vmatprep.subr.bf16.mxu0 0
    %1687 = vmatpush2.bf16.msra.mxu0 0
    %1688 = vmatprep.subr.bf16.mxu0 0
    %1689 = vmatpush2.bf16.msra.mxu0 0
    %1690 = vmatprep.subr.bf16.mxu0 0
    %1691 = vmatpush2.bf16.msra.mxu0 0
    %1692 = vmatprep.subr.bf16.mxu0 0
    %1693 = vmatpush2.bf16.msra.mxu0 0
    %1694 = vmatprep.mubr.bf16.mxu0 0
    %1695 = vmatmul.mubr.bf16.gmra.mxu0 %v1660
    %v1696 = vpop.f32.mrf.mxu0
    %v1697 = vadd.f32 %v1645, %v1696
    %v1698 = vpop.f32.mrf.mxu0
    %v1699 = vpop.f32.mrf.mxu0
    %v1700 = vadd.f32 %v1645, %v1699
    %v1701 = vpop.f32.mrf.mxu0
    %1702 = vdwg.mxu0
    %v1703 = vpack.c.bf16 %v1590, %v1589
    %v1705 = vlaneseq
    %v1706 = vshrl.u32 %v1705, 7
    %v1707 = vsub.s32 0, %v1706
    %v1708 = vrot.slane %v1604, %v1707
    %v1714 = vunpack.c.l.b16 %v1599
    %v1715 = vunpack.c.l.b16 %v1600
    %v1716 = vunpack.c.l.b16 %v1601
    %v1717 = vunpack.c.l.b16 %v1602
    %v1718 = vpack.c.b16 %v1715, %v1714
    %v1719 = vpack.c.b16 %v1717, %v1716
    %v1723 = vsel %vm167, %v1703, 0
    %1725 = vmatprep.subr.bf16.mxu0 0
    %1726 = vmatpush1.bf16.msra.mxu0 0
    %1727 = vmatprep.subr.bf16.mxu0 0
    %1728 = vmatpush1.bf16.msra.mxu0 0
    %1729 = vmatprep.subr.bf16.mxu0 0
    %1730 = vmatpush1.bf16.msra.mxu0 0
    %1731 = vmatprep.subr.bf16.mxu0 0
    %1732 = vmatpush1.bf16.msra.mxu0 0
    %1733 = vmatprep.subr.bf16.mxu0 0
    %1734 = vmatpush1.bf16.msra.mxu0 0
    %1735 = vmatprep.subr.bf16.mxu0 0
    %1736 = vmatpush1.bf16.msra.mxu0 0
    %1737 = vmatprep.subr.bf16.mxu0 0
    %1738 = vmatpush1.bf16.msra.mxu0 %v1719
    %1739 = vmatprep.subr.bf16.mxu0 0
    %1740 = vmatpush1.bf16.msra.mxu0 %v1718
    %1741 = vmatprep.subr.bf16.mxu0 0
    %1742 = vmatpush2.bf16.msra.mxu0 0
    %1743 = vmatprep.subr.bf16.mxu0 0
    %1744 = vmatpush2.bf16.msra.mxu0 0
    %1745 = vmatprep.subr.bf16.mxu0 0
    %1746 = vmatpush2.bf16.msra.mxu0 0
    %1747 = vmatprep.subr.bf16.mxu0 0
    %1748 = vmatpush2.bf16.msra.mxu0 0
    %1749 = vmatprep.subr.bf16.mxu0 0
    %1750 = vmatpush2.bf16.msra.mxu0 0
    %1751 = vmatprep.subr.bf16.mxu0 0
    %1752 = vmatpush2.bf16.msra.mxu0 0
    %1753 = vmatprep.subr.bf16.mxu0 0
    %1754 = vmatpush2.bf16.msra.mxu0 0
    %1755 = vmatprep.subr.bf16.mxu0 0
    %1756 = vmatpush2.bf16.msra.mxu0 0
    %1757 = vmatprep.mubr.bf16.mxu0 0
    %1758 = vmatmul.mubr.bf16.gmra.mxu0 %v1723
    %v1759 = vpop.f32.mrf.mxu0
    %v1760 = vadd.f32 %v1708, %v1759
    %v1761 = vpop.f32.mrf.mxu0
    %v1762 = vpop.f32.mrf.mxu0
    %v1763 = vadd.f32 %v1708, %v1762
    %v1764 = vpop.f32.mrf.mxu0
    %1765 = vdwg.mxu0
    %v1766 = vpack.c.bf16 %v1697, %v1697
    %v1767 = vpack.c.bf16 %v1700, %v1700
    %v1768 = vpack.c.bf16 %v1760, %v1760
    %v1769 = vpack.c.bf16 %v1763, %v1763
    %1771 = vrot.lane.b32.xlu0 %v1766, 96
    %v1772 = vpop.permute.xlu0 %1771
    %v1774 = vsel %vm282, %v1766, 0
    %v1777 = vsel %vm282, %v1772, 0
    %1779 = vmatprep.subr.bf16.mxu0 0
    %1780 = vmatpush1.bf16.xpose.msra.mxu0 0
    %1781 = vmatprep.subr.bf16.mxu0 0
    %1782 = vmatpush1.bf16.xpose.msra.mxu0 0
    %1783 = vmatprep.subr.bf16.mxu0 0
    %1784 = vmatpush1.bf16.xpose.msra.mxu0 0
    %1785 = vmatprep.subr.bf16.mxu0 0
    %1786 = vmatpush1.bf16.xpose.msra.mxu0 0
    %1787 = vmatprep.subr.bf16.mxu0 0
    %1788 = vmatpush1.bf16.xpose.msra.mxu0 0
    %1789 = vmatprep.subr.bf16.mxu0 0
    %1790 = vmatpush1.bf16.xpose.msra.mxu0 0
    %1791 = vmatprep.subr.bf16.mxu0 0
    %1792 = vmatpush1.bf16.xpose.msra.mxu0 0
    %1793 = vmatprep.subr.bf16.mxu0 0
    %1794 = vmatpush1.bf16.xpose.msra.mxu0 %v1777
    %1795 = vmatprep.subr.bf16.mxu0 0
    %1796 = vmatpush2.bf16.xpose.msra.mxu0 0
    %1797 = vmatprep.subr.bf16.mxu0 0
    %1798 = vmatpush2.bf16.xpose.msra.mxu0 0
    %1799 = vmatprep.subr.bf16.mxu0 0
    %1800 = vmatpush2.bf16.xpose.msra.mxu0 0
    %1801 = vmatprep.subr.bf16.mxu0 0
    %1802 = vmatpush2.bf16.xpose.msra.mxu0 0
    %1803 = vmatprep.subr.bf16.mxu0 0
    %1804 = vmatpush2.bf16.xpose.msra.mxu0 0
    %1805 = vmatprep.subr.bf16.mxu0 0
    %1806 = vmatpush2.bf16.xpose.msra.mxu0 0
    %1807 = vmatprep.subr.bf16.mxu0 0
    %1808 = vmatpush2.bf16.xpose.msra.mxu0 0
    %1809 = vmatprep.subr.bf16.mxu0 0
    %1810 = vmatpush2.bf16.xpose.msra.mxu0 0
    %1811 = vmatprep.mubr.bf16.mxu0 0
    %1812 = vmatmul.mubr.bf16.gmra.mxu0 %v1774
    %v1813 = vpop.f32.mrf.mxu0
    %v1814 = vadd.f32 0.0, %v1813
    %v1815 = vpop.f32.mrf.mxu0
    %v1816 = vpop.f32.mrf.mxu0
    %v1817 = vpop.f32.mrf.mxu0
    %1818 = vdwg.mxu0
    %1820 = vrot.lane.b32.xlu0 %v1767, 96
    %v1821 = vpop.permute.xlu0 %1820
    %v1823 = vsel %vm282, %v1767, 0
    %v1826 = vsel %vm282, %v1821, 0
    %1828 = vmatprep.subr.bf16.mxu0 0
    %1829 = vmatpush1.bf16.xpose.msra.mxu0 0
    %1830 = vmatprep.subr.bf16.mxu0 0
    %1831 = vmatpush1.bf16.xpose.msra.mxu0 0
    %1832 = vmatprep.subr.bf16.mxu0 0
    %1833 = vmatpush1.bf16.xpose.msra.mxu0 0
    %1834 = vmatprep.subr.bf16.mxu0 0
    %1835 = vmatpush1.bf16.xpose.msra.mxu0 0
    %1836 = vmatprep.subr.bf16.mxu0 0
    %1837 = vmatpush1.bf16.xpose.msra.mxu0 0
    %1838 = vmatprep.subr.bf16.mxu0 0
    %1839 = vmatpush1.bf16.xpose.msra.mxu0 0
    %1840 = vmatprep.subr.bf16.mxu0 0
    %1841 = vmatpush1.bf16.xpose.msra.mxu0 0
    %1842 = vmatprep.subr.bf16.mxu0 0
    %1843 = vmatpush1.bf16.xpose.msra.mxu0 %v1826
    %1844 = vmatprep.subr.bf16.mxu0 0
    %1845 = vmatpush2.bf16.xpose.msra.mxu0 0
    %1846 = vmatprep.subr.bf16.mxu0 0
    %1847 = vmatpush2.bf16.xpose.msra.mxu0 0
    %1848 = vmatprep.subr.bf16.mxu0 0
    %1849 = vmatpush2.bf16.xpose.msra.mxu0 0
    %1850 = vmatprep.subr.bf16.mxu0 0
    %1851 = vmatpush2.bf16.xpose.msra.mxu0 0
    %1852 = vmatprep.subr.bf16.mxu0 0
    %1853 = vmatpush2.bf16.xpose.msra.mxu0 0
    %1854 = vmatprep.subr.bf16.mxu0 0
    %1855 = vmatpush2.bf16.xpose.msra.mxu0 0
    %1856 = vmatprep.subr.bf16.mxu0 0
    %1857 = vmatpush2.bf16.xpose.msra.mxu0 0
    %1858 = vmatprep.subr.bf16.mxu0 0
    %1859 = vmatpush2.bf16.xpose.msra.mxu0 0
    %1860 = vmatprep.mubr.bf16.mxu0 0
    %1861 = vmatmul.mubr.bf16.gmra.mxu0 %v1823
    %v1862 = vpop.f32.mrf.mxu0
    %v1863 = vadd.f32 0.0, %v1862
    %v1864 = vpop.f32.mrf.mxu0
    %v1865 = vpop.f32.mrf.mxu0
    %v1866 = vpop.f32.mrf.mxu0
    %1867 = vdwg.mxu0
    %v1868 = vsel %vm282, %v1814, -inf
    %1869 = vmax.xlane.f32.xlu0 %v1868
    %v1870 = vpop.xlane.xlu0 %1869
    %v1871 = vsel %vm282, %v1863, -inf
    %1872 = vmax.xlane.f32.xlu0 %v1871
    %v1873 = vpop.xlane.xlu0 %1872
    %v1874 = vsub.f32 %v1814, %v1870
    %v1875 = vsub.f32 %v1863, %v1873
    %v1876 = vmul.f32 %v1874, 1.442695
    %v1877 = vpow.pop %v1876
    %v1878 = vmul.f32 %v1875, 1.442695
    %v1879 = vpow.pop %v1878
    %v1880 = vsel %vm282, %v1877, 0.0
    %1881 = vadd.xlane.f32.xlu0 %v1880
    %v1882 = vpop.xlane.xlu0 %1881
    %v1883 = vsel %vm282, %v1879, 0.0
    %1884 = vadd.xlane.f32.xlu0 %v1883
    %v1885 = vpop.xlane.xlu0 %1884
    %v1886 = vrcp.pop %v1882
    %v1887 = vrcp.pop %v1885
    %v1888 = vmul.f32 %v1877, %v1886
    %v1889 = vmul.f32 %v1879, %v1887
    %v1890 = vpack.c.bf16 %v1888, %v1888
    %v1891 = vpack.c.bf16 %v1889, %v1889
    %v1893 = vsel %vm282, %v1890, 0
    %v1896 = vsel %vm405, %v1768, 0
    %1898 = vmatprep.subr.bf16.mxu0 0
    %1899 = vmatpush1.bf16.msra.mxu0 0
    %1900 = vmatprep.subr.bf16.mxu0 0
    %1901 = vmatpush1.bf16.msra.mxu0 0
    %1902 = vmatprep.subr.bf16.mxu0 0
    %1903 = vmatpush1.bf16.msra.mxu0 0
    %1904 = vmatprep.subr.bf16.mxu0 0
    %1905 = vmatpush1.bf16.msra.mxu0 0
    %1906 = vmatprep.subr.bf16.mxu0 0
    %1907 = vmatpush1.bf16.msra.mxu0 0
    %1908 = vmatprep.subr.bf16.mxu0 0
    %1909 = vmatpush1.bf16.msra.mxu0 0
    %1910 = vmatprep.subr.bf16.mxu0 0
    %1911 = vmatpush1.bf16.msra.mxu0 0
    %1912 = vmatprep.subr.bf16.mxu0 0
    %1913 = vmatpush1.bf16.msra.mxu0 %v1896
    %1914 = vmatprep.subr.bf16.mxu0 0
    %1915 = vmatpush2.bf16.msra.mxu0 0
    %1916 = vmatprep.subr.bf16.mxu0 0
    %1917 = vmatpush2.bf16.msra.mxu0 0
    %1918 = vmatprep.subr.bf16.mxu0 0
    %1919 = vmatpush2.bf16.msra.mxu0 0
    %1920 = vmatprep.subr.bf16.mxu0 0
    %1921 = vmatpush2.bf16.msra.mxu0 0
    %1922 = vmatprep.subr.bf16.mxu0 0
    %1923 = vmatpush2.bf16.msra.mxu0 0
    %1924 = vmatprep.subr.bf16.mxu0 0
    %1925 = vmatpush2.bf16.msra.mxu0 0
    %1926 = vmatprep.subr.bf16.mxu0 0
    %1927 = vmatpush2.bf16.msra.mxu0 0
    %1928 = vmatprep.subr.bf16.mxu0 0
    %1929 = vmatpush2.bf16.msra.mxu0 0
    %1930 = vmatprep.mubr.bf16.mxu0 0
    %1931 = vmatmul.mubr.bf16.gmra.mxu0 %v1893
    %v1932 = vpop.f32.mrf.mxu0
    %v1933 = vadd.f32 0.0, %v1932
    %v1934 = vpop.f32.mrf.mxu0
    %v1935 = vpop.f32.mrf.mxu0
    %v1936 = vpop.f32.mrf.mxu0
    %1937 = vdwg.mxu0
    %v1939 = vsel %vm282, %v1891, 0
    %v1942 = vsel %vm405, %v1769, 0
    %1944 = vmatprep.subr.bf16.mxu0 0
    %1945 = vmatpush1.bf16.msra.mxu0 0
    %1946 = vmatprep.subr.bf16.mxu0 0
    %1947 = vmatpush1.bf16.msra.mxu0 0
    %1948 = vmatprep.subr.bf16.mxu0 0
    %1949 = vmatpush1.bf16.msra.mxu0 0
    %1950 = vmatprep.subr.bf16.mxu0 0
    %1951 = vmatpush1.bf16.msra.mxu0 0
    %1952 = vmatprep.subr.bf16.mxu0 0
    %1953 = vmatpush1.bf16.msra.mxu0 0
    %1954 = vmatprep.subr.bf16.mxu0 0
    %1955 = vmatpush1.bf16.msra.mxu0 0
    %1956 = vmatprep.subr.bf16.mxu0 0
    %1957 = vmatpush1.bf16.msra.mxu0 0
    %1958 = vmatprep.subr.bf16.mxu0 0
    %1959 = vmatpush1.bf16.msra.mxu0 %v1942
    %1960 = vmatprep.subr.bf16.mxu0 0
    %1961 = vmatpush2.bf16.msra.mxu0 0
    %1962 = vmatprep.subr.bf16.mxu0 0
    %1963 = vmatpush2.bf16.msra.mxu0 0
    %1964 = vmatprep.subr.bf16.mxu0 0
    %1965 = vmatpush2.bf16.msra.mxu0 0
    %1966 = vmatprep.subr.bf16.mxu0 0
    %1967 = vmatpush2.bf16.msra.mxu0 0
    %1968 = vmatprep.subr.bf16.mxu0 0
    %1969 = vmatpush2.bf16.msra.mxu0 0
    %1970 = vmatprep.subr.bf16.mxu0 0
    %1971 = vmatpush2.bf16.msra.mxu0 0
    %1972 = vmatprep.subr.bf16.mxu0 0
    %1973 = vmatpush2.bf16.msra.mxu0 0
    %1974 = vmatprep.subr.bf16.mxu0 0
    %1975 = vmatpush2.bf16.msra.mxu0 0
    %1976 = vmatprep.mubr.bf16.mxu0 0
    %1977 = vmatmul.mubr.bf16.gmra.mxu0 %v1939
    %v1978 = vpop.f32.mrf.mxu0
    %v1979 = vadd.f32 0.0, %v1978
    %v1980 = vpop.f32.mrf.mxu0
    %v1981 = vpop.f32.mrf.mxu0
    %v1982 = vpop.f32.mrf.mxu0
    %1983 = vdwg.mxu0
    %v1984 = vpack.c.bf16 %v1979, %v1933
    %1985 = vrot.lane.b32.xlu0 %v1766, 120
    %v1986 = vpop.permute.xlu0 %1985
    %1987 = vrot.lane.b32.xlu0 %v1766, 88
    %v1988 = vpop.permute.xlu0 %1987
    %v1990 = vsel %vm282, %v1986, 0
    %v1993 = vsel %vm282, %v1988, 0
    %1995 = vmatprep.subr.bf16.mxu0 0
    %1996 = vmatpush1.bf16.xpose.msra.mxu0 0
    %1997 = vmatprep.subr.bf16.mxu0 0
    %1998 = vmatpush1.bf16.xpose.msra.mxu0 0
    %1999 = vmatprep.subr.bf16.mxu0 0
    %2000 = vmatpush1.bf16.xpose.msra.mxu0 0
    %2001 = vmatprep.subr.bf16.mxu0 0
    %2002 = vmatpush1.bf16.xpose.msra.mxu0 0
    %2003 = vmatprep.subr.bf16.mxu0 0
    %2004 = vmatpush1.bf16.xpose.msra.mxu0 0
    %2005 = vmatprep.subr.bf16.mxu0 0
    %2006 = vmatpush1.bf16.xpose.msra.mxu0 0
    %2007 = vmatprep.subr.bf16.mxu0 0
    %2008 = vmatpush1.bf16.xpose.msra.mxu0 0
    %2009 = vmatprep.subr.bf16.mxu0 0
    %2010 = vmatpush1.bf16.xpose.msra.mxu0 %v1993
    %2011 = vmatprep.subr.bf16.mxu0 0
    %2012 = vmatpush2.bf16.xpose.msra.mxu0 0
    %2013 = vmatprep.subr.bf16.mxu0 0
    %2014 = vmatpush2.bf16.xpose.msra.mxu0 0
    %2015 = vmatprep.subr.bf16.mxu0 0
    %2016 = vmatpush2.bf16.xpose.msra.mxu0 0
    %2017 = vmatprep.subr.bf16.mxu0 0
    %2018 = vmatpush2.bf16.xpose.msra.mxu0 0
    %2019 = vmatprep.subr.bf16.mxu0 0
    %2020 = vmatpush2.bf16.xpose.msra.mxu0 0
    %2021 = vmatprep.subr.bf16.mxu0 0
    %2022 = vmatpush2.bf16.xpose.msra.mxu0 0
    %2023 = vmatprep.subr.bf16.mxu0 0
    %2024 = vmatpush2.bf16.xpose.msra.mxu0 0
    %2025 = vmatprep.subr.bf16.mxu0 0
    %2026 = vmatpush2.bf16.xpose.msra.mxu0 0
    %2027 = vmatprep.mubr.bf16.mxu0 0
    %2028 = vmatmul.mubr.bf16.gmra.mxu0 %v1990
    %v2029 = vpop.f32.mrf.mxu0
    %v2030 = vadd.f32 0.0, %v2029
    %v2031 = vpop.f32.mrf.mxu0
    %v2032 = vpop.f32.mrf.mxu0
    %v2033 = vpop.f32.mrf.mxu0
    %2034 = vdwg.mxu0
    %2035 = vrot.lane.b32.xlu0 %v1767, 120
    %v2036 = vpop.permute.xlu0 %2035
    %2037 = vrot.lane.b32.xlu0 %v1767, 88
    %v2038 = vpop.permute.xlu0 %2037
    %v2040 = vsel %vm282, %v2036, 0
    %v2043 = vsel %vm282, %v2038, 0
    %2045 = vmatprep.subr.bf16.mxu0 0
    %2046 = vmatpush1.bf16.xpose.msra.mxu0 0
    %2047 = vmatprep.subr.bf16.mxu0 0
    %2048 = vmatpush1.bf16.xpose.msra.mxu0 0
    %2049 = vmatprep.subr.bf16.mxu0 0
    %2050 = vmatpush1.bf16.xpose.msra.mxu0 0
    %2051 = vmatprep.subr.bf16.mxu0 0
    %2052 = vmatpush1.bf16.xpose.msra.mxu0 0
    %2053 = vmatprep.subr.bf16.mxu0 0
    %2054 = vmatpush1.bf16.xpose.msra.mxu0 0
    %2055 = vmatprep.subr.bf16.mxu0 0
    %2056 = vmatpush1.bf16.xpose.msra.mxu0 0
    %2057 = vmatprep.subr.bf16.mxu0 0
    %2058 = vmatpush1.bf16.xpose.msra.mxu0 0
    %2059 = vmatprep.subr.bf16.mxu0 0
    %2060 = vmatpush1.bf16.xpose.msra.mxu0 %v2043
    %2061 = vmatprep.subr.bf16.mxu0 0
    %2062 = vmatpush2.bf16.xpose.msra.mxu0 0
    %2063 = vmatprep.subr.bf16.mxu0 0
    %2064 = vmatpush2.bf16.xpose.msra.mxu0 0
    %2065 = vmatprep.subr.bf16.mxu0 0
    %2066 = vmatpush2.bf16.xpose.msra.mxu0 0
    %2067 = vmatprep.subr.bf16.mxu0 0
    %2068 = vmatpush2.bf16.xpose.msra.mxu0 0
    %2069 = vmatprep.subr.bf16.mxu0 0
    %2070 = vmatpush2.bf16.xpose.msra.mxu0 0
    %2071 = vmatprep.subr.bf16.mxu0 0
    %2072 = vmatpush2.bf16.xpose.msra.mxu0 0
    %2073 = vmatprep.subr.bf16.mxu0 0
    %2074 = vmatpush2.bf16.xpose.msra.mxu0 0
    %2075 = vmatprep.subr.bf16.mxu0 0
    %2076 = vmatpush2.bf16.xpose.msra.mxu0 0
    %2077 = vmatprep.mubr.bf16.mxu0 0
    %2078 = vmatmul.mubr.bf16.gmra.mxu0 %v2040
    %v2079 = vpop.f32.mrf.mxu0
    %v2080 = vadd.f32 0.0, %v2079
    %v2081 = vpop.f32.mrf.mxu0
    %v2082 = vpop.f32.mrf.mxu0
    %v2083 = vpop.f32.mrf.mxu0
    %2084 = vdwg.mxu0
    %v2085 = vsel %vm282, %v2030, -inf
    %2086 = vmax.xlane.f32.xlu0 %v2085
    %v2087 = vpop.xlane.xlu0 %2086
    %v2088 = vsel %vm282, %v2080, -inf
    %2089 = vmax.xlane.f32.xlu0 %v2088
    %v2090 = vpop.xlane.xlu0 %2089
    %v2091 = vsub.f32 %v2030, %v2087
    %v2092 = vsub.f32 %v2080, %v2090
    %v2093 = vmul.f32 %v2091, 1.442695
    %v2094 = vpow.pop %v2093
    %v2095 = vmul.f32 %v2092, 1.442695
    %v2096 = vpow.pop %v2095
    %v2097 = vsel %vm282, %v2094, 0.0
    %2098 = vadd.xlane.f32.xlu0 %v2097
    %v2099 = vpop.xlane.xlu0 %2098
    %v2100 = vsel %vm282, %v2096, 0.0
    %2101 = vadd.xlane.f32.xlu0 %v2100
    %v2102 = vpop.xlane.xlu0 %2101
    %v2103 = vrcp.pop %v2099
    %v2104 = vrcp.pop %v2102
    %v2105 = vmul.f32 %v2094, %v2103
    %v2106 = vmul.f32 %v2096, %v2104
    %v2107 = vpack.c.bf16 %v2105, %v2105
    %v2108 = vpack.c.bf16 %v2106, %v2106
    %2110 = vrot.lane.b32.xlu0 %v1768, 120
    %v2111 = vpop.permute.xlu0 %2110
    %v2113 = vsel %vm282, %v2107, 0
    %v2116 = vsel %vm405, %v2111, 0
    %2118 = vmatprep.subr.bf16.mxu0 0
    %2119 = vmatpush1.bf16.msra.mxu0 0
    %2120 = vmatprep.subr.bf16.mxu0 0
    %2121 = vmatpush1.bf16.msra.mxu0 0
    %2122 = vmatprep.subr.bf16.mxu0 0
    %2123 = vmatpush1.bf16.msra.mxu0 0
    %2124 = vmatprep.subr.bf16.mxu0 0
    %2125 = vmatpush1.bf16.msra.mxu0 0
    %2126 = vmatprep.subr.bf16.mxu0 0
    %2127 = vmatpush1.bf16.msra.mxu0 0
    %2128 = vmatprep.subr.bf16.mxu0 0
    %2129 = vmatpush1.bf16.msra.mxu0 0
    %2130 = vmatprep.subr.bf16.mxu0 0
    %2131 = vmatpush1.bf16.msra.mxu0 0
    %2132 = vmatprep.subr.bf16.mxu0 0
    %2133 = vmatpush1.bf16.msra.mxu0 %v2116
    %2134 = vmatprep.subr.bf16.mxu0 0
    %2135 = vmatpush2.bf16.msra.mxu0 0
    %2136 = vmatprep.subr.bf16.mxu0 0
    %2137 = vmatpush2.bf16.msra.mxu0 0
    %2138 = vmatprep.subr.bf16.mxu0 0
    %2139 = vmatpush2.bf16.msra.mxu0 0
    %2140 = vmatprep.subr.bf16.mxu0 0
    %2141 = vmatpush2.bf16.msra.mxu0 0
    %2142 = vmatprep.subr.bf16.mxu0 0
    %2143 = vmatpush2.bf16.msra.mxu0 0
    %2144 = vmatprep.subr.bf16.mxu0 0
    %2145 = vmatpush2.bf16.msra.mxu0 0
    %2146 = vmatprep.subr.bf16.mxu0 0
    %2147 = vmatpush2.bf16.msra.mxu0 0
    %2148 = vmatprep.subr.bf16.mxu0 0
    %2149 = vmatpush2.bf16.msra.mxu0 0
    %2150 = vmatprep.mubr.bf16.mxu0 0
    %2151 = vmatmul.mubr.bf16.gmra.mxu0 %v2113
    %v2152 = vpop.f32.mrf.mxu0
    %v2153 = vadd.f32 0.0, %v2152
    %v2154 = vpop.f32.mrf.mxu0
    %v2155 = vpop.f32.mrf.mxu0
    %v2156 = vpop.f32.mrf.mxu0
    %2157 = vdwg.mxu0
    %2159 = vrot.lane.b32.xlu0 %v1769, 120
    %v2160 = vpop.permute.xlu0 %2159
    %v2162 = vsel %vm282, %v2108, 0
    %v2165 = vsel %vm405, %v2160, 0
    %2167 = vmatprep.subr.bf16.mxu0 0
    %2168 = vmatpush1.bf16.msra.mxu0 0
    %2169 = vmatprep.subr.bf16.mxu0 0
    %2170 = vmatpush1.bf16.msra.mxu0 0
    %2171 = vmatprep.subr.bf16.mxu0 0
    %2172 = vmatpush1.bf16.msra.mxu0 0
    %2173 = vmatprep.subr.bf16.mxu0 0
    %2174 = vmatpush1.bf16.msra.mxu0 0
    %2175 = vmatprep.subr.bf16.mxu0 0
    %2176 = vmatpush1.bf16.msra.mxu0 0
    %2177 = vmatprep.subr.bf16.mxu0 0
    %2178 = vmatpush1.bf16.msra.mxu0 0
    %2179 = vmatprep.subr.bf16.mxu0 0
    %2180 = vmatpush1.bf16.msra.mxu0 0
    %2181 = vmatprep.subr.bf16.mxu0 0
    %2182 = vmatpush1.bf16.msra.mxu0 %v2165
    %2183 = vmatprep.subr.bf16.mxu0 0
    %2184 = vmatpush2.bf16.msra.mxu0 0
    %2185 = vmatprep.subr.bf16.mxu0 0
    %2186 = vmatpush2.bf16.msra.mxu0 0
    %2187 = vmatprep.subr.bf16.mxu0 0
    %2188 = vmatpush2.bf16.msra.mxu0 0
    %2189 = vmatprep.subr.bf16.mxu0 0
    %2190 = vmatpush2.bf16.msra.mxu0 0
    %2191 = vmatprep.subr.bf16.mxu0 0
    %2192 = vmatpush2.bf16.msra.mxu0 0
    %2193 = vmatprep.subr.bf16.mxu0 0
    %2194 = vmatpush2.bf16.msra.mxu0 0
    %2195 = vmatprep.subr.bf16.mxu0 0
    %2196 = vmatpush2.bf16.msra.mxu0 0
    %2197 = vmatprep.subr.bf16.mxu0 0
    %2198 = vmatpush2.bf16.msra.mxu0 0
    %2199 = vmatprep.mubr.bf16.mxu0 0
    %2200 = vmatmul.mubr.bf16.gmra.mxu0 %v2162
    %v2201 = vpop.f32.mrf.mxu0
    %v2202 = vadd.f32 0.0, %v2201
    %v2203 = vpop.f32.mrf.mxu0
    %v2204 = vpop.f32.mrf.mxu0
    %v2205 = vpop.f32.mrf.mxu0
    %2206 = vdwg.mxu0
    %v2207 = vpack.c.bf16 %v2202, %v2153
    %v2209 = vsel %vm282, %v2207, 0
    %v2212 = vsel %vm405, %v1607, 0
    %2214 = vmatprep.subr.bf16.mxu0 0
    %2215 = vmatpush1.bf16.msra.mxu0 0
    %2216 = vmatprep.subr.bf16.mxu0 0
    %2217 = vmatpush1.bf16.msra.mxu0 0
    %2218 = vmatprep.subr.bf16.mxu0 0
    %2219 = vmatpush1.bf16.msra.mxu0 0
    %2220 = vmatprep.subr.bf16.mxu0 0
    %2221 = vmatpush1.bf16.msra.mxu0 0
    %2222 = vmatprep.subr.bf16.mxu0 0
    %2223 = vmatpush1.bf16.msra.mxu0 0
    %2224 = vmatprep.subr.bf16.mxu0 0
    %2225 = vmatpush1.bf16.msra.mxu0 0
    %2226 = vmatprep.subr.bf16.mxu0 0
    %2227 = vmatpush1.bf16.msra.mxu0 0
    %2228 = vmatprep.subr.bf16.mxu0 0
    %2229 = vmatpush1.bf16.msra.mxu0 %v2212
    %2230 = vmatprep.subr.bf16.mxu0 0
    %2231 = vmatpush2.bf16.msra.mxu0 0
    %2232 = vmatprep.subr.bf16.mxu0 0
    %2233 = vmatpush2.bf16.msra.mxu0 0
    %2234 = vmatprep.subr.bf16.mxu0 0
    %2235 = vmatpush2.bf16.msra.mxu0 0
    %2236 = vmatprep.subr.bf16.mxu0 0
    %2237 = vmatpush2.bf16.msra.mxu0 0
    %2238 = vmatprep.subr.bf16.mxu0 0
    %2239 = vmatpush2.bf16.msra.mxu0 0
    %2240 = vmatprep.subr.bf16.mxu0 0
    %2241 = vmatpush2.bf16.msra.mxu0 0
    %2242 = vmatprep.subr.bf16.mxu0 0
    %2243 = vmatpush2.bf16.msra.mxu0 0
    %2244 = vmatprep.subr.bf16.mxu0 0
    %2245 = vmatpush2.bf16.msra.mxu0 0
    %2246 = vmatprep.mubr.bf16.mxu0 0
    %2247 = vmatmul.mubr.bf16.gmra.mxu0 %v2209
    %v2248 = vpop.f32.mrf.mxu0
    %v2249 = vadd.f32 0.0, %v2248
    %v2250 = vpop.f32.mrf.mxu0
    %v2251 = vpop.f32.mrf.mxu0
    %v2252 = vadd.f32 0.0, %v2251
    %v2253 = vpop.f32.mrf.mxu0
    %2254 = vdwg.mxu0
    %v2256 = vsel %vm282, %v1984, 0
    %v2259 = vsel %vm405, %v1606, 0
    %2261 = vmatprep.subr.bf16.mxu0 0
    %2262 = vmatpush1.bf16.msra.mxu0 0
    %2263 = vmatprep.subr.bf16.mxu0 0
    %2264 = vmatpush1.bf16.msra.mxu0 0
    %2265 = vmatprep.subr.bf16.mxu0 0
    %2266 = vmatpush1.bf16.msra.mxu0 0
    %2267 = vmatprep.subr.bf16.mxu0 0
    %2268 = vmatpush1.bf16.msra.mxu0 0
    %2269 = vmatprep.subr.bf16.mxu0 0
    %2270 = vmatpush1.bf16.msra.mxu0 0
    %2271 = vmatprep.subr.bf16.mxu0 0
    %2272 = vmatpush1.bf16.msra.mxu0 0
    %2273 = vmatprep.subr.bf16.mxu0 0
    %2274 = vmatpush1.bf16.msra.mxu0 0
    %2275 = vmatprep.subr.bf16.mxu0 0
    %2276 = vmatpush1.bf16.msra.mxu0 %v2259
    %2277 = vmatprep.subr.bf16.mxu0 0
    %2278 = vmatpush2.bf16.msra.mxu0 0
    %2279 = vmatprep.subr.bf16.mxu0 0
    %2280 = vmatpush2.bf16.msra.mxu0 0
    %2281 = vmatprep.subr.bf16.mxu0 0
    %2282 = vmatpush2.bf16.msra.mxu0 0
    %2283 = vmatprep.subr.bf16.mxu0 0
    %2284 = vmatpush2.bf16.msra.mxu0 0
    %2285 = vmatprep.subr.bf16.mxu0 0
    %2286 = vmatpush2.bf16.msra.mxu0 0
    %2287 = vmatprep.subr.bf16.mxu0 0
    %2288 = vmatpush2.bf16.msra.mxu0 0
    %2289 = vmatprep.subr.bf16.mxu0 0
    %2290 = vmatpush2.bf16.msra.mxu0 0
    %2291 = vmatprep.subr.bf16.mxu0 0
    %2292 = vmatpush2.bf16.msra.mxu0 0
    %2293 = vmatprep.mubr.bf16.mxu0 0
    %2294 = vmatmul.mubr.bf16.gmra.mxu0 %v2256
    %v2295 = vpop.f32.mrf.mxu0
    %v2296 = vadd.f32 %v2249, %v2295
    %v2297 = vpop.f32.mrf.mxu0
    %v2298 = vpop.f32.mrf.mxu0
    %v2299 = vadd.f32 %v2252, %v2298
    %v2300 = vpop.f32.mrf.mxu0
    %2301 = vdwg.mxu0
    %2302 = vrot.lane.b32.xlu0 %v1766, 112
    %v2303 = vpop.permute.xlu0 %2302
    %2304 = vrot.lane.b32.xlu0 %v1766, 80
    %v2305 = vpop.permute.xlu0 %2304
    %v2307 = vsel %vm282, %v2303, 0
    %v2310 = vsel %vm282, %v2305, 0
    %2312 = vmatprep.subr.bf16.mxu0 0
    %2313 = vmatpush1.bf16.xpose.msra.mxu0 0
    %2314 = vmatprep.subr.bf16.mxu0 0
    %2315 = vmatpush1.bf16.xpose.msra.mxu0 0
    %2316 = vmatprep.subr.bf16.mxu0 0
    %2317 = vmatpush1.bf16.xpose.msra.mxu0 0
    %2318 = vmatprep.subr.bf16.mxu0 0
    %2319 = vmatpush1.bf16.xpose.msra.mxu0 0
    %2320 = vmatprep.subr.bf16.mxu0 0
    %2321 = vmatpush1.bf16.xpose.msra.mxu0 0
    %2322 = vmatprep.subr.bf16.mxu0 0
    %2323 = vmatpush1.bf16.xpose.msra.mxu0 0
    %2324 = vmatprep.subr.bf16.mxu0 0
    %2325 = vmatpush1.bf16.xpose.msra.mxu0 0
    %2326 = vmatprep.subr.bf16.mxu0 0
    %2327 = vmatpush1.bf16.xpose.msra.mxu0 %v2310
    %2328 = vmatprep.subr.bf16.mxu0 0
    %2329 = vmatpush2.bf16.xpose.msra.mxu0 0
    %2330 = vmatprep.subr.bf16.mxu0 0
    %2331 = vmatpush2.bf16.xpose.msra.mxu0 0
    %2332 = vmatprep.subr.bf16.mxu0 0
    %2333 = vmatpush2.bf16.xpose.msra.mxu0 0
    %2334 = vmatprep.subr.bf16.mxu0 0
    %2335 = vmatpush2.bf16.xpose.msra.mxu0 0
    %2336 = vmatprep.subr.bf16.mxu0 0
    %2337 = vmatpush2.bf16.xpose.msra.mxu0 0
    %2338 = vmatprep.subr.bf16.mxu0 0
    %2339 = vmatpush2.bf16.xpose.msra.mxu0 0
    %2340 = vmatprep.subr.bf16.mxu0 0
    %2341 = vmatpush2.bf16.xpose.msra.mxu0 0
    %2342 = vmatprep.subr.bf16.mxu0 0
    %2343 = vmatpush2.bf16.xpose.msra.mxu0 0
    %2344 = vmatprep.mubr.bf16.mxu0 0
    %2345 = vmatmul.mubr.bf16.gmra.mxu0 %v2307
    %v2346 = vpop.f32.mrf.mxu0
    %v2347 = vadd.f32 0.0, %v2346
    %v2348 = vpop.f32.mrf.mxu0
    %v2349 = vpop.f32.mrf.mxu0
    %v2350 = vpop.f32.mrf.mxu0
    %2351 = vdwg.mxu0
    %2352 = vrot.lane.b32.xlu0 %v1767, 112
    %v2353 = vpop.permute.xlu0 %2352
    %2354 = vrot.lane.b32.xlu0 %v1767, 80
    %v2355 = vpop.permute.xlu0 %2354
    %v2357 = vsel %vm282, %v2353, 0
    %v2360 = vsel %vm282, %v2355, 0
    %2362 = vmatprep.subr.bf16.mxu0 0
    %2363 = vmatpush1.bf16.xpose.msra.mxu0 0
    %2364 = vmatprep.subr.bf16.mxu0 0
    %2365 = vmatpush1.bf16.xpose.msra.mxu0 0
    %2366 = vmatprep.subr.bf16.mxu0 0
    %2367 = vmatpush1.bf16.xpose.msra.mxu0 0
    %2368 = vmatprep.subr.bf16.mxu0 0
    %2369 = vmatpush1.bf16.xpose.msra.mxu0 0
    %2370 = vmatprep.subr.bf16.mxu0 0
    %2371 = vmatpush1.bf16.xpose.msra.mxu0 0
    %2372 = vmatprep.subr.bf16.mxu0 0
    %2373 = vmatpush1.bf16.xpose.msra.mxu0 0
    %2374 = vmatprep.subr.bf16.mxu0 0
    %2375 = vmatpush1.bf16.xpose.msra.mxu0 0
    %2376 = vmatprep.subr.bf16.mxu0 0
    %2377 = vmatpush1.bf16.xpose.msra.mxu0 %v2360
    %2378 = vmatprep.subr.bf16.mxu0 0
    %2379 = vmatpush2.bf16.xpose.msra.mxu0 0
    %2380 = vmatprep.subr.bf16.mxu0 0
    %2381 = vmatpush2.bf16.xpose.msra.mxu0 0
    %2382 = vmatprep.subr.bf16.mxu0 0
    %2383 = vmatpush2.bf16.xpose.msra.mxu0 0
    %2384 = vmatprep.subr.bf16.mxu0 0
    %2385 = vmatpush2.bf16.xpose.msra.mxu0 0
    %2386 = vmatprep.subr.bf16.mxu0 0
    %2387 = vmatpush2.bf16.xpose.msra.mxu0 0
    %2388 = vmatprep.subr.bf16.mxu0 0
    %2389 = vmatpush2.bf16.xpose.msra.mxu0 0
    %2390 = vmatprep.subr.bf16.mxu0 0
    %2391 = vmatpush2.bf16.xpose.msra.mxu0 0
    %2392 = vmatprep.subr.bf16.mxu0 0
    %2393 = vmatpush2.bf16.xpose.msra.mxu0 0
    %2394 = vmatprep.mubr.bf16.mxu0 0
    %2395 = vmatmul.mubr.bf16.gmra.mxu0 %v2357
    %v2396 = vpop.f32.mrf.mxu0
    %v2397 = vadd.f32 0.0, %v2396
    %v2398 = vpop.f32.mrf.mxu0
    %v2399 = vpop.f32.mrf.mxu0
    %v2400 = vpop.f32.mrf.mxu0
    %2401 = vdwg.mxu0
    %v2402 = vsel %vm282, %v2347, -inf
    %2403 = vmax.xlane.f32.xlu0 %v2402
    %v2404 = vpop.xlane.xlu0 %2403
    %v2405 = vsel %vm282, %v2397, -inf
    %2406 = vmax.xlane.f32.xlu0 %v2405
    %v2407 = vpop.xlane.xlu0 %2406
    %v2408 = vsub.f32 %v2347, %v2404
    %v2409 = vsub.f32 %v2397, %v2407
    %v2410 = vmul.f32 %v2408, 1.442695
    %v2411 = vpow.pop %v2410
    %v2412 = vmul.f32 %v2409, 1.442695
    %v2413 = vpow.pop %v2412
    %v2414 = vsel %vm282, %v2411, 0.0
    %2415 = vadd.xlane.f32.xlu0 %v2414
    %v2416 = vpop.xlane.xlu0 %2415
    %v2417 = vsel %vm282, %v2413, 0.0
    %2418 = vadd.xlane.f32.xlu0 %v2417
    %v2419 = vpop.xlane.xlu0 %2418
    %v2420 = vrcp.pop %v2416
    %v2421 = vrcp.pop %v2419
    %v2422 = vmul.f32 %v2411, %v2420
    %v2423 = vmul.f32 %v2413, %v2421
    %v2424 = vpack.c.bf16 %v2422, %v2422
    %v2425 = vpack.c.bf16 %v2423, %v2423
    %2426 = vrot.lane.b32.xlu0 %v1768, 112
    %v2427 = vpop.permute.xlu0 %2426
    %v2429 = vsel %vm282, %v2424, 0
    %v2432 = vsel %vm405, %v2427, 0
    %2434 = vmatprep.subr.bf16.mxu0 0
    %2435 = vmatpush1.bf16.msra.mxu0 0
    %2436 = vmatprep.subr.bf16.mxu0 0
    %2437 = vmatpush1.bf16.msra.mxu0 0
    %2438 = vmatprep.subr.bf16.mxu0 0
    %2439 = vmatpush1.bf16.msra.mxu0 0
    %2440 = vmatprep.subr.bf16.mxu0 0
    %2441 = vmatpush1.bf16.msra.mxu0 0
    %2442 = vmatprep.subr.bf16.mxu0 0
    %2443 = vmatpush1.bf16.msra.mxu0 0
    %2444 = vmatprep.subr.bf16.mxu0 0
    %2445 = vmatpush1.bf16.msra.mxu0 0
    %2446 = vmatprep.subr.bf16.mxu0 0
    %2447 = vmatpush1.bf16.msra.mxu0 0
    %2448 = vmatprep.subr.bf16.mxu0 0
    %2449 = vmatpush1.bf16.msra.mxu0 %v2432
    %2450 = vmatprep.subr.bf16.mxu0 0
    %2451 = vmatpush2.bf16.msra.mxu0 0
    %2452 = vmatprep.subr.bf16.mxu0 0
    %2453 = vmatpush2.bf16.msra.mxu0 0
    %2454 = vmatprep.subr.bf16.mxu0 0
    %2455 = vmatpush2.bf16.msra.mxu0 0
    %2456 = vmatprep.subr.bf16.mxu0 0
    %2457 = vmatpush2.bf16.msra.mxu0 0
    %2458 = vmatprep.subr.bf16.mxu0 0
    %2459 = vmatpush2.bf16.msra.mxu0 0
    %2460 = vmatprep.subr.bf16.mxu0 0
    %2461 = vmatpush2.bf16.msra.mxu0 0
    %2462 = vmatprep.subr.bf16.mxu0 0
    %2463 = vmatpush2.bf16.msra.mxu0 0
    %2464 = vmatprep.subr.bf16.mxu0 0
    %2465 = vmatpush2.bf16.msra.mxu0 0
    %2466 = vmatprep.mubr.bf16.mxu0 0
    %2467 = vmatmul.mubr.bf16.gmra.mxu0 %v2429
    %v2468 = vpop.f32.mrf.mxu0
    %v2469 = vadd.f32 0.0, %v2468
    %v2470 = vpop.f32.mrf.mxu0
    %v2471 = vpop.f32.mrf.mxu0
    %v2472 = vpop.f32.mrf.mxu0
    %2473 = vdwg.mxu0
    %2474 = vrot.lane.b32.xlu0 %v1769, 112
    %v2475 = vpop.permute.xlu0 %2474
    %v2477 = vsel %vm282, %v2425, 0
    %v2480 = vsel %vm405, %v2475, 0
    %2482 = vmatprep.subr.bf16.mxu0 0
    %2483 = vmatpush1.bf16.msra.mxu0 0
    %2484 = vmatprep.subr.bf16.mxu0 0
    %2485 = vmatpush1.bf16.msra.mxu0 0
    %2486 = vmatprep.subr.bf16.mxu0 0
    %2487 = vmatpush1.bf16.msra.mxu0 0
    %2488 = vmatprep.subr.bf16.mxu0 0
    %2489 = vmatpush1.bf16.msra.mxu0 0
    %2490 = vmatprep.subr.bf16.mxu0 0
    %2491 = vmatpush1.bf16.msra.mxu0 0
    %2492 = vmatprep.subr.bf16.mxu0 0
    %2493 = vmatpush1.bf16.msra.mxu0 0
    %2494 = vmatprep.subr.bf16.mxu0 0
    %2495 = vmatpush1.bf16.msra.mxu0 0
    %2496 = vmatprep.subr.bf16.mxu0 0
    %2497 = vmatpush1.bf16.msra.mxu0 %v2480
    %2498 = vmatprep.subr.bf16.mxu0 0
    %2499 = vmatpush2.bf16.msra.mxu0 0
    %2500 = vmatprep.subr.bf16.mxu0 0
    %2501 = vmatpush2.bf16.msra.mxu0 0
    %2502 = vmatprep.subr.bf16.mxu0 0
    %2503 = vmatpush2.bf16.msra.mxu0 0
    %2504 = vmatprep.subr.bf16.mxu0 0
    %2505 = vmatpush2.bf16.msra.mxu0 0
    %2506 = vmatprep.subr.bf16.mxu0 0
    %2507 = vmatpush2.bf16.msra.mxu0 0
    %2508 = vmatprep.subr.bf16.mxu0 0
    %2509 = vmatpush2.bf16.msra.mxu0 0
    %2510 = vmatprep.subr.bf16.mxu0 0
    %2511 = vmatpush2.bf16.msra.mxu0 0
    %2512 = vmatprep.subr.bf16.mxu0 0
    %2513 = vmatpush2.bf16.msra.mxu0 0
    %2514 = vmatprep.mubr.bf16.mxu0 0
    %2515 = vmatmul.mubr.bf16.gmra.mxu0 %v2477
    %v2516 = vpop.f32.mrf.mxu0
    %v2517 = vadd.f32 0.0, %v2516
    %v2518 = vpop.f32.mrf.mxu0
    %v2519 = vpop.f32.mrf.mxu0
    %v2520 = vpop.f32.mrf.mxu0
    %2521 = vdwg.mxu0
    %v2522 = vpack.c.bf16 %v2517, %v2469
    %v2524 = vsel %vm282, %v2522, 0
    %v2527 = vsel %vm405, %v1608, 0
    %2529 = vmatprep.subr.bf16.mxu0 0
    %2530 = vmatpush1.bf16.msra.mxu0 0
    %2531 = vmatprep.subr.bf16.mxu0 0
    %2532 = vmatpush1.bf16.msra.mxu0 0
    %2533 = vmatprep.subr.bf16.mxu0 0
    %2534 = vmatpush1.bf16.msra.mxu0 0
    %2535 = vmatprep.subr.bf16.mxu0 0
    %2536 = vmatpush1.bf16.msra.mxu0 0
    %2537 = vmatprep.subr.bf16.mxu0 0
    %2538 = vmatpush1.bf16.msra.mxu0 0
    %2539 = vmatprep.subr.bf16.mxu0 0
    %2540 = vmatpush1.bf16.msra.mxu0 0
    %2541 = vmatprep.subr.bf16.mxu0 0
    %2542 = vmatpush1.bf16.msra.mxu0 0
    %2543 = vmatprep.subr.bf16.mxu0 0
    %2544 = vmatpush1.bf16.msra.mxu0 %v2527
    %2545 = vmatprep.subr.bf16.mxu0 0
    %2546 = vmatpush2.bf16.msra.mxu0 0
    %2547 = vmatprep.subr.bf16.mxu0 0
    %2548 = vmatpush2.bf16.msra.mxu0 0
    %2549 = vmatprep.subr.bf16.mxu0 0
    %2550 = vmatpush2.bf16.msra.mxu0 0
    %2551 = vmatprep.subr.bf16.mxu0 0
    %2552 = vmatpush2.bf16.msra.mxu0 0
    %2553 = vmatprep.subr.bf16.mxu0 0
    %2554 = vmatpush2.bf16.msra.mxu0 0
    %2555 = vmatprep.subr.bf16.mxu0 0
    %2556 = vmatpush2.bf16.msra.mxu0 0
    %2557 = vmatprep.subr.bf16.mxu0 0
    %2558 = vmatpush2.bf16.msra.mxu0 0
    %2559 = vmatprep.subr.bf16.mxu0 0
    %2560 = vmatpush2.bf16.msra.mxu0 0
    %2561 = vmatprep.mubr.bf16.mxu0 0
    %2562 = vmatmul.mubr.bf16.gmra.mxu0 %v2524
    %v2563 = vpop.f32.mrf.mxu0
    %v2564 = vadd.f32 0.0, %v2563
    %v2565 = vpop.f32.mrf.mxu0
    %v2566 = vpop.f32.mrf.mxu0
    %v2567 = vadd.f32 0.0, %v2566
    %v2568 = vpop.f32.mrf.mxu0
    %2569 = vdwg.mxu0
    %v2570 = vadd.f32 %v2296, %v2564
    %v2571 = vadd.f32 %v2299, %v2567
    %2572 = vrot.lane.b32.xlu0 %v1766, 104
    %v2573 = vpop.permute.xlu0 %2572
    %2574 = vrot.lane.b32.xlu0 %v1766, 72
    %v2575 = vpop.permute.xlu0 %2574
    %v2577 = vsel %vm282, %v2573, 0
    %v2580 = vsel %vm282, %v2575, 0
    %2582 = vmatprep.subr.bf16.mxu0 0
    %2583 = vmatpush1.bf16.xpose.msra.mxu0 0
    %2584 = vmatprep.subr.bf16.mxu0 0
    %2585 = vmatpush1.bf16.xpose.msra.mxu0 0
    %2586 = vmatprep.subr.bf16.mxu0 0
    %2587 = vmatpush1.bf16.xpose.msra.mxu0 0
    %2588 = vmatprep.subr.bf16.mxu0 0
    %2589 = vmatpush1.bf16.xpose.msra.mxu0 0
    %2590 = vmatprep.subr.bf16.mxu0 0
    %2591 = vmatpush1.bf16.xpose.msra.mxu0 0
    %2592 = vmatprep.subr.bf16.mxu0 0
    %2593 = vmatpush1.bf16.xpose.msra.mxu0 0
    %2594 = vmatprep.subr.bf16.mxu0 0
    %2595 = vmatpush1.bf16.xpose.msra.mxu0 0
    %2596 = vmatprep.subr.bf16.mxu0 0
    %2597 = vmatpush1.bf16.xpose.msra.mxu0 %v2580
    %2598 = vmatprep.subr.bf16.mxu0 0
    %2599 = vmatpush2.bf16.xpose.msra.mxu0 0
    %2600 = vmatprep.subr.bf16.mxu0 0
    %2601 = vmatpush2.bf16.xpose.msra.mxu0 0
    %2602 = vmatprep.subr.bf16.mxu0 0
    %2603 = vmatpush2.bf16.xpose.msra.mxu0 0
    %2604 = vmatprep.subr.bf16.mxu0 0
    %2605 = vmatpush2.bf16.xpose.msra.mxu0 0
    %2606 = vmatprep.subr.bf16.mxu0 0
    %2607 = vmatpush2.bf16.xpose.msra.mxu0 0
    %2608 = vmatprep.subr.bf16.mxu0 0
    %2609 = vmatpush2.bf16.xpose.msra.mxu0 0
    %2610 = vmatprep.subr.bf16.mxu0 0
    %2611 = vmatpush2.bf16.xpose.msra.mxu0 0
    %2612 = vmatprep.subr.bf16.mxu0 0
    %2613 = vmatpush2.bf16.xpose.msra.mxu0 0
    %2614 = vmatprep.mubr.bf16.mxu0 0
    %2615 = vmatmul.mubr.bf16.gmra.mxu0 %v2577
    %v2616 = vpop.f32.mrf.mxu0
    %v2617 = vadd.f32 0.0, %v2616
    %v2618 = vpop.f32.mrf.mxu0
    %v2619 = vpop.f32.mrf.mxu0
    %v2620 = vpop.f32.mrf.mxu0
    %2621 = vdwg.mxu0
    %2622 = vrot.lane.b32.xlu0 %v1767, 104
    %v2623 = vpop.permute.xlu0 %2622
    %2624 = vrot.lane.b32.xlu0 %v1767, 72
    %v2625 = vpop.permute.xlu0 %2624
    %v2627 = vsel %vm282, %v2623, 0
    %v2630 = vsel %vm282, %v2625, 0
    %2632 = vmatprep.subr.bf16.mxu0 0
    %2633 = vmatpush1.bf16.xpose.msra.mxu0 0
    %2634 = vmatprep.subr.bf16.mxu0 0
    %2635 = vmatpush1.bf16.xpose.msra.mxu0 0
    %2636 = vmatprep.subr.bf16.mxu0 0
    %2637 = vmatpush1.bf16.xpose.msra.mxu0 0
    %2638 = vmatprep.subr.bf16.mxu0 0
    %2639 = vmatpush1.bf16.xpose.msra.mxu0 0
    %2640 = vmatprep.subr.bf16.mxu0 0
    %2641 = vmatpush1.bf16.xpose.msra.mxu0 0
    %2642 = vmatprep.subr.bf16.mxu0 0
    %2643 = vmatpush1.bf16.xpose.msra.mxu0 0
    %2644 = vmatprep.subr.bf16.mxu0 0
    %2645 = vmatpush1.bf16.xpose.msra.mxu0 0
    %2646 = vmatprep.subr.bf16.mxu0 0
    %2647 = vmatpush1.bf16.xpose.msra.mxu0 %v2630
    %2648 = vmatprep.subr.bf16.mxu0 0
    %2649 = vmatpush2.bf16.xpose.msra.mxu0 0
    %2650 = vmatprep.subr.bf16.mxu0 0
    %2651 = vmatpush2.bf16.xpose.msra.mxu0 0
    %2652 = vmatprep.subr.bf16.mxu0 0
    %2653 = vmatpush2.bf16.xpose.msra.mxu0 0
    %2654 = vmatprep.subr.bf16.mxu0 0
    %2655 = vmatpush2.bf16.xpose.msra.mxu0 0
    %2656 = vmatprep.subr.bf16.mxu0 0
    %2657 = vmatpush2.bf16.xpose.msra.mxu0 0
    %2658 = vmatprep.subr.bf16.mxu0 0
    %2659 = vmatpush2.bf16.xpose.msra.mxu0 0
    %2660 = vmatprep.subr.bf16.mxu0 0
    %2661 = vmatpush2.bf16.xpose.msra.mxu0 0
    %2662 = vmatprep.subr.bf16.mxu0 0
    %2663 = vmatpush2.bf16.xpose.msra.mxu0 0
    %2664 = vmatprep.mubr.bf16.mxu0 0
    %2665 = vmatmul.mubr.bf16.gmra.mxu0 %v2627
    %v2666 = vpop.f32.mrf.mxu0
    %v2667 = vadd.f32 0.0, %v2666
    %v2668 = vpop.f32.mrf.mxu0
    %v2669 = vpop.f32.mrf.mxu0
    %v2670 = vpop.f32.mrf.mxu0
    %2671 = vdwg.mxu0
    %v2672 = vsel %vm282, %v2617, -inf
    %2673 = vmax.xlane.f32.xlu0 %v2672
    %v2674 = vpop.xlane.xlu0 %2673
    %v2675 = vsel %vm282, %v2667, -inf
    %2676 = vmax.xlane.f32.xlu0 %v2675
    %v2677 = vpop.xlane.xlu0 %2676
    %v2678 = vsub.f32 %v2617, %v2674
    %v2679 = vsub.f32 %v2667, %v2677
    %v2680 = vmul.f32 %v2678, 1.442695
    %v2681 = vpow.pop %v2680
    %v2682 = vmul.f32 %v2679, 1.442695
    %v2683 = vpow.pop %v2682
    %v2684 = vsel %vm282, %v2681, 0.0
    %2685 = vadd.xlane.f32.xlu0 %v2684
    %v2686 = vpop.xlane.xlu0 %2685
    %v2687 = vsel %vm282, %v2683, 0.0
    %2688 = vadd.xlane.f32.xlu0 %v2687
    %v2689 = vpop.xlane.xlu0 %2688
    %v2690 = vrcp.pop %v2686
    %v2691 = vrcp.pop %v2689
    %v2692 = vmul.f32 %v2681, %v2690
    %v2693 = vmul.f32 %v2683, %v2691
    %v2694 = vpack.c.bf16 %v2692, %v2692
    %v2695 = vpack.c.bf16 %v2693, %v2693
    %2696 = vrot.lane.b32.xlu0 %v1768, 104
    %v2697 = vpop.permute.xlu0 %2696
    %v2699 = vsel %vm282, %v2694, 0
    %v2702 = vsel %vm405, %v2697, 0
    %2704 = vmatprep.subr.bf16.mxu0 0
    %2705 = vmatpush1.bf16.msra.mxu0 0
    %2706 = vmatprep.subr.bf16.mxu0 0
    %2707 = vmatpush1.bf16.msra.mxu0 0
    %2708 = vmatprep.subr.bf16.mxu0 0
    %2709 = vmatpush1.bf16.msra.mxu0 0
    %2710 = vmatprep.subr.bf16.mxu0 0
    %2711 = vmatpush1.bf16.msra.mxu0 0
    %2712 = vmatprep.subr.bf16.mxu0 0
    %2713 = vmatpush1.bf16.msra.mxu0 0
    %2714 = vmatprep.subr.bf16.mxu0 0
    %2715 = vmatpush1.bf16.msra.mxu0 0
    %2716 = vmatprep.subr.bf16.mxu0 0
    %2717 = vmatpush1.bf16.msra.mxu0 0
    %2718 = vmatprep.subr.bf16.mxu0 0
    %2719 = vmatpush1.bf16.msra.mxu0 %v2702
    %2720 = vmatprep.subr.bf16.mxu0 0
    %2721 = vmatpush2.bf16.msra.mxu0 0
    %2722 = vmatprep.subr.bf16.mxu0 0
    %2723 = vmatpush2.bf16.msra.mxu0 0
    %2724 = vmatprep.subr.bf16.mxu0 0
    %2725 = vmatpush2.bf16.msra.mxu0 0
    %2726 = vmatprep.subr.bf16.mxu0 0
    %2727 = vmatpush2.bf16.msra.mxu0 0
    %2728 = vmatprep.subr.bf16.mxu0 0
    %2729 = vmatpush2.bf16.msra.mxu0 0
    %2730 = vmatprep.subr.bf16.mxu0 0
    %2731 = vmatpush2.bf16.msra.mxu0 0
    %2732 = vmatprep.subr.bf16.mxu0 0
    %2733 = vmatpush2.bf16.msra.mxu0 0
    %2734 = vmatprep.subr.bf16.mxu0 0
    %2735 = vmatpush2.bf16.msra.mxu0 0
    %2736 = vmatprep.mubr.bf16.mxu0 0
    %2737 = vmatmul.mubr.bf16.gmra.mxu0 %v2699
    %v2738 = vpop.f32.mrf.mxu0
    %v2739 = vadd.f32 0.0, %v2738
    %v2740 = vpop.f32.mrf.mxu0
    %v2741 = vpop.f32.mrf.mxu0
    %v2742 = vpop.f32.mrf.mxu0
    %2743 = vdwg.mxu0
    %2744 = vrot.lane.b32.xlu0 %v1769, 104
    %v2745 = vpop.permute.xlu0 %2744
    %v2747 = vsel %vm282, %v2695, 0
    %v2750 = vsel %vm405, %v2745, 0
    %2752 = vmatprep.subr.bf16.mxu0 0
    %2753 = vmatpush1.bf16.msra.mxu0 0
    %2754 = vmatprep.subr.bf16.mxu0 0
    %2755 = vmatpush1.bf16.msra.mxu0 0
    %2756 = vmatprep.subr.bf16.mxu0 0
    %2757 = vmatpush1.bf16.msra.mxu0 0
    %2758 = vmatprep.subr.bf16.mxu0 0
    %2759 = vmatpush1.bf16.msra.mxu0 0
    %2760 = vmatprep.subr.bf16.mxu0 0
    %2761 = vmatpush1.bf16.msra.mxu0 0
    %2762 = vmatprep.subr.bf16.mxu0 0
    %2763 = vmatpush1.bf16.msra.mxu0 0
    %2764 = vmatprep.subr.bf16.mxu0 0
    %2765 = vmatpush1.bf16.msra.mxu0 0
    %2766 = vmatprep.subr.bf16.mxu0 0
    %2767 = vmatpush1.bf16.msra.mxu0 %v2750
    %2768 = vmatprep.subr.bf16.mxu0 0
    %2769 = vmatpush2.bf16.msra.mxu0 0
    %2770 = vmatprep.subr.bf16.mxu0 0
    %2771 = vmatpush2.bf16.msra.mxu0 0
    %2772 = vmatprep.subr.bf16.mxu0 0
    %2773 = vmatpush2.bf16.msra.mxu0 0
    %2774 = vmatprep.subr.bf16.mxu0 0
    %2775 = vmatpush2.bf16.msra.mxu0 0
    %2776 = vmatprep.subr.bf16.mxu0 0
    %2777 = vmatpush2.bf16.msra.mxu0 0
    %2778 = vmatprep.subr.bf16.mxu0 0
    %2779 = vmatpush2.bf16.msra.mxu0 0
    %2780 = vmatprep.subr.bf16.mxu0 0
    %2781 = vmatpush2.bf16.msra.mxu0 0
    %2782 = vmatprep.subr.bf16.mxu0 0
    %2783 = vmatpush2.bf16.msra.mxu0 0
    %2784 = vmatprep.mubr.bf16.mxu0 0
    %2785 = vmatmul.mubr.bf16.gmra.mxu0 %v2747
    %v2786 = vpop.f32.mrf.mxu0
    %v2787 = vadd.f32 0.0, %v2786
    %v2788 = vpop.f32.mrf.mxu0
    %v2789 = vpop.f32.mrf.mxu0
    %v2790 = vpop.f32.mrf.mxu0
    %2791 = vdwg.mxu0
    %v2792 = vpack.c.bf16 %v2787, %v2739
    %v2794 = vsel %vm282, %v2792, 0
    %v2797 = vsel %vm405, %v1609, 0
    %2799 = vmatprep.subr.bf16.mxu0 0
    %2800 = vmatpush1.bf16.msra.mxu0 0
    %2801 = vmatprep.subr.bf16.mxu0 0
    %2802 = vmatpush1.bf16.msra.mxu0 0
    %2803 = vmatprep.subr.bf16.mxu0 0
    %2804 = vmatpush1.bf16.msra.mxu0 0
    %2805 = vmatprep.subr.bf16.mxu0 0
    %2806 = vmatpush1.bf16.msra.mxu0 0
    %2807 = vmatprep.subr.bf16.mxu0 0
    %2808 = vmatpush1.bf16.msra.mxu0 0
    %2809 = vmatprep.subr.bf16.mxu0 0
    %2810 = vmatpush1.bf16.msra.mxu0 0
    %2811 = vmatprep.subr.bf16.mxu0 0
    %2812 = vmatpush1.bf16.msra.mxu0 0
    %2813 = vmatprep.subr.bf16.mxu0 0
    %2814 = vmatpush1.bf16.msra.mxu0 %v2797
    %2815 = vmatprep.subr.bf16.mxu0 0
    %2816 = vmatpush2.bf16.msra.mxu0 0
    %2817 = vmatprep.subr.bf16.mxu0 0
    %2818 = vmatpush2.bf16.msra.mxu0 0
    %2819 = vmatprep.subr.bf16.mxu0 0
    %2820 = vmatpush2.bf16.msra.mxu0 0
    %2821 = vmatprep.subr.bf16.mxu0 0
    %2822 = vmatpush2.bf16.msra.mxu0 0
    %2823 = vmatprep.subr.bf16.mxu0 0
    %2824 = vmatpush2.bf16.msra.mxu0 0
    %2825 = vmatprep.subr.bf16.mxu0 0
    %2826 = vmatpush2.bf16.msra.mxu0 0
    %2827 = vmatprep.subr.bf16.mxu0 0
    %2828 = vmatpush2.bf16.msra.mxu0 0
    %2829 = vmatprep.subr.bf16.mxu0 0
    %2830 = vmatpush2.bf16.msra.mxu0 0
    %2831 = vmatprep.mubr.bf16.mxu0 0
    %2832 = vmatmul.mubr.bf16.gmra.mxu0 %v2794
    %v2833 = vpop.f32.mrf.mxu0
    %v2834 = vadd.f32 0.0, %v2833
    %v2835 = vpop.f32.mrf.mxu0
    %v2836 = vpop.f32.mrf.mxu0
    %v2837 = vadd.f32 0.0, %v2836
    %v2838 = vpop.f32.mrf.mxu0
    %2839 = vdwg.mxu0
    %v2840 = vadd.f32 %v2570, %v2834
    %v2841 = vadd.f32 %v2571, %v2837
    %v2843 = vlaneseq
    %v2844 = vshrl.u32 %v2843, 7
    %v2845 = vsub.s32 0, %v2844
    %v2846 = vrot.slane %v1611, %v2845
    %v2848 = vadd.f32 %v2840, %v2846
    %v2849 = vadd.f32 %v2841, %v2846
    %v2850 = vadd.f32 %v1589, %v2848
    %v2851 = vadd.f32 %v1590, %v2849
    %v2852 = vsel %vm167, %v2850, 0.0
    %2853 = vadd.xlane.f32.xlu0 %v2852
    %v2854 = vpop.xlane.xlu0 %2853
    %v2855 = vsel %vm167, %v2851, 0.0
    %2856 = vadd.xlane.f32.xlu0 %v2855
    %v2857 = vpop.xlane.xlu0 %2856
    %v2858 = vmul.f32 %v2854, %v1369
    %v2859 = vmul.f32 %v2857, %v1369
    %v2860 = vsub.f32 %v2850, %v2858
    %v2861 = vsub.f32 %v2851, %v2859
    %v2862 = vmul.f32 %v2860, %v2860
    %v2863 = vmul.f32 %v2861, %v2861
    %v2864 = vsel %vm167, %v2862, 0.0
    %2865 = vadd.xlane.f32.xlu0 %v2864
    %v2866 = vpop.xlane.xlu0 %2865
    %v2867 = vsel %vm167, %v2863, 0.0
    %2868 = vadd.xlane.f32.xlu0 %v2867
    %v2869 = vpop.xlane.xlu0 %2868
    %v2870 = vmul.f32 %v2866, %v1369
    %v2871 = vmul.f32 %v2869, %v1369
    %v2872 = vadd.f32 %v2870, 1e-05
    %v2873 = vadd.f32 %v2871, 1e-05
    %v2874 = vrsqrt.pop %v2872
    %v2875 = vrsqrt.pop %v2873
    %v2876 = vmul.f32 %v2860, %v2874
    %v2877 = vmul.f32 %v2861, %v2875
    %v2879 = vlaneseq
    %v2880 = vshrl.u32 %v2879, 7
    %v2881 = vsub.s32 0, %v2880
    %v2882 = vrot.slane %v1631, %v2881
    %v2884 = vmul.f32 %v2876, %v2882
    %v2885 = vmul.f32 %v2877, %v2882
    %v2887 = vlaneseq
    %v2888 = vshrl.u32 %v2887, 7
    %v2889 = vsub.s32 0, %v2888
    %v2890 = vrot.slane %v1633, %v2889
    %v2892 = vadd.f32 %v2884, %v2890
    %v2893 = vadd.f32 %v2885, %v2890
    %v2894 = vpack.c.bf16 %v2893, %v2892
    %v2896 = vlaneseq
    %v2897 = vshrl.u32 %v2896, 7
    %v2898 = vsub.s32 0, %v2897
    %v2899 = vrot.slane %v1618, %v2898
    %v2905 = vunpack.c.l.b16 %v1613
    %v2906 = vunpack.c.l.b16 %v1614
    %v2907 = vunpack.c.l.b16 %v1615
    %v2908 = vunpack.c.l.b16 %v1616
    %v2909 = vpack.c.b16 %v2906, %v2905
    %v2910 = vpack.c.b16 %v2908, %v2907
    %v2914 = vsel %vm167, %v2894, 0
    %2916 = vmatprep.subr.bf16.mxu0 0
    %2917 = vmatpush1.bf16.msra.mxu0 0
    %2918 = vmatprep.subr.bf16.mxu0 0
    %2919 = vmatpush1.bf16.msra.mxu0 0
    %2920 = vmatprep.subr.bf16.mxu0 0
    %2921 = vmatpush1.bf16.msra.mxu0 0
    %2922 = vmatprep.subr.bf16.mxu0 0
    %2923 = vmatpush1.bf16.msra.mxu0 0
    %2924 = vmatprep.subr.bf16.mxu0 0
    %2925 = vmatpush1.bf16.msra.mxu0 0
    %2926 = vmatprep.subr.bf16.mxu0 0
    %2927 = vmatpush1.bf16.msra.mxu0 0
    %2928 = vmatprep.subr.bf16.mxu0 0
    %2929 = vmatpush1.bf16.msra.mxu0 %v2910
    %2930 = vmatprep.subr.bf16.mxu0 0
    %2931 = vmatpush1.bf16.msra.mxu0 %v2909
    %2932 = vmatprep.subr.bf16.mxu0 0
    %2933 = vmatpush2.bf16.msra.mxu0 0
    %2934 = vmatprep.subr.bf16.mxu0 0
    %2935 = vmatpush2.bf16.msra.mxu0 0
    %2936 = vmatprep.subr.bf16.mxu0 0
    %2937 = vmatpush2.bf16.msra.mxu0 0
    %2938 = vmatprep.subr.bf16.mxu0 0
    %2939 = vmatpush2.bf16.msra.mxu0 0
    %2940 = vmatprep.subr.bf16.mxu0 0
    %2941 = vmatpush2.bf16.msra.mxu0 0
    %2942 = vmatprep.subr.bf16.mxu0 0
    %2943 = vmatpush2.bf16.msra.mxu0 0
    %2944 = vmatprep.subr.bf16.mxu0 0
    %2945 = vmatpush2.bf16.msra.mxu0 0
    %2946 = vmatprep.subr.bf16.mxu0 0
    %2947 = vmatpush2.bf16.msra.mxu0 0
    %2948 = vmatprep.mubr.bf16.mxu0 0
    %2949 = vmatmul.mubr.bf16.gmra.mxu0 %v2914
    %v2950 = vpop.f32.mrf.mxu0
    %v2951 = vadd.f32 %v2899, %v2950
    %v2952 = vpop.f32.mrf.mxu0
    %v2953 = vpop.f32.mrf.mxu0
    %v2954 = vadd.f32 %v2899, %v2953
    %v2955 = vpop.f32.mrf.mxu0
    %2956 = vdwg.mxu0
    %v2957 = vmax.f32 %v2951, 0.0
    %v2958 = vmax.f32 %v2954, 0.0
    %v2959 = vpack.c.bf16 %v2958, %v2957
    %v2961 = vlaneseq
    %v2962 = vshrl.u32 %v2961, 7
    %v2963 = vsub.s32 0, %v2962
    %v2964 = vrot.slane %v1629, %v2963
    %v2974 = vunpack.c.l.b16 %v1620
    %v2975 = vunpack.c.l.b16 %v1621
    %v2976 = vunpack.c.l.b16 %v1622
    %v2977 = vunpack.c.l.b16 %v1623
    %v2978 = vunpack.c.l.b16 %v1624
    %v2979 = vunpack.c.l.b16 %v1625
    %v2980 = vunpack.c.l.b16 %v1626
    %v2981 = vunpack.c.l.b16 %v1627
    %v2982 = vpack.c.b16 %v2975, %v2974
    %v2983 = vpack.c.b16 %v2977, %v2976
    %v2984 = vpack.c.b16 %v2979, %v2978
    %v2985 = vpack.c.b16 %v2981, %v2980
    %v2991 = vsel %vm1502, %v2959, 0
    %2993 = vmatprep.subr.bf16.mxu0 0
    %2994 = vmatpush1.bf16.msra.mxu0 0
    %2995 = vmatprep.subr.bf16.mxu0 0
    %2996 = vmatpush1.bf16.msra.mxu0 0
    %2997 = vmatprep.subr.bf16.mxu0 0
    %2998 = vmatpush1.bf16.msra.mxu0 0
    %2999 = vmatprep.subr.bf16.mxu0 0
    %3000 = vmatpush1.bf16.msra.mxu0 0
    %3001 = vmatprep.subr.bf16.mxu0 0
    %3002 = vmatpush1.bf16.msra.mxu0 %v2985
    %3003 = vmatprep.subr.bf16.mxu0 0
    %3004 = vmatpush1.bf16.msra.mxu0 %v2984
    %3005 = vmatprep.subr.bf16.mxu0 0
    %3006 = vmatpush1.bf16.msra.mxu0 %v2983
    %3007 = vmatprep.subr.bf16.mxu0 0
    %3008 = vmatpush1.bf16.msra.mxu0 %v2982
    %3009 = vmatprep.subr.bf16.mxu0 0
    %3010 = vmatpush2.bf16.msra.mxu0 0
    %3011 = vmatprep.subr.bf16.mxu0 0
    %3012 = vmatpush2.bf16.msra.mxu0 0
    %3013 = vmatprep.subr.bf16.mxu0 0
    %3014 = vmatpush2.bf16.msra.mxu0 0
    %3015 = vmatprep.subr.bf16.mxu0 0
    %3016 = vmatpush2.bf16.msra.mxu0 0
    %3017 = vmatprep.subr.bf16.mxu0 0
    %3018 = vmatpush2.bf16.msra.mxu0 0
    %3019 = vmatprep.subr.bf16.mxu0 0
    %3020 = vmatpush2.bf16.msra.mxu0 0
    %3021 = vmatprep.subr.bf16.mxu0 0
    %3022 = vmatpush2.bf16.msra.mxu0 0
    %3023 = vmatprep.subr.bf16.mxu0 0
    %3024 = vmatpush2.bf16.msra.mxu0 0
    %3025 = vmatprep.mubr.bf16.mxu0 0
    %3026 = vmatmul.mubr.bf16.gmra.mxu0 %v2991
    %v3027 = vpop.f32.mrf.mxu0
    %v3028 = vadd.f32 %v2964, %v3027
    %v3029 = vpop.f32.mrf.mxu0
    %v3030 = vpop.f32.mrf.mxu0
    %v3031 = vadd.f32 %v2964, %v3030
    %v3032 = vpop.f32.mrf.mxu0
    %3033 = vdwg.mxu0
    %v3034 = vadd.f32 %v2892, %v3028
    %v3035 = vadd.f32 %v2893, %v3031
    %v3036 = vsel %vm167, %v3034, 0.0
    %3037 = vadd.xlane.f32.xlu0 %v3036
    %v3038 = vpop.xlane.xlu0 %3037
    %v3039 = vsel %vm167, %v3035, 0.0
    %3040 = vadd.xlane.f32.xlu0 %v3039
    %v3041 = vpop.xlane.xlu0 %3040
    %v3042 = vmul.f32 %v3038, %v1369
    %v3043 = vmul.f32 %v3041, %v1369
    %v3044 = vsub.f32 %v3034, %v3042
    %v3045 = vsub.f32 %v3035, %v3043
    %v3046 = vmul.f32 %v3044, %v3044
    %v3047 = vmul.f32 %v3045, %v3045
    %v3048 = vsel %vm167, %v3046, 0.0
    %3049 = vadd.xlane.f32.xlu0 %v3048
    %v3050 = vpop.xlane.xlu0 %3049
    %v3051 = vsel %vm167, %v3047, 0.0
    %3052 = vadd.xlane.f32.xlu0 %v3051
    %v3053 = vpop.xlane.xlu0 %3052
    %v3054 = vmul.f32 %v3050, %v1369
    %v3055 = vmul.f32 %v3053, %v1369
    %v3056 = vadd.f32 %v3054, 1e-05
    %v3057 = vadd.f32 %v3055, 1e-05
    %v3058 = vrsqrt.pop %v3056
    %v3059 = vrsqrt.pop %v3057
    %v3060 = vmul.f32 %v3044, %v3058
    %v3061 = vmul.f32 %v3045, %v3059
    %v3063 = vlaneseq
    %v3064 = vshrl.u32 %v3063, 7
    %v3065 = vsub.s32 0, %v3064
    %v3066 = vrot.slane %v1635, %v3065
    %v3068 = vmul.f32 %v3060, %v3066
    %v3069 = vmul.f32 %v3061, %v3066
    %v3071 = vlaneseq
    %v3072 = vshrl.u32 %v3071, 7
    %v3073 = vsub.s32 0, %v3072
    %v3074 = vrot.slane %v1637, %v3073
    %v3076 = vadd.f32 %v3068, %v3074
    %v3077 = vadd.f32 %v3069, %v3074
    %3078 = vst.msk [vmem:[%s16] sm:$0xff] %vm167, %v3076
    %3079 = vst.msk [vmem:[%s16 + $0x8] sm:$0xff] %vm167, %v3077
    // Predicated region
    $region82: #{_lambda_.1} parent=1 // pred_check
      _
    $region83: #{_lambda_.1} parent=1 // pred_check_branch
      %3081 = sbr.rel (0) target = $region85
    $region84: #{_lambda_.1} parent=1 // pred_region
      _
    $region85: #{_lambda_.1} parent=1 // pred_fallthru
      _
    // Predicated region
    $region86: #{_lambda_.1} parent=1 // pred_check
      _
    $region87: #{_lambda_.1} parent=1 // pred_check_branch
      %3083 = sbr.rel (0) target = $region89
    $region88: #{_lambda_.1} parent=1 // pred_region
      _
    $region89: #{_lambda_.1} parent=1 // pred_fallthru
      _
    %3084 = vsyncpa [#allocation3], 1
    %3085 = vsyncpa [#allocation5], 1
    %3086 = vsyncpa [#allocation8], 1

</llo_original>
